<compile_context>
chip_gen: v5e
topology: v5e:2x2
jax: 0.10.0
libtpu: 0.0.40
codegen_flags: <defaults>
</compile_context>

<pallas_src>
import functools

import jax
import jax.numpy as jnp
from jax.experimental import pallas as pl
from jax.experimental.pallas import tpu as pltpu

_EPS = 1e-5
_LANE = 128


def _round_up(x, m):
    return (x + m - 1) // m * m


def _col_tile(n):
    assert n % _LANE == 0, f"output width {n} must be lane-padded to 128"
    # v6e/v7x MXU is 2x256x256 -> prefer 256-wide N tiles when divisible;
    # 128-wide tiles are already native on v5e (4x128x128).
    return 256 if n % 256 == 0 else _LANE


def _row_tiling(m, pref):
    """Row tile + padded row count (extra rows are zero-padded, sliced off)."""
    if m > pref:
        return pref, _round_up(m, pref)
    m8 = _round_up(m, 8)
    return m8, m8


def _pick_row_tiling(m, k, tn, *, prologue, has_residual, out_bytes,
                     budget_bytes=24 << 20, pref_cap=512):
    """Largest row tile whose double-buffered VMEM footprint stays under a
    conservative budget (safe for the 32 MiB default scoped VMEM everywhere,
    incl. v7x where physical VMEM is only 64 MiB)."""
    pref = pref_cap
    while pref > 8:
        est = 2 * pref * k * 2            # A tiles, bf16, double buffered
        est += 2 * k * tn * 2             # full-K resident B, bf16, 2 buffers
        est += 2 * pref * tn * out_bytes  # output tiles
        if has_residual:
            est += 2 * pref * tn * 2      # residual tiles, bf16
        if prologue:
            est += pref * k * 6           # in-kernel f32 bn1 temp + bf16 recast
        if est <= budget_bytes:
            break
        pref //= 2
    return _row_tiling(m, pref)


# ----------------------------- Pallas kernel -------------------------------

def _fused_matmul_kernel(*refs, prologue, affine, relu, residual):
    """o = epilogue(prologue(A) @ B), one MXU matmul over the full resident K.

    prologue : per-K-column affine + ReLU applied to A (eval-mode BN1 + ReLU)
    affine   : per-output-channel affine on the f32 accumulator (BN2)
    relu     : ReLU on the accumulator
    residual : fused residual add (bf16 residual, f32 accumulate)
    """
    a_ref, b_ref = refs[0], refs[1]
    idx = 2
    if prologue:
        pscale_ref, pshift_ref = refs[idx], refs[idx + 1]
        idx += 2
    if affine:
        escale_ref, eshift_ref = refs[idx], refs[idx + 1]
        idx += 2
    if residual:
        res_ref = refs[idx]
        idx += 1
    o_ref = refs[idx]

    a = a_ref[...]
    if prologue:  # relu(bn1(x)) fused into the GEMM prologue
        a = jnp.maximum(a.astype(jnp.float32) * pscale_ref[...]
                        + pshift_ref[...], 0.0)
    y = jnp.dot(a.astype(jnp.bfloat16), b_ref[...],
                preferred_element_type=jnp.float32)
    if affine:    # eval-mode bn2 == per-channel affine
        y = y * escale_ref[...] + eshift_ref[...]
    if relu:
        y = jnp.maximum(y, 0.0)
    if residual:
        y = y + res_ref[...].astype(jnp.float32)
    o_ref[...] = y.astype(o_ref.dtype)


def fused_matmul(a, b, *, pscale=None, pshift=None, escale=None, eshift=None,
                 residual=None, relu=False, out_dtype=jnp.bfloat16):
    """(M, K) @ (K, N) on the MXU in bf16 with f32 accumulation.

    Grid is (N-tiles, M-tiles) with the N axis outermost so the full-K weight
    block (B) stays VMEM-resident across every row tile: weight HBM traffic is
    ~K*N bytes instead of (M/tm)*K*N. Optional fused BN1+ReLU prologue on A and
    BN2 / ReLU / residual-add epilogue before the single lane-dense store.
    """
    m, k = a.shape
    kb, n = b.shape
    assert kb == k
    assert k % _LANE == 0, f"K={k} must be lane-padded to a multiple of 128"
    tn = _col_tile(n)

    prologue = pscale is not None
    affine = escale is not None
    has_res = residual is not None
    out_bytes = jnp.dtype(out_dtype).itemsize
    tm, m_pad = _pick_row_tiling(m, k, tn, prologue=prologue,
                                 has_residual=has_res, out_bytes=out_bytes)
    if m_pad != m:
        a = jnp.pad(a, ((0, m_pad - m), (0, 0)))
        if has_res:
            residual = jnp.pad(residual, ((0, m_pad - m), (0, 0)))

    in_specs = [pl.BlockSpec((tm, k), lambda j, i: (i, 0)),   # A: per row tile
                pl.BlockSpec((k, tn), lambda j, i: (0, j))]   # B: resident per j
    operands = [a.astype(jnp.bfloat16), b.astype(jnp.bfloat16)]
    if prologue:
        in_specs += [pl.BlockSpec((1, k), lambda j, i: (0, 0)),
                     pl.BlockSpec((1, k), lambda j, i: (0, 0))]
        operands += [pscale.astype(jnp.float32), pshift.astype(jnp.float32)]
    if affine:
        in_specs += [pl.BlockSpec((1, tn), lambda j, i: (0, j)),
                     pl.BlockSpec((1, tn), lambda j, i: (0, j))]
        operands += [escale.astype(jnp.float32), eshift.astype(jnp.float32)]
    if has_res:
        in_specs.append(pl.BlockSpec((tm, tn), lambda j, i: (i, j)))
        operands.append(residual.astype(jnp.bfloat16))

    kernel = functools.partial(_fused_matmul_kernel, prologue=prologue,
                               affine=affine, relu=relu, residual=has_res)
    # Both grid axes are independent -> "parallel" (megacore-shardable). Note
    # for v7x: at tiny late-stage layers the sharded extent can be 1, leaving
    # one TC idle; unavoidable at toy shapes.
    out = pl.pallas_call(
        kernel,
        out_shape=jax.ShapeDtypeStruct((m_pad, n), out_dtype),
        grid=(n // tn, m_pad // tm),
        in_specs=in_specs,
        out_specs=pl.BlockSpec((tm, tn), lambda j, i: (i, j)),
        compiler_params=pltpu.CompilerParams(
            dimension_semantics=("parallel", "parallel")),
    )(*operands)
    return out[:m] if m_pad != m else out


# ------------------------------- glue (XLA) --------------------------------

def _im2col(x_nhwc, kh, kw, stride, padding, pad_value=None):
    # TODO(synk): tap extraction kept as XLA glue; in-kernel tap K-reduction
    # would need halo-aware manual DMA of shifted row windows.
    n, h, w, c = x_nhwc.shape
    hp, wp = h + 2 * padding, w + 2 * padding
    if padding > 0 and pad_value is not None:
        # Per-channel pad value (chosen so relu(bn1(pad)) == 0 when bn1 is
        # fused as a GEMM prologue on the raw input).
        xp = jnp.broadcast_to(pad_value.reshape(1, 1, 1, c).astype(x_nhwc.dtype),
                              (n, hp, wp, c))
        xp = xp.at[:, padding:padding + h, padding:padding + w, :].set(x_nhwc)
    else:
        xp = jnp.pad(x_nhwc, ((0, 0), (padding, padding),
                              (padding, padding), (0, 0)))
    ho = (hp - kh) // stride + 1
    wo = (wp - kw) // stride + 1
    cols = []
    for i in range(kh):
        for j in range(kw):
            cols.append(xp[:, i:i + stride * ho:stride,
                           j:j + stride * wo:stride, :])
    patches = jnp.concatenate(cols, axis=-1).reshape(n * ho * wo, kh * kw * c)
    return patches, ho, wo


# ----------------------------- parameter init ------------------------------

def _init_bn(keys, c):
    return dict(gamma=1.0 + 0.1 * jax.random.normal(keys[0], (c,), jnp.float32),
                beta=0.1 * jax.random.normal(keys[1], (c,), jnp.float32),
                mean=0.05 * jax.random.normal(keys[2], (c,), jnp.float32),
                var=jnp.ones((c,), jnp.float32))


def init_basic_block(key, in_planes, out_planes):
    ks = jax.random.split(key, 9)
    p = {
        "bn1": _init_bn(ks[0:3], in_planes),
        "conv1": 0.1 * jax.random.normal(ks[3], (out_planes, in_planes, 3, 3),
                                         jnp.float32),
        "bn2": _init_bn(ks[4:7], out_planes),
        "conv2": 0.1 * jax.random.normal(ks[7], (out_planes, out_planes, 3, 3),
                                         jnp.float32),
    }
    if in_planes != out_planes:
        p["shortcut"] = 0.1 * jax.random.normal(
            ks[8], (out_planes, in_planes, 1, 1), jnp.float32)
    return p


def init_network_block(key, nb_layers, in_planes, out_planes, stride):
    keys = jax.random.split(key, nb_layers)
    layers = []
    for i in range(int(nb_layers)):
        ip = in_planes if i == 0 else out_planes
        st = stride if i == 0 else 1
        layers.append((init_basic_block(keys[i], ip, out_planes), ip, st))
    return layers


# ------------------ lane-dense parameter preparation ------------------------

def _bn_to_scale_shift(bn, c_pad):
    c = bn["gamma"].shape[0]
    gamma = jnp.pad(bn["gamma"], (0, c_pad - c))
    beta = jnp.pad(bn["beta"], (0, c_pad - c))
    mean = jnp.pad(bn["mean"], (0, c_pad - c))
    var = jnp.pad(bn["var"], (0, c_pad - c), constant_values=1.0)
    inv_std = 1.0 / jnp.sqrt(var + _EPS)
    scale = (gamma * inv_std).reshape(1, c_pad)
    shift = (beta - mean * gamma * inv_std).reshape(1, c_pad)
    return scale, shift


def _conv_to_matrix(w_oihw, cin_pad, cout_pad):
    cout, cin, kh, kw = w_oihw.shape
    w = jnp.pad(w_oihw, ((0, cout_pad - cout), (0, cin_pad - cin),
                         (0, 0), (0, 0)))
    # (Cout,Cin,kh,kw) -> (kh,kw,Cin,Cout) -> (kh*kw*Cin, Cout); matches the
    # tap-major column order produced by _im2col.
    wmat = jnp.transpose(w, (2, 3, 1, 0)).reshape(kh * kw * cin_pad, cout_pad)
    return wmat.astype(jnp.bfloat16)


def prepare_basic_block(p, in_planes, out_planes):
    cin_p = _round_up(in_planes, _LANE)
    cout_p = _round_up(out_planes, _LANE)
    s1, b1 = _bn_to_scale_shift(p["bn1"], cin_p)
    s2, b2 = _bn_to_scale_shift(p["bn2"], cout_p)
    # Spatial pad value that bn1+relu maps to exactly 0, so fusing bn1 into
    # the conv1 GEMM prologue reproduces zero-padding of relu(bn1(x)).
    safe_s1 = jnp.where(s1 != 0.0, s1, 1.0)
    neutral = jnp.where(s1 != 0.0, -b1 / safe_s1, 0.0).reshape(-1)
    pp = {"bn1_scale": s1, "bn1_shift": b1,
          "bn1_scale9": jnp.tile(s1, (1, 9)),
          "bn1_shift9": jnp.tile(b1, (1, 9)),
          "bn1_neutral": neutral,
          "bn2_scale": s2, "bn2_shift": b2,
          "w1": _conv_to_matrix(p["conv1"], cin_p, cout_p),
          "w2": _conv_to_matrix(p["conv2"], cout_p, cout_p)}
    if "shortcut" in p:
        pp["ws"] = _conv_to_matrix(p["shortcut"], cin_p, cout_p)
    return pp


# ------------------------------ forward pass --------------------------------

def basic_block_forward(pp, x, stride, equal_in_out):
    """x: (N, H, W, Cin_p) bfloat16, channels already lane-padded."""
    n, h, w, cin_p = x.shape
    cout_p = pp["w1"].shape[1]

    # conv1 (3x3, stride): BN1+ReLU fused as the GEMM prologue,
    # BN2 affine + ReLU fused as the GEMM epilogue.
    patches1, ho, wo = _im2col(x, 3, 3, stride, 1, pad_value=pp["bn1_neutral"])
    m1 = n * ho * wo
    hid = fused_matmul(patches1, pp["w1"],
                       pscale=pp["bn1_scale9"], pshift=pp["bn1_shift9"],
                       escale=pp["bn2_scale"], eshift=pp["bn2_shift"],
                       relu=True, out_dtype=jnp.bfloat16)
    # TODO(synk): dropout path skipped — dropRate=0.0 in this instantiation.

    # Shortcut branch.
    if equal_in_out:
        residual = x.reshape(m1, cout_p)      # stride==1 and cin_p == cout_p
    else:
        xs = x[:, ::stride, ::stride, :].reshape(m1, cin_p)
        # 1x1 conv as a plain GEMM, BN1+ReLU fused as its prologue too.
        residual = fused_matmul(xs, pp["ws"],
                                pscale=pp["bn1_scale"], pshift=pp["bn1_shift"],
                                out_dtype=jnp.bfloat16)

    # conv2 (3x3, stride 1) with the residual add fused in the GEMM epilogue.
    patches2, _, _ = _im2col(hid.reshape(n, ho, wo, cout_p), 3, 3, 1, 1)
    y2d = fused_matmul(patches2, pp["w2"], residual=residual,
                       out_dtype=jnp.bfloat16)
    return y2d.reshape(n, ho, wo, cout_p)


def network_block_forward(prepped_layers, x_nhwc):
    for pp, stride, equal_in_out in prepped_layers:
        x_nhwc = basic_block_forward(pp, x_nhwc, stride, equal_in_out)
    return x_nhwc


# --------------------------------- driver ----------------------------------

if __name__ == "__main__":
    key = jax.random.PRNGKey(0)
    k_x, k_p = jax.random.split(key)

    # NetworkBlock(nb_layers=2, in_planes=4, out_planes=8, block=BasicBlock,
    #              stride=2, dropRate=0.0)
    nb_layers, in_planes, out_planes, stride = 2, 4, 8, 2

    x_nchw = jax.random.normal(k_x, (2, in_planes, 16, 16), jnp.float32)
    layers = init_network_block(k_p, nb_layers, in_planes, out_planes, stride)

    # Pad channels to a lane-dense multiple of 128 ONCE at the block boundary
    # and carry activations in bf16 between kernels/layers.
    cin_p = _round_up(in_planes, _LANE)
    prepped = [(prepare_basic_block(p, ip, out_planes), st, ip == out_planes)
               for (p, ip, st) in layers]

    x_nhwc = jnp.transpose(x_nchw, (0, 2, 3, 1))  # NCHW -> NHWC
    x_nhwc = jnp.pad(x_nhwc, ((0, 0), (0, 0), (0, 0),
                              (0, cin_p - in_planes))).astype(jnp.bfloat16)

    fwd = jax.jit(functools.partial(network_block_forward, prepped))
    y_pad = fwd(x_nhwc)
    y_nhwc = y_pad[..., :out_planes].astype(jnp.float32)   # drop channel pad
    y_nchw = jnp.transpose(y_nhwc, (0, 3, 1, 2))            # back to NCHW

    jax.block_until_ready(y_nchw)
    assert y_nchw.shape == (2, out_planes, 8, 8), y_nchw.shape
    print("KERNEL_OK")
</pallas_src>

<mosaic_0001>
module attributes {stable_mosaic.version = 11 : i64} {
  func.func @_fused_matmul_kernel(%arg0: i32, %arg1: i32, %arg2: memref<128x1152xbf16, #tpu.memory_space<vmem>>, %arg3: memref<1152x128xbf16, #tpu.memory_space<vmem>>, %arg4: memref<1x1152xf32, #tpu.memory_space<vmem>>, %arg5: memref<1x1152xf32, #tpu.memory_space<vmem>>, %arg6: memref<1x128xf32, #tpu.memory_space<vmem>>, %arg7: memref<1x128xf32, #tpu.memory_space<vmem>>, %arg8: memref<128x128xbf16, #tpu.memory_space<vmem>>) attributes {dimension_semantics = [#tpu.dimension_semantics<parallel>, #tpu.dimension_semantics<parallel>], iteration_bounds = array<i64: 1, 1>, scalar_prefetch = 0 : i64, scratch_operands = 0 : i64, tpu.core_type = #tpu.core_type<tc>, window_params = [{transform_indices = @transform_0, window_bounds = array<i64: 128, 1152>}, {transform_indices = @transform_1, window_bounds = array<i64: 1152, 128>}, {pipeline_mode = #tpu.pipeline_mode<synchronous>, transform_indices = @transform_2, window_bounds = array<i64: 1, 1152>}, {pipeline_mode = #tpu.pipeline_mode<synchronous>, transform_indices = @transform_3, window_bounds = array<i64: 1, 1152>}, {transform_indices = @transform_4, window_bounds = array<i64: 1, 128>}, {transform_indices = @transform_5, window_bounds = array<i64: 1, 128>}, {transform_indices = @transform_6, window_bounds = array<i64: 128, 128>}]} {
    %c0 = arith.constant 0 : index
    %c0_0 = arith.constant 0 : index
    %0 = vector.load %arg2[%c0, %c0_0] : memref<128x1152xbf16, #tpu.memory_space<vmem>>, vector<128x1152xbf16>
    %1 = arith.extf %0 : vector<128x1152xbf16> to vector<128x1152xf32>
    %c0_1 = arith.constant 0 : index
    %c0_2 = arith.constant 0 : index
    %2 = vector.load %arg4[%c0_1, %c0_2] : memref<1x1152xf32, #tpu.memory_space<vmem>>, vector<1x1152xf32>
    %3 = vector.broadcast %2 : vector<1x1152xf32> to vector<128x1152xf32>
    %4 = arith.mulf %1, %3 : vector<128x1152xf32>
    %c0_3 = arith.constant 0 : index
    %c0_4 = arith.constant 0 : index
    %5 = vector.load %arg5[%c0_3, %c0_4] : memref<1x1152xf32, #tpu.memory_space<vmem>>, vector<1x1152xf32>
    %6 = vector.broadcast %5 : vector<1x1152xf32> to vector<128x1152xf32>
    %7 = arith.addf %4, %6 : vector<128x1152xf32>
    %cst = arith.constant 0.000000e+00 : f32
    %8 = vector.broadcast %cst : f32 to vector<128x1152xf32>
    %9 = arith.maximumf %7, %8 : vector<128x1152xf32>
    %10 = arith.truncf %9 : vector<128x1152xf32> to vector<128x1152xbf16>
    %c0_5 = arith.constant 0 : index
    %c0_6 = arith.constant 0 : index
    %11 = vector.load %arg3[%c0_5, %c0_6] : memref<1152x128xbf16, #tpu.memory_space<vmem>>, vector<1152x128xbf16>
    %cst_7 = arith.constant dense<0.000000e+00> : vector<128x128xf32>
    %12 = tpu.matmul %10, %11, %cst_7 {dimension_numbers = #tpu.dot_dimension_numbers<[1], [0], [0], [1], [0, 0, 1, 1], [], []>} : vector<128x1152xbf16>, vector<1152x128xbf16>, vector<128x128xf32> -> vector<128x128xf32>
    %c0_8 = arith.constant 0 : index
    %c0_9 = arith.constant 0 : index
    %13 = vector.load %arg6[%c0_8, %c0_9] : memref<1x128xf32, #tpu.memory_space<vmem>>, vector<1x128xf32>
    %14 = vector.broadcast %13 : vector<1x128xf32> to vector<128x128xf32>
    %15 = arith.mulf %12, %14 : vector<128x128xf32>
    %c0_10 = arith.constant 0 : index
    %c0_11 = arith.constant 0 : index
    %16 = vector.load %arg7[%c0_10, %c0_11] : memref<1x128xf32, #tpu.memory_space<vmem>>, vector<1x128xf32>
    %17 = vector.broadcast %16 : vector<1x128xf32> to vector<128x128xf32>
    %18 = arith.addf %15, %17 : vector<128x128xf32>
    %cst_12 = arith.constant 0.000000e+00 : f32
    %19 = vector.broadcast %cst_12 : f32 to vector<128x128xf32>
    %20 = arith.maximumf %18, %19 : vector<128x128xf32>
    %21 = arith.truncf %20 : vector<128x128xf32> to vector<128x128xbf16>
    %c0_13 = arith.constant 0 : index
    %c0_14 = arith.constant 0 : index
    %22 = vector.load %arg8[%c0_13, %c0_14] : memref<128x128xbf16, #tpu.memory_space<vmem>>, vector<128x128xbf16>
    tpu.vector_store %arg8[%c0_13, %c0_14], %21 {strides = array<i32>} : memref<128x128xbf16, #tpu.memory_space<vmem>>, vector<128x128xbf16>,
    return
  }
  func.func @transform_0(%arg0: i32, %arg1: i32) -> (i32, i32) {
    %c0_i32 = arith.constant 0 : i32
    %c0_i32_0 = arith.constant 0 : i32
    return %arg1, %c0_i32 : i32, i32
  }
  func.func @transform_1(%arg0: i32, %arg1: i32) -> (i32, i32) {
    %c0_i32 = arith.constant 0 : i32
    %c0_i32_0 = arith.constant 0 : i32
    return %c0_i32, %arg0 : i32, i32
  }
  func.func @transform_2(%arg0: i32, %arg1: i32) -> (i32, i32) {
    %c0_i32 = arith.constant 0 : i32
    %c0_i32_0 = arith.constant 0 : i32
    %c0_i32_1 = arith.constant 0 : i32
    return %c0_i32, %c0_i32_0 : i32, i32
  }
  func.func @transform_3(%arg0: i32, %arg1: i32) -> (i32, i32) {
    %c0_i32 = arith.constant 0 : i32
    %c0_i32_0 = arith.constant 0 : i32
    %c0_i32_1 = arith.constant 0 : i32
    return %c0_i32, %c0_i32_0 : i32, i32
  }
  func.func @transform_4(%arg0: i32, %arg1: i32) -> (i32, i32) {
    %c0_i32 = arith.constant 0 : i32
    %c0_i32_0 = arith.constant 0 : i32
    return %c0_i32, %arg0 : i32, i32
  }
  func.func @transform_5(%arg0: i32, %arg1: i32) -> (i32, i32) {
    %c0_i32 = arith.constant 0 : i32
    %c0_i32_0 = arith.constant 0 : i32
    return %c0_i32, %arg0 : i32, i32
  }
  func.func @transform_6(%arg0: i32, %arg1: i32) -> (i32, i32) {
    %c0_i32 = arith.constant 0 : i32
    return %arg1, %arg0 : i32, i32
  }
}

module attributes {stable_mosaic.version = 11 : i64} {
  func.func @_fused_matmul_kernel(%arg0: i32, %arg1: i32, %arg2: memref<128x1152xbf16, #tpu.memory_space<vmem>>, %arg3: memref<1152x128xbf16, #tpu.memory_space<vmem>>, %arg4: memref<128x128xbf16, #tpu.memory_space<vmem>>, %arg5: memref<128x128xbf16, #tpu.memory_space<vmem>>) attributes {dimension_semantics = [#tpu.dimension_semantics<parallel>, #tpu.dimension_semantics<parallel>], iteration_bounds = array<i64: 1, 1>, scalar_prefetch = 0 : i64, scratch_operands = 0 : i64, tpu.core_type = #tpu.core_type<tc>, window_params = [{transform_indices = @transform_0, window_bounds = array<i64: 128, 1152>}, {transform_indices = @transform_1, window_bounds = array<i64: 1152, 128>}, {transform_indices = @transform_2, window_bounds = array<i64: 128, 128>}, {transform_indices = @transform_3, window_bounds = array<i64: 128, 128>}]} {
    %c0 = arith.constant 0 : index
    %c0_0 = arith.constant 0 : index
    %0 = vector.load %arg2[%c0, %c0_0] : memref<128x1152xbf16, #tpu.memory_space<vmem>>, vector<128x1152xbf16>
    %c0_1 = arith.constant 0 : index
    %c0_2 = arith.constant 0 : index
    %1 = vector.load %arg3[%c0_1, %c0_2] : memref<1152x128xbf16, #tpu.memory_space<vmem>>, vector<1152x128xbf16>
    %cst = arith.constant dense<0.000000e+00> : vector<128x128xf32>
    %2 = tpu.matmul %0, %1, %cst {dimension_numbers = #tpu.dot_dimension_numbers<[1], [0], [0], [1], [0, 0, 1, 1], [], []>} : vector<128x1152xbf16>, vector<1152x128xbf16>, vector<128x128xf32> -> vector<128x128xf32>
    %c0_3 = arith.constant 0 : index
    %c0_4 = arith.constant 0 : index
    %3 = vector.load %arg4[%c0_3, %c0_4] : memref<128x128xbf16, #tpu.memory_space<vmem>>, vector<128x128xbf16>
    %4 = arith.extf %3 : vector<128x128xbf16> to vector<128x128xf32>
    %5 = arith.addf %2, %4 : vector<128x128xf32>
    %6 = arith.truncf %5 : vector<128x128xf32> to vector<128x128xbf16>
    %c0_5 = arith.constant 0 : index
    %c0_6 = arith.constant 0 : index
    %7 = vector.load %arg5[%c0_5, %c0_6] : memref<128x128xbf16, #tpu.memory_space<vmem>>, vector<128x128xbf16>
    tpu.vector_store %arg5[%c0_5, %c0_6], %6 {strides = array<i32>} : memref<128x128xbf16, #tpu.memory_space<vmem>>, vector<128x128xbf16>,
    return
  }
  func.func @transform_0(%arg0: i32, %arg1: i32) -> (i32, i32) {
    %c0_i32 = arith.constant 0 : i32
    %c0_i32_0 = arith.constant 0 : i32
    return %arg1, %c0_i32 : i32, i32
  }
  func.func @transform_1(%arg0: i32, %arg1: i32) -> (i32, i32) {
    %c0_i32 = arith.constant 0 : i32
    %c0_i32_0 = arith.constant 0 : i32
    return %c0_i32, %arg0 : i32, i32
  }
  func.func @transform_2(%arg0: i32, %arg1: i32) -> (i32, i32) {
    %c0_i32 = arith.constant 0 : i32
    return %arg1, %arg0 : i32, i32
  }
  func.func @transform_3(%arg0: i32, %arg1: i32) -> (i32, i32) {
    %c0_i32 = arith.constant 0 : i32
    return %arg1, %arg0 : i32, i32
  }
}

module attributes {stable_mosaic.version = 11 : i64} {
  func.func @_fused_matmul_kernel(%arg0: i32, %arg1: i32, %arg2: memref<128x128xbf16, #tpu.memory_space<vmem>>, %arg3: memref<128x128xbf16, #tpu.memory_space<vmem>>, %arg4: memref<1x128xf32, #tpu.memory_space<vmem>>, %arg5: memref<1x128xf32, #tpu.memory_space<vmem>>, %arg6: memref<128x128xbf16, #tpu.memory_space<vmem>>) attributes {dimension_semantics = [#tpu.dimension_semantics<parallel>, #tpu.dimension_semantics<parallel>], iteration_bounds = array<i64: 1, 1>, scalar_prefetch = 0 : i64, scratch_operands = 0 : i64, tpu.core_type = #tpu.core_type<tc>, window_params = [{transform_indices = @transform_0, window_bounds = array<i64: 128, 128>}, {transform_indices = @transform_1, window_bounds = array<i64: 128, 128>}, {pipeline_mode = #tpu.pipeline_mode<synchronous>, transform_indices = @transform_2, window_bounds = array<i64: 1, 128>}, {pipeline_mode = #tpu.pipeline_mode<synchronous>, transform_indices = @transform_3, window_bounds = array<i64: 1, 128>}, {transform_indices = @transform_4, window_bounds = array<i64: 128, 128>}]} {
    %c0 = arith.constant 0 : index
    %c0_0 = arith.constant 0 : index
    %0 = vector.load %arg2[%c0, %c0_0] : memref<128x128xbf16, #tpu.memory_space<vmem>>, vector<128x128xbf16>
    %1 = arith.extf %0 : vector<128x128xbf16> to vector<128x128xf32>
    %c0_1 = arith.constant 0 : index
    %c0_2 = arith.constant 0 : index
    %2 = vector.load %arg4[%c0_1, %c0_2] : memref<1x128xf32, #tpu.memory_space<vmem>>, vector<1x128xf32>
    %3 = vector.broadcast %2 : vector<1x128xf32> to vector<128x128xf32>
    %4 = arith.mulf %1, %3 : vector<128x128xf32>
    %c0_3 = arith.constant 0 : index
    %c0_4 = arith.constant 0 : index
    %5 = vector.load %arg5[%c0_3, %c0_4] : memref<1x128xf32, #tpu.memory_space<vmem>>, vector<1x128xf32>
    %6 = vector.broadcast %5 : vector<1x128xf32> to vector<128x128xf32>
    %7 = arith.addf %4, %6 : vector<128x128xf32>
    %cst = arith.constant 0.000000e+00 : f32
    %8 = vector.broadcast %cst : f32 to vector<128x128xf32>
    %9 = arith.maximumf %7, %8 : vector<128x128xf32>
    %10 = arith.truncf %9 : vector<128x128xf32> to vector<128x128xbf16>
    %c0_5 = arith.constant 0 : index
    %c0_6 = arith.constant 0 : index
    %11 = vector.load %arg3[%c0_5, %c0_6] : memref<128x128xbf16, #tpu.memory_space<vmem>>, vector<128x128xbf16>
    %cst_7 = arith.constant dense<0.000000e+00> : vector<128x128xf32>
    %12 = tpu.matmul %10, %11, %cst_7 {dimension_numbers = #tpu.dot_dimension_numbers<[1], [0], [0], [1], [0, 0, 1, 1], [], []>} : vector<128x128xbf16>, vector<128x128xbf16>, vector<128x128xf32> -> vector<128x128xf32>
    %13 = arith.truncf %12 : vector<128x128xf32> to vector<128x128xbf16>
    %c0_8 = arith.constant 0 : index
    %c0_9 = arith.constant 0 : index
    %14 = vector.load %arg6[%c0_8, %c0_9] : memref<128x128xbf16, #tpu.memory_space<vmem>>, vector<128x128xbf16>
    tpu.vector_store %arg6[%c0_8, %c0_9], %13 {strides = array<i32>} : memref<128x128xbf16, #tpu.memory_space<vmem>>, vector<128x128xbf16>,
    return
  }
  func.func @transform_0(%arg0: i32, %arg1: i32) -> (i32, i32) {
    %c0_i32 = arith.constant 0 : i32
    %c0_i32_0 = arith.constant 0 : i32
    return %arg1, %c0_i32 : i32, i32
  }
  func.func @transform_1(%arg0: i32, %arg1: i32) -> (i32, i32) {
    %c0_i32 = arith.constant 0 : i32
    %c0_i32_0 = arith.constant 0 : i32
    return %c0_i32, %arg0 : i32, i32
  }
  func.func @transform_2(%arg0: i32, %arg1: i32) -> (i32, i32) {
    %c0_i32 = arith.constant 0 : i32
    %c0_i32_0 = arith.constant 0 : i32
    %c0_i32_1 = arith.constant 0 : i32
    return %c0_i32, %c0_i32_0 : i32, i32
  }
  func.func @transform_3(%arg0: i32, %arg1: i32) -> (i32, i32) {
    %c0_i32 = arith.constant 0 : i32
    %c0_i32_0 = arith.constant 0 : i32
    %c0_i32_1 = arith.constant 0 : i32
    return %c0_i32, %c0_i32_0 : i32, i32
  }
  func.func @transform_4(%arg0: i32, %arg1: i32) -> (i32, i32) {
    %c0_i32 = arith.constant 0 : i32
    return %arg1, %arg0 : i32, i32
  }
}

module attributes {stable_mosaic.version = 11 : i64} {
  func.func @_fused_matmul_kernel(%arg0: i32, %arg1: i32, %arg2: memref<128x1152xbf16, #tpu.memory_space<vmem>>, %arg3: memref<1152x128xbf16, #tpu.memory_space<vmem>>, %arg4: memref<128x128xbf16, #tpu.memory_space<vmem>>, %arg5: memref<128x128xbf16, #tpu.memory_space<vmem>>) attributes {dimension_semantics = [#tpu.dimension_semantics<parallel>, #tpu.dimension_semantics<parallel>], iteration_bounds = array<i64: 1, 1>, scalar_prefetch = 0 : i64, scratch_operands = 0 : i64, tpu.core_type = #tpu.core_type<tc>, window_params = [{transform_indices = @transform_0, window_bounds = array<i64: 128, 1152>}, {transform_indices = @transform_1, window_bounds = array<i64: 1152, 128>}, {transform_indices = @transform_2, window_bounds = array<i64: 128, 128>}, {transform_indices = @transform_3, window_bounds = array<i64: 128, 128>}]} {
    %c0 = arith.constant 0 : index
    %c0_0 = arith.constant 0 : index
    %0 = vector.load %arg2[%c0, %c0_0] : memref<128x1152xbf16, #tpu.memory_space<vmem>>, vector<128x1152xbf16>
    %c0_1 = arith.constant 0 : index
    %c0_2 = arith.constant 0 : index
    %1 = vector.load %arg3[%c0_1, %c0_2] : memref<1152x128xbf16, #tpu.memory_space<vmem>>, vector<1152x128xbf16>
    %cst = arith.constant dense<0.000000e+00> : vector<128x128xf32>
    %2 = tpu.matmul %0, %1, %cst {dimension_numbers = #tpu.dot_dimension_numbers<[1], [0], [0], [1], [0, 0, 1, 1], [], []>} : vector<128x1152xbf16>, vector<1152x128xbf16>, vector<128x128xf32> -> vector<128x128xf32>
    %c0_3 = arith.constant 0 : index
    %c0_4 = arith.constant 0 : index
    %3 = vector.load %arg4[%c0_3, %c0_4] : memref<128x128xbf16, #tpu.memory_space<vmem>>, vector<128x128xbf16>
    %4 = arith.extf %3 : vector<128x128xbf16> to vector<128x128xf32>
    %5 = arith.addf %2, %4 : vector<128x128xf32>
    %6 = arith.truncf %5 : vector<128x128xf32> to vector<128x128xbf16>
    %c0_5 = arith.constant 0 : index
    %c0_6 = arith.constant 0 : index
    %7 = vector.load %arg5[%c0_5, %c0_6] : memref<128x128xbf16, #tpu.memory_space<vmem>>, vector<128x128xbf16>
    tpu.vector_store %arg5[%c0_5, %c0_6], %6 {strides = array<i32>} : memref<128x128xbf16, #tpu.memory_space<vmem>>, vector<128x128xbf16>,
    return
  }
  func.func @transform_0(%arg0: i32, %arg1: i32) -> (i32, i32) {
    %c0_i32 = arith.constant 0 : i32
    %c0_i32_0 = arith.constant 0 : i32
    return %arg1, %c0_i32 : i32, i32
  }
  func.func @transform_1(%arg0: i32, %arg1: i32) -> (i32, i32) {
    %c0_i32 = arith.constant 0 : i32
    %c0_i32_0 = arith.constant 0 : i32
    return %c0_i32, %arg0 : i32, i32
  }
  func.func @transform_2(%arg0: i32, %arg1: i32) -> (i32, i32) {
    %c0_i32 = arith.constant 0 : i32
    return %arg1, %arg0 : i32, i32
  }
  func.func @transform_3(%arg0: i32, %arg1: i32) -> (i32, i32) {
    %c0_i32 = arith.constant 0 : i32
    return %arg1, %arg0 : i32, i32
  }
}

</mosaic_0001>

<llo_original>
// kernel: network_block_forward.6
$region0: #{network_block_forward.6}
  #allocation0 [shape = 'u32[]', space=smem, size = 0x4, offset = 0x4, fixed_abs, tag = 'smem constant byte address 0x4 - core index']
  #allocation1 [shape = 'u32[72,128]{1,0:T(1,128)}', space=vmem, size = 0x9000, scoped, tag = 'internal scratch']
  %s0 = inlined_call_operand.vmem [shape: bf16[128,128], index: 0, kind: input, shape index: {}]
  %s1 = inlined_call_operand.vmem [shape: bf16[128,128], index: 1, kind: input, shape index: {}]
  %s2 = inlined_call_operand.vmem [shape: f32[1,128], index: 2, kind: input, shape index: {}]
  %s3 = inlined_call_operand.vmem [shape: f32[1,128], index: 3, kind: input, shape index: {}]
  %s4 = inlined_call_operand.vmem [shape: bf16[128,128], index: 4, kind: output, shape index: {}]
  %s5 = sld [smem:[#allocation0]]
  $region26: #{network_block_forward.6} parent=0
    _
  %s7 = ssub.s32 1, %s5
  %s8 = scalar_select 0, %s7, %s5
  // Predicated region
  $region2: #{network_block_forward.6} parent=0 // pred_check
    _
  $region3: #{network_block_forward.6} parent=0 // pred_check_branch
    %10 = sbr.rel (0) target = $region5
  $region4: #{network_block_forward.6} parent=0 // pred_region
    _
  $region5: #{network_block_forward.6} parent=0 // pred_fallthru
    _
  // Predicated region
  $region6: #{network_block_forward.6} parent=0 // pred_check
    _
  $region7: #{network_block_forward.6} parent=0 // pred_check_branch
    %12 = sbr.rel (0) target = $region9
  $region8: #{network_block_forward.6} parent=0 // pred_region
    _
  $region9: #{network_block_forward.6} parent=0 // pred_fallthru
    _
  // Predicated region
  $region10: #{network_block_forward.6} parent=0 // pred_check
    _
  $region11: #{network_block_forward.6} parent=0 // pred_check_branch
    %14 = sbr.rel (0) target = $region13
  $region12: #{network_block_forward.6} parent=0 // pred_region
    _
  $region13: #{network_block_forward.6} parent=0 // pred_fallthru
    _
  // Predicated region
  $region14: #{network_block_forward.6} parent=0 // pred_check
    _
  $region15: #{network_block_forward.6} parent=0 // pred_check_branch
    %16 = sbr.rel (0) target = $region17
  $region16: #{network_block_forward.6} parent=0 // pred_region
    _
  $region17: #{network_block_forward.6} parent=0 // pred_fallthru
    _
  %v17 = vld [vmem:[%s0] sm:$0xf]
  %v18 = vld [vmem:[%s0 + $0x4] sm:$0xf]
  %v19 = vld [vmem:[%s0 + $0x8] sm:$0xf]
  %v20 = vld [vmem:[%s0 + $0xc] sm:$0xf]
  %v21 = vld [vmem:[%s0 + $0x10] sm:$0xf]
  %v22 = vld [vmem:[%s0 + $0x14] sm:$0xf]
  %v23 = vld [vmem:[%s0 + $0x18] sm:$0xf]
  %v24 = vld [vmem:[%s0 + $0x1c] sm:$0xf]
  %v25 = vld [vmem:[%s0 + $0x20] sm:$0xf]
  %v26 = vld [vmem:[%s0 + $0x24] sm:$0xf]
  %v27 = vld [vmem:[%s0 + $0x28] sm:$0xf]
  %v28 = vld [vmem:[%s0 + $0x2c] sm:$0xf]
  %v29 = vld [vmem:[%s0 + $0x30] sm:$0xf]
  %v30 = vld [vmem:[%s0 + $0x34] sm:$0xf]
  %v31 = vld [vmem:[%s0 + $0x38] sm:$0xf]
  %v32 = vld [vmem:[%s0 + $0x3c] sm:$0xf]
  %v33 = vunpack.c.l.bf16 %v17
  %v34 = vunpack.c.l.bf16 %v18
  %v35 = vunpack.c.l.bf16 %v19
  %v36 = vunpack.c.l.bf16 %v20
  %v37 = vunpack.c.l.bf16 %v21
  %v38 = vunpack.c.l.bf16 %v22
  %v39 = vunpack.c.l.bf16 %v23
  %v40 = vunpack.c.l.bf16 %v24
  %v41 = vunpack.c.l.bf16 %v25
  %v42 = vunpack.c.l.bf16 %v26
  %v43 = vunpack.c.l.bf16 %v27
  %v44 = vunpack.c.l.bf16 %v28
  %v45 = vunpack.c.l.bf16 %v29
  %v46 = vunpack.c.l.bf16 %v30
  %v47 = vunpack.c.l.bf16 %v31
  %v48 = vunpack.c.l.bf16 %v32
  %v49 = vld [vmem:[%s2] sm:$0x1]
  %v51 = vperm.slane %v49, 0
  %v53 = vmul.f32 %v33, %v51
  %v54 = vmul.f32 %v34, %v51
  %v55 = vmul.f32 %v35, %v51
  %v56 = vmul.f32 %v36, %v51
  %v57 = vmul.f32 %v37, %v51
  %v58 = vmul.f32 %v38, %v51
  %v59 = vmul.f32 %v39, %v51
  %v60 = vmul.f32 %v40, %v51
  %v61 = vmul.f32 %v41, %v51
  %v62 = vmul.f32 %v42, %v51
  %v63 = vmul.f32 %v43, %v51
  %v64 = vmul.f32 %v44, %v51
  %v65 = vmul.f32 %v45, %v51
  %v66 = vmul.f32 %v46, %v51
  %v67 = vmul.f32 %v47, %v51
  %v68 = vmul.f32 %v48, %v51
  %v69 = vld [vmem:[%s3] sm:$0x1]
  %v71 = vperm.slane %v69, 0
  %v73 = vadd.f32 %v53, %v71
  %v74 = vadd.f32 %v54, %v71
  %v75 = vadd.f32 %v55, %v71
  %v76 = vadd.f32 %v56, %v71
  %v77 = vadd.f32 %v57, %v71
  %v78 = vadd.f32 %v58, %v71
  %v79 = vadd.f32 %v59, %v71
  %v80 = vadd.f32 %v60, %v71
  %v81 = vadd.f32 %v61, %v71
  %v82 = vadd.f32 %v62, %v71
  %v83 = vadd.f32 %v63, %v71
  %v84 = vadd.f32 %v64, %v71
  %v85 = vadd.f32 %v65, %v71
  %v86 = vadd.f32 %v66, %v71
  %v87 = vadd.f32 %v67, %v71
  %v88 = vadd.f32 %v68, %v71
  %v89 = vmax.f32 %v73, 0.0
  %v90 = vmax.f32 %v74, 0.0
  %v91 = vmax.f32 %v75, 0.0
  %v92 = vmax.f32 %v76, 0.0
  %v93 = vmax.f32 %v77, 0.0
  %v94 = vmax.f32 %v78, 0.0
  %v95 = vmax.f32 %v79, 0.0
  %v96 = vmax.f32 %v80, 0.0
  %v97 = vmax.f32 %v81, 0.0
  %v98 = vmax.f32 %v82, 0.0
  %v99 = vmax.f32 %v83, 0.0
  %v100 = vmax.f32 %v84, 0.0
  %v101 = vmax.f32 %v85, 0.0
  %v102 = vmax.f32 %v86, 0.0
  %v103 = vmax.f32 %v87, 0.0
  %v104 = vmax.f32 %v88, 0.0
  %v105 = vpack.c.bf16 %v90, %v89
  %v106 = vpack.c.bf16 %v92, %v91
  %v107 = vpack.c.bf16 %v94, %v93
  %v108 = vpack.c.bf16 %v96, %v95
  %v109 = vpack.c.bf16 %v98, %v97
  %v110 = vpack.c.bf16 %v100, %v99
  %v111 = vpack.c.bf16 %v102, %v101
  %v112 = vpack.c.bf16 %v104, %v103
  %v113 = vld [vmem:[%s1] sm:$0xf]
  %v114 = vld [vmem:[%s1 + $0x4] sm:$0xf]
  %v115 = vld [vmem:[%s1 + $0x8] sm:$0xf]
  %v116 = vld [vmem:[%s1 + $0xc] sm:$0xf]
  %v117 = vld [vmem:[%s1 + $0x10] sm:$0xf]
  %v118 = vld [vmem:[%s1 + $0x14] sm:$0xf]
  %v119 = vld [vmem:[%s1 + $0x18] sm:$0xf]
  %v120 = vld [vmem:[%s1 + $0x1c] sm:$0xf]
  %v121 = vld [vmem:[%s1 + $0x20] sm:$0xf]
  %v122 = vld [vmem:[%s1 + $0x24] sm:$0xf]
  %v123 = vld [vmem:[%s1 + $0x28] sm:$0xf]
  %v124 = vld [vmem:[%s1 + $0x2c] sm:$0xf]
  %v125 = vld [vmem:[%s1 + $0x30] sm:$0xf]
  %v126 = vld [vmem:[%s1 + $0x34] sm:$0xf]
  %v127 = vld [vmem:[%s1 + $0x38] sm:$0xf]
  %v128 = vld [vmem:[%s1 + $0x3c] sm:$0xf]
  %v145 = vunpack.c.l.b16 %v113
  %v146 = vunpack.c.l.b16 %v114
  %v147 = vunpack.c.l.b16 %v115
  %v148 = vunpack.c.l.b16 %v116
  %v149 = vunpack.c.l.b16 %v117
  %v150 = vunpack.c.l.b16 %v118
  %v151 = vunpack.c.l.b16 %v119
  %v152 = vunpack.c.l.b16 %v120
  %v153 = vunpack.c.l.b16 %v121
  %v154 = vunpack.c.l.b16 %v122
  %v155 = vunpack.c.l.b16 %v123
  %v156 = vunpack.c.l.b16 %v124
  %v157 = vunpack.c.l.b16 %v125
  %v158 = vunpack.c.l.b16 %v126
  %v159 = vunpack.c.l.b16 %v127
  %v160 = vunpack.c.l.b16 %v128
  %v161 = vpack.c.b16 %v146, %v145
  %v162 = vpack.c.b16 %v148, %v147
  %v163 = vpack.c.b16 %v150, %v149
  %v164 = vpack.c.b16 %v152, %v151
  %v165 = vpack.c.b16 %v154, %v153
  %v166 = vpack.c.b16 %v156, %v155
  %v167 = vpack.c.b16 %v158, %v157
  %v168 = vpack.c.b16 %v160, %v159
  %177 = vmatpush.bf16.msra.mxu0 %v168
  %178 = vmatpush.bf16.msra.mxu0 %v167
  %179 = vmatpush.bf16.msra.mxu0 %v166
  %180 = vmatpush.bf16.msra.mxu0 %v165
  %181 = vmatpush.bf16.msra.mxu0 %v164
  %182 = vmatpush.bf16.msra.mxu0 %v163
  %183 = vmatpush.bf16.msra.mxu0 %v162
  %184 = vmatpush.bf16.msra.mxu0 %v161
  %185 = vmatmul.bf16.gmra.mxu0 %v105
  %v186 = vpop.f32.mrf.mxu0
  %v187 = vadd.f32 0.0, %v186
  %v188 = vpop.f32.mrf.mxu0
  %v189 = vadd.f32 0.0, %v188
  %190 = vmatmul.bf16.gmra.mxu0 %v106
  %v191 = vpop.f32.mrf.mxu0
  %v192 = vadd.f32 0.0, %v191
  %v193 = vpop.f32.mrf.mxu0
  %v194 = vadd.f32 0.0, %v193
  %195 = vmatmul.bf16.gmra.mxu0 %v107
  %v196 = vpop.f32.mrf.mxu0
  %v197 = vadd.f32 0.0, %v196
  %v198 = vpop.f32.mrf.mxu0
  %v199 = vadd.f32 0.0, %v198
  %200 = vmatmul.bf16.gmra.mxu0 %v108
  %v201 = vpop.f32.mrf.mxu0
  %v202 = vadd.f32 0.0, %v201
  %v203 = vpop.f32.mrf.mxu0
  %v204 = vadd.f32 0.0, %v203
  %205 = vmatmul.bf16.gmra.mxu0 %v109
  %v206 = vpop.f32.mrf.mxu0
  %v207 = vadd.f32 0.0, %v206
  %v208 = vpop.f32.mrf.mxu0
  %v209 = vadd.f32 0.0, %v208
  %210 = vmatmul.bf16.gmra.mxu0 %v110
  %v211 = vpop.f32.mrf.mxu0
  %v212 = vadd.f32 0.0, %v211
  %v213 = vpop.f32.mrf.mxu0
  %v214 = vadd.f32 0.0, %v213
  %215 = vmatmul.bf16.gmra.mxu0 %v111
  %v216 = vpop.f32.mrf.mxu0
  %v217 = vadd.f32 0.0, %v216
  %v218 = vpop.f32.mrf.mxu0
  %v219 = vadd.f32 0.0, %v218
  %220 = vmatmul.bf16.gmra.mxu0 %v112
  %v221 = vpop.f32.mrf.mxu0
  %v222 = vadd.f32 0.0, %v221
  %v223 = vpop.f32.mrf.mxu0
  %v224 = vadd.f32 0.0, %v223
  %225 = vdwg.mxu0
  %v226 = vpack.c.bf16 %v187, %v187
  %v227 = vpack.c.bf16 %v189, %v189
  %v228 = vpack.c.bf16 %v192, %v192
  %v229 = vpack.c.bf16 %v194, %v194
  %v230 = vpack.c.bf16 %v197, %v197
  %v231 = vpack.c.bf16 %v199, %v199
  %v232 = vpack.c.bf16 %v202, %v202
  %v233 = vpack.c.bf16 %v204, %v204
  %v234 = vpack.c.bf16 %v207, %v207
  %v235 = vpack.c.bf16 %v209, %v209
  %v236 = vpack.c.bf16 %v212, %v212
  %v237 = vpack.c.bf16 %v214, %v214
  %v238 = vpack.c.bf16 %v217, %v217
  %v239 = vpack.c.bf16 %v219, %v219
  %v240 = vpack.c.bf16 %v222, %v222
  %v241 = vpack.c.bf16 %v224, %v224
  %242 = vst [vmem:[%s4] sm:$0xf] %v226
  %243 = vst [vmem:[%s4 + $0x4] sm:$0xf] %v227
  %244 = vst [vmem:[%s4 + $0x8] sm:$0xf] %v228
  %245 = vst [vmem:[%s4 + $0xc] sm:$0xf] %v229
  %246 = vst [vmem:[%s4 + $0x10] sm:$0xf] %v230
  %247 = vst [vmem:[%s4 + $0x14] sm:$0xf] %v231
  %248 = vst [vmem:[%s4 + $0x18] sm:$0xf] %v232
  %249 = vst [vmem:[%s4 + $0x1c] sm:$0xf] %v233
  %250 = vst [vmem:[%s4 + $0x20] sm:$0xf] %v234
  %251 = vst [vmem:[%s4 + $0x24] sm:$0xf] %v235
  %252 = vst [vmem:[%s4 + $0x28] sm:$0xf] %v236
  %253 = vst [vmem:[%s4 + $0x2c] sm:$0xf] %v237
  %254 = vst [vmem:[%s4 + $0x30] sm:$0xf] %v238
  %255 = vst [vmem:[%s4 + $0x34] sm:$0xf] %v239
  %256 = vst [vmem:[%s4 + $0x38] sm:$0xf] %v240
  %257 = vst [vmem:[%s4 + $0x3c] sm:$0xf] %v241
  // Predicated region
  $region18: #{network_block_forward.6} parent=0 // pred_check
    _
  $region19: #{network_block_forward.6} parent=0 // pred_check_branch
    %259 = sbr.rel (0) target = $region21
  $region20: #{network_block_forward.6} parent=0 // pred_region
    _
  $region21: #{network_block_forward.6} parent=0 // pred_fallthru
    _
  // Predicated region
  $region22: #{network_block_forward.6} parent=0 // pred_check
    _
  $region23: #{network_block_forward.6} parent=0 // pred_check_branch
    %261 = sbr.rel (0) target = $region25
  $region24: #{network_block_forward.6} parent=0 // pred_region
    _
  $region25: #{network_block_forward.6} parent=0 // pred_fallthru
    _

// kernel: network_block_forward.5
$region0: #{network_block_forward.5}
  #allocation0 [shape = 'u32[]', space=smem, size = 0x4, offset = 0x4, fixed_abs, tag = 'smem constant byte address 0x4 - core index']
  #allocation1 [shape = 'u32[72,128]{1,0:T(1,128)}', space=vmem, size = 0x9000, scoped, tag = 'internal scratch']
  %s0 = inlined_call_operand.vmem [shape: bf16[128,1152], index: 0, kind: input, shape index: {}]
  %s1 = inlined_call_operand.vmem [shape: bf16[1152,128], index: 1, kind: input, shape index: {}]
  %s2 = inlined_call_operand.vmem [shape: f32[1,1152], index: 2, kind: input, shape index: {}]
  %s3 = inlined_call_operand.vmem [shape: f32[1,1152], index: 3, kind: input, shape index: {}]
  %s4 = inlined_call_operand.vmem [shape: f32[1,128], index: 4, kind: input, shape index: {}]
  %s5 = inlined_call_operand.vmem [shape: f32[1,128], index: 5, kind: input, shape index: {}]
  %s6 = inlined_call_operand.vmem [shape: bf16[128,128], index: 6, kind: output, shape index: {}]
  %s7 = sld [smem:[#allocation0]]
  $region34: #{network_block_forward.5} parent=0
    _
  %s9 = ssub.s32 1, %s7
  %s10 = scalar_select 0, %s9, %s7
  // Predicated region
  $region2: #{network_block_forward.5} parent=0 // pred_check
    _
  $region3: #{network_block_forward.5} parent=0 // pred_check_branch
    %12 = sbr.rel (0) target = $region5
  $region4: #{network_block_forward.5} parent=0 // pred_region
    _
  $region5: #{network_block_forward.5} parent=0 // pred_fallthru
    _
  // Predicated region
  $region6: #{network_block_forward.5} parent=0 // pred_check
    _
  $region7: #{network_block_forward.5} parent=0 // pred_check_branch
    %14 = sbr.rel (0) target = $region9
  $region8: #{network_block_forward.5} parent=0 // pred_region
    _
  $region9: #{network_block_forward.5} parent=0 // pred_fallthru
    _
  // Predicated region
  $region10: #{network_block_forward.5} parent=0 // pred_check
    _
  $region11: #{network_block_forward.5} parent=0 // pred_check_branch
    %16 = sbr.rel (0) target = $region13
  $region12: #{network_block_forward.5} parent=0 // pred_region
    _
  $region13: #{network_block_forward.5} parent=0 // pred_fallthru
    _
  // Predicated region
  $region14: #{network_block_forward.5} parent=0 // pred_check
    _
  $region15: #{network_block_forward.5} parent=0 // pred_check_branch
    %18 = sbr.rel (0) target = $region17
  $region16: #{network_block_forward.5} parent=0 // pred_region
    _
  $region17: #{network_block_forward.5} parent=0 // pred_fallthru
    _
  // Predicated region
  $region18: #{network_block_forward.5} parent=0 // pred_check
    _
  $region19: #{network_block_forward.5} parent=0 // pred_check_branch
    %20 = sbr.rel (0) target = $region21
  $region20: #{network_block_forward.5} parent=0 // pred_region
    _
  $region21: #{network_block_forward.5} parent=0 // pred_fallthru
    _
  // Predicated region
  $region22: #{network_block_forward.5} parent=0 // pred_check
    _
  $region23: #{network_block_forward.5} parent=0 // pred_check_branch
    %22 = sbr.rel (0) target = $region25
  $region24: #{network_block_forward.5} parent=0 // pred_region
    _
  $region25: #{network_block_forward.5} parent=0 // pred_fallthru
    _
  %v23 = vld [vmem:[%s0] sm:$0xff]
  %v24 = vld [vmem:[%s0 + $0x8] sm:$0xff]
  %v25 = vld [vmem:[%s0 + $0x10] sm:$0xff]
  %v26 = vld [vmem:[%s0 + $0x18] sm:$0xff]
  %v27 = vld [vmem:[%s0 + $0x20] sm:$0xf]
  %v28 = vld [vmem:[%s0 + $0x24] sm:$0xff]
  %v29 = vld [vmem:[%s0 + $0x2c] sm:$0xff]
  %v30 = vld [vmem:[%s0 + $0x34] sm:$0xff]
  %v31 = vld [vmem:[%s0 + $0x3c] sm:$0xff]
  %v32 = vld [vmem:[%s0 + $0x44] sm:$0xf]
  %v33 = vld [vmem:[%s0 + $0x48] sm:$0xff]
  %v34 = vld [vmem:[%s0 + $0x50] sm:$0xff]
  %v35 = vld [vmem:[%s0 + $0x58] sm:$0xff]
  %v36 = vld [vmem:[%s0 + $0x60] sm:$0xff]
  %v37 = vld [vmem:[%s0 + $0x68] sm:$0xf]
  %v38 = vld [vmem:[%s0 + $0x6c] sm:$0xff]
  %v39 = vld [vmem:[%s0 + $0x74] sm:$0xff]
  %v40 = vld [vmem:[%s0 + $0x7c] sm:$0xff]
  %v41 = vld [vmem:[%s0 + $0x84] sm:$0xff]
  %v42 = vld [vmem:[%s0 + $0x8c] sm:$0xf]
  %v43 = vld [vmem:[%s0 + $0x90] sm:$0xff]
  %v44 = vld [vmem:[%s0 + $0x98] sm:$0xff]
  %v45 = vld [vmem:[%s0 + $0xa0] sm:$0xff]
  %v46 = vld [vmem:[%s0 + $0xa8] sm:$0xff]
  %v47 = vld [vmem:[%s0 + $0xb0] sm:$0xf]
  %v48 = vld [vmem:[%s0 + $0xb4] sm:$0xff]
  %v49 = vld [vmem:[%s0 + $0xbc] sm:$0xff]
  %v50 = vld [vmem:[%s0 + $0xc4] sm:$0xff]
  %v51 = vld [vmem:[%s0 + $0xcc] sm:$0xff]
  %v52 = vld [vmem:[%s0 + $0xd4] sm:$0xf]
  %v53 = vld [vmem:[%s0 + $0xd8] sm:$0xff]
  %v54 = vld [vmem:[%s0 + $0xe0] sm:$0xff]
  %v55 = vld [vmem:[%s0 + $0xe8] sm:$0xff]
  %v56 = vld [vmem:[%s0 + $0xf0] sm:$0xff]
  %v57 = vld [vmem:[%s0 + $0xf8] sm:$0xf]
  %v58 = vld [vmem:[%s0 + $0xfc] sm:$0xff]
  %v59 = vld [vmem:[%s0 + $0x104] sm:$0xff]
  %v60 = vld [vmem:[%s0 + $0x10c] sm:$0xff]
  %v61 = vld [vmem:[%s0 + $0x114] sm:$0xff]
  %v62 = vld [vmem:[%s0 + $0x11c] sm:$0xf]
  %v63 = vld [vmem:[%s0 + $0x120] sm:$0xff]
  %v64 = vld [vmem:[%s0 + $0x128] sm:$0xff]
  %v65 = vld [vmem:[%s0 + $0x130] sm:$0xff]
  %v66 = vld [vmem:[%s0 + $0x138] sm:$0xff]
  %v67 = vld [vmem:[%s0 + $0x140] sm:$0xf]
  %v68 = vld [vmem:[%s0 + $0x144] sm:$0xff]
  %v69 = vld [vmem:[%s0 + $0x14c] sm:$0xff]
  %v70 = vld [vmem:[%s0 + $0x154] sm:$0xff]
  %v71 = vld [vmem:[%s0 + $0x15c] sm:$0xff]
  %v72 = vld [vmem:[%s0 + $0x164] sm:$0xf]
  %v73 = vld [vmem:[%s0 + $0x168] sm:$0xff]
  %v74 = vld [vmem:[%s0 + $0x170] sm:$0xff]
  %v75 = vld [vmem:[%s0 + $0x178] sm:$0xff]
  %v76 = vld [vmem:[%s0 + $0x180] sm:$0xff]
  %v77 = vld [vmem:[%s0 + $0x188] sm:$0xf]
  %v78 = vld [vmem:[%s0 + $0x18c] sm:$0xff]
  %v79 = vld [vmem:[%s0 + $0x194] sm:$0xff]
  %v80 = vld [vmem:[%s0 + $0x19c] sm:$0xff]
  %v81 = vld [vmem:[%s0 + $0x1a4] sm:$0xff]
  %v82 = vld [vmem:[%s0 + $0x1ac] sm:$0xf]
  %v83 = vld [vmem:[%s0 + $0x1b0] sm:$0xff]
  %v84 = vld [vmem:[%s0 + $0x1b8] sm:$0xff]
  %v85 = vld [vmem:[%s0 + $0x1c0] sm:$0xff]
  %v86 = vld [vmem:[%s0 + $0x1c8] sm:$0xff]
  %v87 = vld [vmem:[%s0 + $0x1d0] sm:$0xf]
  %v88 = vld [vmem:[%s0 + $0x1d4] sm:$0xff]
  %v89 = vld [vmem:[%s0 + $0x1dc] sm:$0xff]
  %v90 = vld [vmem:[%s0 + $0x1e4] sm:$0xff]
  %v91 = vld [vmem:[%s0 + $0x1ec] sm:$0xff]
  %v92 = vld [vmem:[%s0 + $0x1f4] sm:$0xf]
  %v93 = vld [vmem:[%s0 + $0x1f8] sm:$0xff]
  %v94 = vld [vmem:[%s0 + $0x200] sm:$0xff]
  %v95 = vld [vmem:[%s0 + $0x208] sm:$0xff]
  %v96 = vld [vmem:[%s0 + $0x210] sm:$0xff]
  %v97 = vld [vmem:[%s0 + $0x218] sm:$0xf]
  %v98 = vld [vmem:[%s0 + $0x21c] sm:$0xff]
  %v99 = vld [vmem:[%s0 + $0x224] sm:$0xff]
  %v100 = vld [vmem:[%s0 + $0x22c] sm:$0xff]
  %v101 = vld [vmem:[%s0 + $0x234] sm:$0xff]
  %v102 = vld [vmem:[%s0 + $0x23c] sm:$0xf]
  %v103 = vunpack.c.l.bf16 %v23
  %v104 = vunpack.c.h.bf16 %v23
  %v105 = vunpack.c.l.bf16 %v24
  %v106 = vunpack.c.h.bf16 %v24
  %v107 = vunpack.c.l.bf16 %v25
  %v108 = vunpack.c.h.bf16 %v25
  %v109 = vunpack.c.l.bf16 %v26
  %v110 = vunpack.c.h.bf16 %v26
  %v111 = vunpack.c.l.bf16 %v27
  %v112 = vunpack.c.l.bf16 %v28
  %v113 = vunpack.c.h.bf16 %v28
  %v114 = vunpack.c.l.bf16 %v29
  %v115 = vunpack.c.h.bf16 %v29
  %v116 = vunpack.c.l.bf16 %v30
  %v117 = vunpack.c.h.bf16 %v30
  %v118 = vunpack.c.l.bf16 %v31
  %v119 = vunpack.c.h.bf16 %v31
  %v120 = vunpack.c.l.bf16 %v32
  %v121 = vunpack.c.l.bf16 %v33
  %v122 = vunpack.c.h.bf16 %v33
  %v123 = vunpack.c.l.bf16 %v34
  %v124 = vunpack.c.h.bf16 %v34
  %v125 = vunpack.c.l.bf16 %v35
  %v126 = vunpack.c.h.bf16 %v35
  %v127 = vunpack.c.l.bf16 %v36
  %v128 = vunpack.c.h.bf16 %v36
  %v129 = vunpack.c.l.bf16 %v37
  %v130 = vunpack.c.l.bf16 %v38
  %v131 = vunpack.c.h.bf16 %v38
  %v132 = vunpack.c.l.bf16 %v39
  %v133 = vunpack.c.h.bf16 %v39
  %v134 = vunpack.c.l.bf16 %v40
  %v135 = vunpack.c.h.bf16 %v40
  %v136 = vunpack.c.l.bf16 %v41
  %v137 = vunpack.c.h.bf16 %v41
  %v138 = vunpack.c.l.bf16 %v42
  %v139 = vunpack.c.l.bf16 %v43
  %v140 = vunpack.c.h.bf16 %v43
  %v141 = vunpack.c.l.bf16 %v44
  %v142 = vunpack.c.h.bf16 %v44
  %v143 = vunpack.c.l.bf16 %v45
  %v144 = vunpack.c.h.bf16 %v45
  %v145 = vunpack.c.l.bf16 %v46
  %v146 = vunpack.c.h.bf16 %v46
  %v147 = vunpack.c.l.bf16 %v47
  %v148 = vunpack.c.l.bf16 %v48
  %v149 = vunpack.c.h.bf16 %v48
  %v150 = vunpack.c.l.bf16 %v49
  %v151 = vunpack.c.h.bf16 %v49
  %v152 = vunpack.c.l.bf16 %v50
  %v153 = vunpack.c.h.bf16 %v50
  %v154 = vunpack.c.l.bf16 %v51
  %v155 = vunpack.c.h.bf16 %v51
  %v156 = vunpack.c.l.bf16 %v52
  %v157 = vunpack.c.l.bf16 %v53
  %v158 = vunpack.c.h.bf16 %v53
  %v159 = vunpack.c.l.bf16 %v54
  %v160 = vunpack.c.h.bf16 %v54
  %v161 = vunpack.c.l.bf16 %v55
  %v162 = vunpack.c.h.bf16 %v55
  %v163 = vunpack.c.l.bf16 %v56
  %v164 = vunpack.c.h.bf16 %v56
  %v165 = vunpack.c.l.bf16 %v57
  %v166 = vunpack.c.l.bf16 %v58
  %v167 = vunpack.c.h.bf16 %v58
  %v168 = vunpack.c.l.bf16 %v59
  %v169 = vunpack.c.h.bf16 %v59
  %v170 = vunpack.c.l.bf16 %v60
  %v171 = vunpack.c.h.bf16 %v60
  %v172 = vunpack.c.l.bf16 %v61
  %v173 = vunpack.c.h.bf16 %v61
  %v174 = vunpack.c.l.bf16 %v62
  %v175 = vunpack.c.l.bf16 %v63
  %v176 = vunpack.c.h.bf16 %v63
  %v177 = vunpack.c.l.bf16 %v64
  %v178 = vunpack.c.h.bf16 %v64
  %v179 = vunpack.c.l.bf16 %v65
  %v180 = vunpack.c.h.bf16 %v65
  %v181 = vunpack.c.l.bf16 %v66
  %v182 = vunpack.c.h.bf16 %v66
  %v183 = vunpack.c.l.bf16 %v67
  %v184 = vunpack.c.l.bf16 %v68
  %v185 = vunpack.c.h.bf16 %v68
  %v186 = vunpack.c.l.bf16 %v69
  %v187 = vunpack.c.h.bf16 %v69
  %v188 = vunpack.c.l.bf16 %v70
  %v189 = vunpack.c.h.bf16 %v70
  %v190 = vunpack.c.l.bf16 %v71
  %v191 = vunpack.c.h.bf16 %v71
  %v192 = vunpack.c.l.bf16 %v72
  %v193 = vunpack.c.l.bf16 %v73
  %v194 = vunpack.c.h.bf16 %v73
  %v195 = vunpack.c.l.bf16 %v74
  %v196 = vunpack.c.h.bf16 %v74
  %v197 = vunpack.c.l.bf16 %v75
  %v198 = vunpack.c.h.bf16 %v75
  %v199 = vunpack.c.l.bf16 %v76
  %v200 = vunpack.c.h.bf16 %v76
  %v201 = vunpack.c.l.bf16 %v77
  %v202 = vunpack.c.l.bf16 %v78
  %v203 = vunpack.c.h.bf16 %v78
  %v204 = vunpack.c.l.bf16 %v79
  %v205 = vunpack.c.h.bf16 %v79
  %v206 = vunpack.c.l.bf16 %v80
  %v207 = vunpack.c.h.bf16 %v80
  %v208 = vunpack.c.l.bf16 %v81
  %v209 = vunpack.c.h.bf16 %v81
  %v210 = vunpack.c.l.bf16 %v82
  %v211 = vunpack.c.l.bf16 %v83
  %v212 = vunpack.c.h.bf16 %v83
  %v213 = vunpack.c.l.bf16 %v84
  %v214 = vunpack.c.h.bf16 %v84
  %v215 = vunpack.c.l.bf16 %v85
  %v216 = vunpack.c.h.bf16 %v85
  %v217 = vunpack.c.l.bf16 %v86
  %v218 = vunpack.c.h.bf16 %v86
  %v219 = vunpack.c.l.bf16 %v87
  %v220 = vunpack.c.l.bf16 %v88
  %v221 = vunpack.c.h.bf16 %v88
  %v222 = vunpack.c.l.bf16 %v89
  %v223 = vunpack.c.h.bf16 %v89
  %v224 = vunpack.c.l.bf16 %v90
  %v225 = vunpack.c.h.bf16 %v90
  %v226 = vunpack.c.l.bf16 %v91
  %v227 = vunpack.c.h.bf16 %v91
  %v228 = vunpack.c.l.bf16 %v92
  %v229 = vunpack.c.l.bf16 %v93
  %v230 = vunpack.c.h.bf16 %v93
  %v231 = vunpack.c.l.bf16 %v94
  %v232 = vunpack.c.h.bf16 %v94
  %v233 = vunpack.c.l.bf16 %v95
  %v234 = vunpack.c.h.bf16 %v95
  %v235 = vunpack.c.l.bf16 %v96
  %v236 = vunpack.c.h.bf16 %v96
  %v237 = vunpack.c.l.bf16 %v97
  %v238 = vunpack.c.l.bf16 %v98
  %v239 = vunpack.c.h.bf16 %v98
  %v240 = vunpack.c.l.bf16 %v99
  %v241 = vunpack.c.h.bf16 %v99
  %v242 = vunpack.c.l.bf16 %v100
  %v243 = vunpack.c.h.bf16 %v100
  %v244 = vunpack.c.l.bf16 %v101
  %v245 = vunpack.c.h.bf16 %v101
  %v246 = vunpack.c.l.bf16 %v102
  %v247 = vld [vmem:[%s2] sm:$0xff]
  %v248 = vld [vmem:[%s2 + $0x8] sm:$0x1]
  %v251 = vperm.slane %v247, 0
  %v252 = vperm.slane %v247, 1
  %v253 = vperm.slane %v247, 2
  %v254 = vperm.slane %v247, 3
  %v255 = vperm.slane %v247, 4
  %v256 = vperm.slane %v247, 5
  %v257 = vperm.slane %v247, 6
  %v258 = vperm.slane %v247, 7
  %v259 = vperm.slane %v248, 0
  %v269 = vmul.f32 %v103, %v251
  %v270 = vmul.f32 %v104, %v252
  %v271 = vmul.f32 %v105, %v253
  %v272 = vmul.f32 %v106, %v254
  %v273 = vmul.f32 %v107, %v255
  %v274 = vmul.f32 %v108, %v256
  %v275 = vmul.f32 %v109, %v257
  %v276 = vmul.f32 %v110, %v258
  %v277 = vmul.f32 %v111, %v259
  %v278 = vmul.f32 %v112, %v251
  %v279 = vmul.f32 %v113, %v252
  %v280 = vmul.f32 %v114, %v253
  %v281 = vmul.f32 %v115, %v254
  %v282 = vmul.f32 %v116, %v255
  %v283 = vmul.f32 %v117, %v256
  %v284 = vmul.f32 %v118, %v257
  %v285 = vmul.f32 %v119, %v258
  %v286 = vmul.f32 %v120, %v259
  %v287 = vmul.f32 %v121, %v251
  %v288 = vmul.f32 %v122, %v252
  %v289 = vmul.f32 %v123, %v253
  %v290 = vmul.f32 %v124, %v254
  %v291 = vmul.f32 %v125, %v255
  %v292 = vmul.f32 %v126, %v256
  %v293 = vmul.f32 %v127, %v257
  %v294 = vmul.f32 %v128, %v258
  %v295 = vmul.f32 %v129, %v259
  %v296 = vmul.f32 %v130, %v251
  %v297 = vmul.f32 %v131, %v252
  %v298 = vmul.f32 %v132, %v253
  %v299 = vmul.f32 %v133, %v254
  %v300 = vmul.f32 %v134, %v255
  %v301 = vmul.f32 %v135, %v256
  %v302 = vmul.f32 %v136, %v257
  %v303 = vmul.f32 %v137, %v258
  %v304 = vmul.f32 %v138, %v259
  %v305 = vmul.f32 %v139, %v251
  %v306 = vmul.f32 %v140, %v252
  %v307 = vmul.f32 %v141, %v253
  %v308 = vmul.f32 %v142, %v254
  %v309 = vmul.f32 %v143, %v255
  %v310 = vmul.f32 %v144, %v256
  %v311 = vmul.f32 %v145, %v257
  %v312 = vmul.f32 %v146, %v258
  %v313 = vmul.f32 %v147, %v259
  %v314 = vmul.f32 %v148, %v251
  %v315 = vmul.f32 %v149, %v252
  %v316 = vmul.f32 %v150, %v253
  %v317 = vmul.f32 %v151, %v254
  %v318 = vmul.f32 %v152, %v255
  %v319 = vmul.f32 %v153, %v256
  %v320 = vmul.f32 %v154, %v257
  %v321 = vmul.f32 %v155, %v258
  %v322 = vmul.f32 %v156, %v259
  %v323 = vmul.f32 %v157, %v251
  %v324 = vmul.f32 %v158, %v252
  %v325 = vmul.f32 %v159, %v253
  %v326 = vmul.f32 %v160, %v254
  %v327 = vmul.f32 %v161, %v255
  %v328 = vmul.f32 %v162, %v256
  %v329 = vmul.f32 %v163, %v257
  %v330 = vmul.f32 %v164, %v258
  %v331 = vmul.f32 %v165, %v259
  %v332 = vmul.f32 %v166, %v251
  %v333 = vmul.f32 %v167, %v252
  %v334 = vmul.f32 %v168, %v253
  %v335 = vmul.f32 %v169, %v254
  %v336 = vmul.f32 %v170, %v255
  %v337 = vmul.f32 %v171, %v256
  %v338 = vmul.f32 %v172, %v257
  %v339 = vmul.f32 %v173, %v258
  %v340 = vmul.f32 %v174, %v259
  %v341 = vmul.f32 %v175, %v251
  %v342 = vmul.f32 %v176, %v252
  %v343 = vmul.f32 %v177, %v253
  %v344 = vmul.f32 %v178, %v254
  %v345 = vmul.f32 %v179, %v255
  %v346 = vmul.f32 %v180, %v256
  %v347 = vmul.f32 %v181, %v257
  %v348 = vmul.f32 %v182, %v258
  %v349 = vmul.f32 %v183, %v259
  %v350 = vmul.f32 %v184, %v251
  %v351 = vmul.f32 %v185, %v252
  %v352 = vmul.f32 %v186, %v253
  %v353 = vmul.f32 %v187, %v254
  %v354 = vmul.f32 %v188, %v255
  %v355 = vmul.f32 %v189, %v256
  %v356 = vmul.f32 %v190, %v257
  %v357 = vmul.f32 %v191, %v258
  %v358 = vmul.f32 %v192, %v259
  %v359 = vmul.f32 %v193, %v251
  %v360 = vmul.f32 %v194, %v252
  %v361 = vmul.f32 %v195, %v253
  %v362 = vmul.f32 %v196, %v254
  %v363 = vmul.f32 %v197, %v255
  %v364 = vmul.f32 %v198, %v256
  %v365 = vmul.f32 %v199, %v257
  %v366 = vmul.f32 %v200, %v258
  %v367 = vmul.f32 %v201, %v259
  %v368 = vmul.f32 %v202, %v251
  %v369 = vmul.f32 %v203, %v252
  %v370 = vmul.f32 %v204, %v253
  %v371 = vmul.f32 %v205, %v254
  %v372 = vmul.f32 %v206, %v255
  %v373 = vmul.f32 %v207, %v256
  %v374 = vmul.f32 %v208, %v257
  %v375 = vmul.f32 %v209, %v258
  %v376 = vmul.f32 %v210, %v259
  %v377 = vmul.f32 %v211, %v251
  %v378 = vmul.f32 %v212, %v252
  %v379 = vmul.f32 %v213, %v253
  %v380 = vmul.f32 %v214, %v254
  %v381 = vmul.f32 %v215, %v255
  %v382 = vmul.f32 %v216, %v256
  %v383 = vmul.f32 %v217, %v257
  %v384 = vmul.f32 %v218, %v258
  %v385 = vmul.f32 %v219, %v259
  %v386 = vmul.f32 %v220, %v251
  %v387 = vmul.f32 %v221, %v252
  %v388 = vmul.f32 %v222, %v253
  %v389 = vmul.f32 %v223, %v254
  %v390 = vmul.f32 %v224, %v255
  %v391 = vmul.f32 %v225, %v256
  %v392 = vmul.f32 %v226, %v257
  %v393 = vmul.f32 %v227, %v258
  %v394 = vmul.f32 %v228, %v259
  %v395 = vmul.f32 %v229, %v251
  %v396 = vmul.f32 %v230, %v252
  %v397 = vmul.f32 %v231, %v253
  %v398 = vmul.f32 %v232, %v254
  %v399 = vmul.f32 %v233, %v255
  %v400 = vmul.f32 %v234, %v256
  %v401 = vmul.f32 %v235, %v257
  %v402 = vmul.f32 %v236, %v258
  %v403 = vmul.f32 %v237, %v259
  %v404 = vmul.f32 %v238, %v251
  %v405 = vmul.f32 %v239, %v252
  %v406 = vmul.f32 %v240, %v253
  %v407 = vmul.f32 %v241, %v254
  %v408 = vmul.f32 %v242, %v255
  %v409 = vmul.f32 %v243, %v256
  %v410 = vmul.f32 %v244, %v257
  %v411 = vmul.f32 %v245, %v258
  %v412 = vmul.f32 %v246, %v259
  %v413 = vld [vmem:[%s3] sm:$0xff]
  %v414 = vld [vmem:[%s3 + $0x8] sm:$0x1]
  %v417 = vperm.slane %v413, 0
  %v418 = vperm.slane %v413, 1
  %v419 = vperm.slane %v413, 2
  %v420 = vperm.slane %v413, 3
  %v421 = vperm.slane %v413, 4
  %v422 = vperm.slane %v413, 5
  %v423 = vperm.slane %v413, 6
  %v424 = vperm.slane %v413, 7
  %v425 = vperm.slane %v414, 0
  %v435 = vadd.f32 %v269, %v417
  %v436 = vadd.f32 %v270, %v418
  %v437 = vadd.f32 %v271, %v419
  %v438 = vadd.f32 %v272, %v420
  %v439 = vadd.f32 %v273, %v421
  %v440 = vadd.f32 %v274, %v422
  %v441 = vadd.f32 %v275, %v423
  %v442 = vadd.f32 %v276, %v424
  %v443 = vadd.f32 %v277, %v425
  %v444 = vadd.f32 %v278, %v417
  %v445 = vadd.f32 %v279, %v418
  %v446 = vadd.f32 %v280, %v419
  %v447 = vadd.f32 %v281, %v420
  %v448 = vadd.f32 %v282, %v421
  %v449 = vadd.f32 %v283, %v422
  %v450 = vadd.f32 %v284, %v423
  %v451 = vadd.f32 %v285, %v424
  %v452 = vadd.f32 %v286, %v425
  %v453 = vadd.f32 %v287, %v417
  %v454 = vadd.f32 %v288, %v418
  %v455 = vadd.f32 %v289, %v419
  %v456 = vadd.f32 %v290, %v420
  %v457 = vadd.f32 %v291, %v421
  %v458 = vadd.f32 %v292, %v422
  %v459 = vadd.f32 %v293, %v423
  %v460 = vadd.f32 %v294, %v424
  %v461 = vadd.f32 %v295, %v425
  %v462 = vadd.f32 %v296, %v417
  %v463 = vadd.f32 %v297, %v418
  %v464 = vadd.f32 %v298, %v419
  %v465 = vadd.f32 %v299, %v420
  %v466 = vadd.f32 %v300, %v421
  %v467 = vadd.f32 %v301, %v422
  %v468 = vadd.f32 %v302, %v423
  %v469 = vadd.f32 %v303, %v424
  %v470 = vadd.f32 %v304, %v425
  %v471 = vadd.f32 %v305, %v417
  %v472 = vadd.f32 %v306, %v418
  %v473 = vadd.f32 %v307, %v419
  %v474 = vadd.f32 %v308, %v420
  %v475 = vadd.f32 %v309, %v421
  %v476 = vadd.f32 %v310, %v422
  %v477 = vadd.f32 %v311, %v423
  %v478 = vadd.f32 %v312, %v424
  %v479 = vadd.f32 %v313, %v425
  %v480 = vadd.f32 %v314, %v417
  %v481 = vadd.f32 %v315, %v418
  %v482 = vadd.f32 %v316, %v419
  %v483 = vadd.f32 %v317, %v420
  %v484 = vadd.f32 %v318, %v421
  %v485 = vadd.f32 %v319, %v422
  %v486 = vadd.f32 %v320, %v423
  %v487 = vadd.f32 %v321, %v424
  %v488 = vadd.f32 %v322, %v425
  %v489 = vadd.f32 %v323, %v417
  %v490 = vadd.f32 %v324, %v418
  %v491 = vadd.f32 %v325, %v419
  %v492 = vadd.f32 %v326, %v420
  %v493 = vadd.f32 %v327, %v421
  %v494 = vadd.f32 %v328, %v422
  %v495 = vadd.f32 %v329, %v423
  %v496 = vadd.f32 %v330, %v424
  %v497 = vadd.f32 %v331, %v425
  %v498 = vadd.f32 %v332, %v417
  %v499 = vadd.f32 %v333, %v418
  %v500 = vadd.f32 %v334, %v419
  %v501 = vadd.f32 %v335, %v420
  %v502 = vadd.f32 %v336, %v421
  %v503 = vadd.f32 %v337, %v422
  %v504 = vadd.f32 %v338, %v423
  %v505 = vadd.f32 %v339, %v424
  %v506 = vadd.f32 %v340, %v425
  %v507 = vadd.f32 %v341, %v417
  %v508 = vadd.f32 %v342, %v418
  %v509 = vadd.f32 %v343, %v419
  %v510 = vadd.f32 %v344, %v420
  %v511 = vadd.f32 %v345, %v421
  %v512 = vadd.f32 %v346, %v422
  %v513 = vadd.f32 %v347, %v423
  %v514 = vadd.f32 %v348, %v424
  %v515 = vadd.f32 %v349, %v425
  %v516 = vadd.f32 %v350, %v417
  %v517 = vadd.f32 %v351, %v418
  %v518 = vadd.f32 %v352, %v419
  %v519 = vadd.f32 %v353, %v420
  %v520 = vadd.f32 %v354, %v421
  %v521 = vadd.f32 %v355, %v422
  %v522 = vadd.f32 %v356, %v423
  %v523 = vadd.f32 %v357, %v424
  %v524 = vadd.f32 %v358, %v425
  %v525 = vadd.f32 %v359, %v417
  %v526 = vadd.f32 %v360, %v418
  %v527 = vadd.f32 %v361, %v419
  %v528 = vadd.f32 %v362, %v420
  %v529 = vadd.f32 %v363, %v421
  %v530 = vadd.f32 %v364, %v422
  %v531 = vadd.f32 %v365, %v423
  %v532 = vadd.f32 %v366, %v424
  %v533 = vadd.f32 %v367, %v425
  %v534 = vadd.f32 %v368, %v417
  %v535 = vadd.f32 %v369, %v418
  %v536 = vadd.f32 %v370, %v419
  %v537 = vadd.f32 %v371, %v420
  %v538 = vadd.f32 %v372, %v421
  %v539 = vadd.f32 %v373, %v422
  %v540 = vadd.f32 %v374, %v423
  %v541 = vadd.f32 %v375, %v424
  %v542 = vadd.f32 %v376, %v425
  %v543 = vadd.f32 %v377, %v417
  %v544 = vadd.f32 %v378, %v418
  %v545 = vadd.f32 %v379, %v419
  %v546 = vadd.f32 %v380, %v420
  %v547 = vadd.f32 %v381, %v421
  %v548 = vadd.f32 %v382, %v422
  %v549 = vadd.f32 %v383, %v423
  %v550 = vadd.f32 %v384, %v424
  %v551 = vadd.f32 %v385, %v425
  %v552 = vadd.f32 %v386, %v417
  %v553 = vadd.f32 %v387, %v418
  %v554 = vadd.f32 %v388, %v419
  %v555 = vadd.f32 %v389, %v420
  %v556 = vadd.f32 %v390, %v421
  %v557 = vadd.f32 %v391, %v422
  %v558 = vadd.f32 %v392, %v423
  %v559 = vadd.f32 %v393, %v424
  %v560 = vadd.f32 %v394, %v425
  %v561 = vadd.f32 %v395, %v417
  %v562 = vadd.f32 %v396, %v418
  %v563 = vadd.f32 %v397, %v419
  %v564 = vadd.f32 %v398, %v420
  %v565 = vadd.f32 %v399, %v421
  %v566 = vadd.f32 %v400, %v422
  %v567 = vadd.f32 %v401, %v423
  %v568 = vadd.f32 %v402, %v424
  %v569 = vadd.f32 %v403, %v425
  %v570 = vadd.f32 %v404, %v417
  %v571 = vadd.f32 %v405, %v418
  %v572 = vadd.f32 %v406, %v419
  %v573 = vadd.f32 %v407, %v420
  %v574 = vadd.f32 %v408, %v421
  %v575 = vadd.f32 %v409, %v422
  %v576 = vadd.f32 %v410, %v423
  %v577 = vadd.f32 %v411, %v424
  %v578 = vadd.f32 %v412, %v425
  %v579 = vmax.f32 %v435, 0.0
  %v580 = vmax.f32 %v436, 0.0
  %v581 = vmax.f32 %v437, 0.0
  %v582 = vmax.f32 %v438, 0.0
  %v583 = vmax.f32 %v439, 0.0
  %v584 = vmax.f32 %v440, 0.0
  %v585 = vmax.f32 %v441, 0.0
  %v586 = vmax.f32 %v442, 0.0
  %v587 = vmax.f32 %v443, 0.0
  %v588 = vmax.f32 %v444, 0.0
  %v589 = vmax.f32 %v445, 0.0
  %v590 = vmax.f32 %v446, 0.0
  %v591 = vmax.f32 %v447, 0.0
  %v592 = vmax.f32 %v448, 0.0
  %v593 = vmax.f32 %v449, 0.0
  %v594 = vmax.f32 %v450, 0.0
  %v595 = vmax.f32 %v451, 0.0
  %v596 = vmax.f32 %v452, 0.0
  %v597 = vmax.f32 %v453, 0.0
  %v598 = vmax.f32 %v454, 0.0
  %v599 = vmax.f32 %v455, 0.0
  %v600 = vmax.f32 %v456, 0.0
  %v601 = vmax.f32 %v457, 0.0
  %v602 = vmax.f32 %v458, 0.0
  %v603 = vmax.f32 %v459, 0.0
  %v604 = vmax.f32 %v460, 0.0
  %v605 = vmax.f32 %v461, 0.0
  %v606 = vmax.f32 %v462, 0.0
  %v607 = vmax.f32 %v463, 0.0
  %v608 = vmax.f32 %v464, 0.0
  %v609 = vmax.f32 %v465, 0.0
  %v610 = vmax.f32 %v466, 0.0
  %v611 = vmax.f32 %v467, 0.0
  %v612 = vmax.f32 %v468, 0.0
  %v613 = vmax.f32 %v469, 0.0
  %v614 = vmax.f32 %v470, 0.0
  %v615 = vmax.f32 %v471, 0.0
  %v616 = vmax.f32 %v472, 0.0
  %v617 = vmax.f32 %v473, 0.0
  %v618 = vmax.f32 %v474, 0.0
  %v619 = vmax.f32 %v475, 0.0
  %v620 = vmax.f32 %v476, 0.0
  %v621 = vmax.f32 %v477, 0.0
  %v622 = vmax.f32 %v478, 0.0
  %v623 = vmax.f32 %v479, 0.0
  %v624 = vmax.f32 %v480, 0.0
  %v625 = vmax.f32 %v481, 0.0
  %v626 = vmax.f32 %v482, 0.0
  %v627 = vmax.f32 %v483, 0.0
  %v628 = vmax.f32 %v484, 0.0
  %v629 = vmax.f32 %v485, 0.0
  %v630 = vmax.f32 %v486, 0.0
  %v631 = vmax.f32 %v487, 0.0
  %v632 = vmax.f32 %v488, 0.0
  %v633 = vmax.f32 %v489, 0.0
  %v634 = vmax.f32 %v490, 0.0
  %v635 = vmax.f32 %v491, 0.0
  %v636 = vmax.f32 %v492, 0.0
  %v637 = vmax.f32 %v493, 0.0
  %v638 = vmax.f32 %v494, 0.0
  %v639 = vmax.f32 %v495, 0.0
  %v640 = vmax.f32 %v496, 0.0
  %v641 = vmax.f32 %v497, 0.0
  %v642 = vmax.f32 %v498, 0.0
  %v643 = vmax.f32 %v499, 0.0
  %v644 = vmax.f32 %v500, 0.0
  %v645 = vmax.f32 %v501, 0.0
  %v646 = vmax.f32 %v502, 0.0
  %v647 = vmax.f32 %v503, 0.0
  %v648 = vmax.f32 %v504, 0.0
  %v649 = vmax.f32 %v505, 0.0
  %v650 = vmax.f32 %v506, 0.0
  %v651 = vmax.f32 %v507, 0.0
  %v652 = vmax.f32 %v508, 0.0
  %v653 = vmax.f32 %v509, 0.0
  %v654 = vmax.f32 %v510, 0.0
  %v655 = vmax.f32 %v511, 0.0
  %v656 = vmax.f32 %v512, 0.0
  %v657 = vmax.f32 %v513, 0.0
  %v658 = vmax.f32 %v514, 0.0
  %v659 = vmax.f32 %v515, 0.0
  %v660 = vmax.f32 %v516, 0.0
  %v661 = vmax.f32 %v517, 0.0
  %v662 = vmax.f32 %v518, 0.0
  %v663 = vmax.f32 %v519, 0.0
  %v664 = vmax.f32 %v520, 0.0
  %v665 = vmax.f32 %v521, 0.0
  %v666 = vmax.f32 %v522, 0.0
  %v667 = vmax.f32 %v523, 0.0
  %v668 = vmax.f32 %v524, 0.0
  %v669 = vmax.f32 %v525, 0.0
  %v670 = vmax.f32 %v526, 0.0
  %v671 = vmax.f32 %v527, 0.0
  %v672 = vmax.f32 %v528, 0.0
  %v673 = vmax.f32 %v529, 0.0
  %v674 = vmax.f32 %v530, 0.0
  %v675 = vmax.f32 %v531, 0.0
  %v676 = vmax.f32 %v532, 0.0
  %v677 = vmax.f32 %v533, 0.0
  %v678 = vmax.f32 %v534, 0.0
  %v679 = vmax.f32 %v535, 0.0
  %v680 = vmax.f32 %v536, 0.0
  %v681 = vmax.f32 %v537, 0.0
  %v682 = vmax.f32 %v538, 0.0
  %v683 = vmax.f32 %v539, 0.0
  %v684 = vmax.f32 %v540, 0.0
  %v685 = vmax.f32 %v541, 0.0
  %v686 = vmax.f32 %v542, 0.0
  %v687 = vmax.f32 %v543, 0.0
  %v688 = vmax.f32 %v544, 0.0
  %v689 = vmax.f32 %v545, 0.0
  %v690 = vmax.f32 %v546, 0.0
  %v691 = vmax.f32 %v547, 0.0
  %v692 = vmax.f32 %v548, 0.0
  %v693 = vmax.f32 %v549, 0.0
  %v694 = vmax.f32 %v550, 0.0
  %v695 = vmax.f32 %v551, 0.0
  %v696 = vmax.f32 %v552, 0.0
  %v697 = vmax.f32 %v553, 0.0
  %v698 = vmax.f32 %v554, 0.0
  %v699 = vmax.f32 %v555, 0.0
  %v700 = vmax.f32 %v556, 0.0
  %v701 = vmax.f32 %v557, 0.0
  %v702 = vmax.f32 %v558, 0.0
  %v703 = vmax.f32 %v559, 0.0
  %v704 = vmax.f32 %v560, 0.0
  %v705 = vmax.f32 %v561, 0.0
  %v706 = vmax.f32 %v562, 0.0
  %v707 = vmax.f32 %v563, 0.0
  %v708 = vmax.f32 %v564, 0.0
  %v709 = vmax.f32 %v565, 0.0
  %v710 = vmax.f32 %v566, 0.0
  %v711 = vmax.f32 %v567, 0.0
  %v712 = vmax.f32 %v568, 0.0
  %v713 = vmax.f32 %v569, 0.0
  %v714 = vmax.f32 %v570, 0.0
  %v715 = vmax.f32 %v571, 0.0
  %v716 = vmax.f32 %v572, 0.0
  %v717 = vmax.f32 %v573, 0.0
  %v718 = vmax.f32 %v574, 0.0
  %v719 = vmax.f32 %v575, 0.0
  %v720 = vmax.f32 %v576, 0.0
  %v721 = vmax.f32 %v577, 0.0
  %v722 = vmax.f32 %v578, 0.0
  %v723 = vpack.c.bf16 %v588, %v579
  %v724 = vpack.c.bf16 %v589, %v580
  %v725 = vpack.c.bf16 %v590, %v581
  %v726 = vpack.c.bf16 %v591, %v582
  %v727 = vpack.c.bf16 %v592, %v583
  %v728 = vpack.c.bf16 %v593, %v584
  %v729 = vpack.c.bf16 %v594, %v585
  %v730 = vpack.c.bf16 %v595, %v586
  %v731 = vpack.c.bf16 %v596, %v587
  %v732 = vpack.c.bf16 %v606, %v597
  %v733 = vpack.c.bf16 %v607, %v598
  %v734 = vpack.c.bf16 %v608, %v599
  %v735 = vpack.c.bf16 %v609, %v600
  %v736 = vpack.c.bf16 %v610, %v601
  %v737 = vpack.c.bf16 %v611, %v602
  %v738 = vpack.c.bf16 %v612, %v603
  %v739 = vpack.c.bf16 %v613, %v604
  %v740 = vpack.c.bf16 %v614, %v605
  %v741 = vpack.c.bf16 %v624, %v615
  %v742 = vpack.c.bf16 %v625, %v616
  %v743 = vpack.c.bf16 %v626, %v617
  %v744 = vpack.c.bf16 %v627, %v618
  %v745 = vpack.c.bf16 %v628, %v619
  %v746 = vpack.c.bf16 %v629, %v620
  %v747 = vpack.c.bf16 %v630, %v621
  %v748 = vpack.c.bf16 %v631, %v622
  %v749 = vpack.c.bf16 %v632, %v623
  %v750 = vpack.c.bf16 %v642, %v633
  %v751 = vpack.c.bf16 %v643, %v634
  %v752 = vpack.c.bf16 %v644, %v635
  %v753 = vpack.c.bf16 %v645, %v636
  %v754 = vpack.c.bf16 %v646, %v637
  %v755 = vpack.c.bf16 %v647, %v638
  %v756 = vpack.c.bf16 %v648, %v639
  %v757 = vpack.c.bf16 %v649, %v640
  %v758 = vpack.c.bf16 %v650, %v641
  %v759 = vpack.c.bf16 %v660, %v651
  %v760 = vpack.c.bf16 %v661, %v652
  %v761 = vpack.c.bf16 %v662, %v653
  %v762 = vpack.c.bf16 %v663, %v654
  %v763 = vpack.c.bf16 %v664, %v655
  %v764 = vpack.c.bf16 %v665, %v656
  %v765 = vpack.c.bf16 %v666, %v657
  %v766 = vpack.c.bf16 %v667, %v658
  %v767 = vpack.c.bf16 %v668, %v659
  %v768 = vpack.c.bf16 %v678, %v669
  %v769 = vpack.c.bf16 %v679, %v670
  %v770 = vpack.c.bf16 %v680, %v671
  %v771 = vpack.c.bf16 %v681, %v672
  %v772 = vpack.c.bf16 %v682, %v673
  %v773 = vpack.c.bf16 %v683, %v674
  %v774 = vpack.c.bf16 %v684, %v675
  %v775 = vpack.c.bf16 %v685, %v676
  %v776 = vpack.c.bf16 %v686, %v677
  %v777 = vpack.c.bf16 %v696, %v687
  %v778 = vpack.c.bf16 %v697, %v688
  %v779 = vpack.c.bf16 %v698, %v689
  %v780 = vpack.c.bf16 %v699, %v690
  %v781 = vpack.c.bf16 %v700, %v691
  %v782 = vpack.c.bf16 %v701, %v692
  %v783 = vpack.c.bf16 %v702, %v693
  %v784 = vpack.c.bf16 %v703, %v694
  %v785 = vpack.c.bf16 %v704, %v695
  %v786 = vpack.c.bf16 %v714, %v705
  %v787 = vpack.c.bf16 %v715, %v706
  %v788 = vpack.c.bf16 %v716, %v707
  %v789 = vpack.c.bf16 %v717, %v708
  %v790 = vpack.c.bf16 %v718, %v709
  %v791 = vpack.c.bf16 %v719, %v710
  %v792 = vpack.c.bf16 %v720, %v711
  %v793 = vpack.c.bf16 %v721, %v712
  %v794 = vpack.c.bf16 %v722, %v713
  %v795 = vld [vmem:[%s1] sm:$0xf]
  %v796 = vld [vmem:[%s1 + $0x4] sm:$0xf]
  %v797 = vld [vmem:[%s1 + $0x8] sm:$0xf]
  %v798 = vld [vmem:[%s1 + $0xc] sm:$0xf]
  %v799 = vld [vmem:[%s1 + $0x10] sm:$0xf]
  %v800 = vld [vmem:[%s1 + $0x14] sm:$0xf]
  %v801 = vld [vmem:[%s1 + $0x18] sm:$0xf]
  %v802 = vld [vmem:[%s1 + $0x1c] sm:$0xf]
  %v803 = vld [vmem:[%s1 + $0x20] sm:$0xf]
  %v804 = vld [vmem:[%s1 + $0x24] sm:$0xf]
  %v805 = vld [vmem:[%s1 + $0x28] sm:$0xf]
  %v806 = vld [vmem:[%s1 + $0x2c] sm:$0xf]
  %v807 = vld [vmem:[%s1 + $0x30] sm:$0xf]
  %v808 = vld [vmem:[%s1 + $0x34] sm:$0xf]
  %v809 = vld [vmem:[%s1 + $0x38] sm:$0xf]
  %v810 = vld [vmem:[%s1 + $0x3c] sm:$0xf]
  %v811 = vld [vmem:[%s1 + $0x40] sm:$0xf]
  %v812 = vld [vmem:[%s1 + $0x44] sm:$0xf]
  %v813 = vld [vmem:[%s1 + $0x48] sm:$0xf]
  %v814 = vld [vmem:[%s1 + $0x4c] sm:$0xf]
  %v815 = vld [vmem:[%s1 + $0x50] sm:$0xf]
  %v816 = vld [vmem:[%s1 + $0x54] sm:$0xf]
  %v817 = vld [vmem:[%s1 + $0x58] sm:$0xf]
  %v818 = vld [vmem:[%s1 + $0x5c] sm:$0xf]
  %v819 = vld [vmem:[%s1 + $0x60] sm:$0xf]
  %v820 = vld [vmem:[%s1 + $0x64] sm:$0xf]
  %v821 = vld [vmem:[%s1 + $0x68] sm:$0xf]
  %v822 = vld [vmem:[%s1 + $0x6c] sm:$0xf]
  %v823 = vld [vmem:[%s1 + $0x70] sm:$0xf]
  %v824 = vld [vmem:[%s1 + $0x74] sm:$0xf]
  %v825 = vld [vmem:[%s1 + $0x78] sm:$0xf]
  %v826 = vld [vmem:[%s1 + $0x7c] sm:$0xf]
  %v827 = vld [vmem:[%s1 + $0x80] sm:$0xf]
  %v828 = vld [vmem:[%s1 + $0x84] sm:$0xf]
  %v829 = vld [vmem:[%s1 + $0x88] sm:$0xf]
  %v830 = vld [vmem:[%s1 + $0x8c] sm:$0xf]
  %v831 = vld [vmem:[%s1 + $0x90] sm:$0xf]
  %v832 = vld [vmem:[%s1 + $0x94] sm:$0xf]
  %v833 = vld [vmem:[%s1 + $0x98] sm:$0xf]
  %v834 = vld [vmem:[%s1 + $0x9c] sm:$0xf]
  %v835 = vld [vmem:[%s1 + $0xa0] sm:$0xf]
  %v836 = vld [vmem:[%s1 + $0xa4] sm:$0xf]
  %v837 = vld [vmem:[%s1 + $0xa8] sm:$0xf]
  %v838 = vld [vmem:[%s1 + $0xac] sm:$0xf]
  %v839 = vld [vmem:[%s1 + $0xb0] sm:$0xf]
  %v840 = vld [vmem:[%s1 + $0xb4] sm:$0xf]
  %v841 = vld [vmem:[%s1 + $0xb8] sm:$0xf]
  %v842 = vld [vmem:[%s1 + $0xbc] sm:$0xf]
  %v843 = vld [vmem:[%s1 + $0xc0] sm:$0xf]
  %v844 = vld [vmem:[%s1 + $0xc4] sm:$0xf]
  %v845 = vld [vmem:[%s1 + $0xc8] sm:$0xf]
  %v846 = vld [vmem:[%s1 + $0xcc] sm:$0xf]
  %v847 = vld [vmem:[%s1 + $0xd0] sm:$0xf]
  %v848 = vld [vmem:[%s1 + $0xd4] sm:$0xf]
  %v849 = vld [vmem:[%s1 + $0xd8] sm:$0xf]
  %v850 = vld [vmem:[%s1 + $0xdc] sm:$0xf]
  %v851 = vld [vmem:[%s1 + $0xe0] sm:$0xf]
  %v852 = vld [vmem:[%s1 + $0xe4] sm:$0xf]
  %v853 = vld [vmem:[%s1 + $0xe8] sm:$0xf]
  %v854 = vld [vmem:[%s1 + $0xec] sm:$0xf]
  %v855 = vld [vmem:[%s1 + $0xf0] sm:$0xf]
  %v856 = vld [vmem:[%s1 + $0xf4] sm:$0xf]
  %v857 = vld [vmem:[%s1 + $0xf8] sm:$0xf]
  %v858 = vld [vmem:[%s1 + $0xfc] sm:$0xf]
  %v859 = vld [vmem:[%s1 + $0x100] sm:$0xf]
  %v860 = vld [vmem:[%s1 + $0x104] sm:$0xf]
  %v861 = vld [vmem:[%s1 + $0x108] sm:$0xf]
  %v862 = vld [vmem:[%s1 + $0x10c] sm:$0xf]
  %v863 = vld [vmem:[%s1 + $0x110] sm:$0xf]
  %v864 = vld [vmem:[%s1 + $0x114] sm:$0xf]
  %v865 = vld [vmem:[%s1 + $0x118] sm:$0xf]
  %v866 = vld [vmem:[%s1 + $0x11c] sm:$0xf]
  %v867 = vld [vmem:[%s1 + $0x120] sm:$0xf]
  %v868 = vld [vmem:[%s1 + $0x124] sm:$0xf]
  %v869 = vld [vmem:[%s1 + $0x128] sm:$0xf]
  %v870 = vld [vmem:[%s1 + $0x12c] sm:$0xf]
  %v871 = vld [vmem:[%s1 + $0x130] sm:$0xf]
  %v872 = vld [vmem:[%s1 + $0x134] sm:$0xf]
  %v873 = vld [vmem:[%s1 + $0x138] sm:$0xf]
  %v874 = vld [vmem:[%s1 + $0x13c] sm:$0xf]
  %v875 = vld [vmem:[%s1 + $0x140] sm:$0xf]
  %v876 = vld [vmem:[%s1 + $0x144] sm:$0xf]
  %v877 = vld [vmem:[%s1 + $0x148] sm:$0xf]
  %v878 = vld [vmem:[%s1 + $0x14c] sm:$0xf]
  %v879 = vld [vmem:[%s1 + $0x150] sm:$0xf]
  %v880 = vld [vmem:[%s1 + $0x154] sm:$0xf]
  %v881 = vld [vmem:[%s1 + $0x158] sm:$0xf]
  %v882 = vld [vmem:[%s1 + $0x15c] sm:$0xf]
  %v883 = vld [vmem:[%s1 + $0x160] sm:$0xf]
  %v884 = vld [vmem:[%s1 + $0x164] sm:$0xf]
  %v885 = vld [vmem:[%s1 + $0x168] sm:$0xf]
  %v886 = vld [vmem:[%s1 + $0x16c] sm:$0xf]
  %v887 = vld [vmem:[%s1 + $0x170] sm:$0xf]
  %v888 = vld [vmem:[%s1 + $0x174] sm:$0xf]
  %v889 = vld [vmem:[%s1 + $0x178] sm:$0xf]
  %v890 = vld [vmem:[%s1 + $0x17c] sm:$0xf]
  %v891 = vld [vmem:[%s1 + $0x180] sm:$0xf]
  %v892 = vld [vmem:[%s1 + $0x184] sm:$0xf]
  %v893 = vld [vmem:[%s1 + $0x188] sm:$0xf]
  %v894 = vld [vmem:[%s1 + $0x18c] sm:$0xf]
  %v895 = vld [vmem:[%s1 + $0x190] sm:$0xf]
  %v896 = vld [vmem:[%s1 + $0x194] sm:$0xf]
  %v897 = vld [vmem:[%s1 + $0x198] sm:$0xf]
  %v898 = vld [vmem:[%s1 + $0x19c] sm:$0xf]
  %v899 = vld [vmem:[%s1 + $0x1a0] sm:$0xf]
  %v900 = vld [vmem:[%s1 + $0x1a4] sm:$0xf]
  %v901 = vld [vmem:[%s1 + $0x1a8] sm:$0xf]
  %v902 = vld [vmem:[%s1 + $0x1ac] sm:$0xf]
  %v903 = vld [vmem:[%s1 + $0x1b0] sm:$0xf]
  %v904 = vld [vmem:[%s1 + $0x1b4] sm:$0xf]
  %v905 = vld [vmem:[%s1 + $0x1b8] sm:$0xf]
  %v906 = vld [vmem:[%s1 + $0x1bc] sm:$0xf]
  %v907 = vld [vmem:[%s1 + $0x1c0] sm:$0xf]
  %v908 = vld [vmem:[%s1 + $0x1c4] sm:$0xf]
  %v909 = vld [vmem:[%s1 + $0x1c8] sm:$0xf]
  %v910 = vld [vmem:[%s1 + $0x1cc] sm:$0xf]
  %v911 = vld [vmem:[%s1 + $0x1d0] sm:$0xf]
  %v912 = vld [vmem:[%s1 + $0x1d4] sm:$0xf]
  %v913 = vld [vmem:[%s1 + $0x1d8] sm:$0xf]
  %v914 = vld [vmem:[%s1 + $0x1dc] sm:$0xf]
  %v915 = vld [vmem:[%s1 + $0x1e0] sm:$0xf]
  %v916 = vld [vmem:[%s1 + $0x1e4] sm:$0xf]
  %v917 = vld [vmem:[%s1 + $0x1e8] sm:$0xf]
  %v918 = vld [vmem:[%s1 + $0x1ec] sm:$0xf]
  %v919 = vld [vmem:[%s1 + $0x1f0] sm:$0xf]
  %v920 = vld [vmem:[%s1 + $0x1f4] sm:$0xf]
  %v921 = vld [vmem:[%s1 + $0x1f8] sm:$0xf]
  %v922 = vld [vmem:[%s1 + $0x1fc] sm:$0xf]
  %v923 = vld [vmem:[%s1 + $0x200] sm:$0xf]
  %v924 = vld [vmem:[%s1 + $0x204] sm:$0xf]
  %v925 = vld [vmem:[%s1 + $0x208] sm:$0xf]
  %v926 = vld [vmem:[%s1 + $0x20c] sm:$0xf]
  %v927 = vld [vmem:[%s1 + $0x210] sm:$0xf]
  %v928 = vld [vmem:[%s1 + $0x214] sm:$0xf]
  %v929 = vld [vmem:[%s1 + $0x218] sm:$0xf]
  %v930 = vld [vmem:[%s1 + $0x21c] sm:$0xf]
  %v931 = vld [vmem:[%s1 + $0x220] sm:$0xf]
  %v932 = vld [vmem:[%s1 + $0x224] sm:$0xf]
  %v933 = vld [vmem:[%s1 + $0x228] sm:$0xf]
  %v934 = vld [vmem:[%s1 + $0x22c] sm:$0xf]
  %v935 = vld [vmem:[%s1 + $0x230] sm:$0xf]
  %v936 = vld [vmem:[%s1 + $0x234] sm:$0xf]
  %v937 = vld [vmem:[%s1 + $0x238] sm:$0xf]
  %v938 = vld [vmem:[%s1 + $0x23c] sm:$0xf]
  %v1083 = vunpack.c.l.b16 %v795
  %v1084 = vunpack.c.l.b16 %v796
  %v1085 = vunpack.c.l.b16 %v797
  %v1086 = vunpack.c.l.b16 %v798
  %v1087 = vunpack.c.l.b16 %v799
  %v1088 = vunpack.c.l.b16 %v800
  %v1089 = vunpack.c.l.b16 %v801
  %v1090 = vunpack.c.l.b16 %v802
  %v1091 = vunpack.c.l.b16 %v803
  %v1092 = vunpack.c.l.b16 %v804
  %v1093 = vunpack.c.l.b16 %v805
  %v1094 = vunpack.c.l.b16 %v806
  %v1095 = vunpack.c.l.b16 %v807
  %v1096 = vunpack.c.l.b16 %v808
  %v1097 = vunpack.c.l.b16 %v809
  %v1098 = vunpack.c.l.b16 %v810
  %v1099 = vunpack.c.l.b16 %v811
  %v1100 = vunpack.c.l.b16 %v812
  %v1101 = vunpack.c.l.b16 %v813
  %v1102 = vunpack.c.l.b16 %v814
  %v1103 = vunpack.c.l.b16 %v815
  %v1104 = vunpack.c.l.b16 %v816
  %v1105 = vunpack.c.l.b16 %v817
  %v1106 = vunpack.c.l.b16 %v818
  %v1107 = vunpack.c.l.b16 %v819
  %v1108 = vunpack.c.l.b16 %v820
  %v1109 = vunpack.c.l.b16 %v821
  %v1110 = vunpack.c.l.b16 %v822
  %v1111 = vunpack.c.l.b16 %v823
  %v1112 = vunpack.c.l.b16 %v824
  %v1113 = vunpack.c.l.b16 %v825
  %v1114 = vunpack.c.l.b16 %v826
  %v1115 = vunpack.c.l.b16 %v827
  %v1116 = vunpack.c.l.b16 %v828
  %v1117 = vunpack.c.l.b16 %v829
  %v1118 = vunpack.c.l.b16 %v830
  %v1119 = vunpack.c.l.b16 %v831
  %v1120 = vunpack.c.l.b16 %v832
  %v1121 = vunpack.c.l.b16 %v833
  %v1122 = vunpack.c.l.b16 %v834
  %v1123 = vunpack.c.l.b16 %v835
  %v1124 = vunpack.c.l.b16 %v836
  %v1125 = vunpack.c.l.b16 %v837
  %v1126 = vunpack.c.l.b16 %v838
  %v1127 = vunpack.c.l.b16 %v839
  %v1128 = vunpack.c.l.b16 %v840
  %v1129 = vunpack.c.l.b16 %v841
  %v1130 = vunpack.c.l.b16 %v842
  %v1131 = vunpack.c.l.b16 %v843
  %v1132 = vunpack.c.l.b16 %v844
  %v1133 = vunpack.c.l.b16 %v845
  %v1134 = vunpack.c.l.b16 %v846
  %v1135 = vunpack.c.l.b16 %v847
  %v1136 = vunpack.c.l.b16 %v848
  %v1137 = vunpack.c.l.b16 %v849
  %v1138 = vunpack.c.l.b16 %v850
  %v1139 = vunpack.c.l.b16 %v851
  %v1140 = vunpack.c.l.b16 %v852
  %v1141 = vunpack.c.l.b16 %v853
  %v1142 = vunpack.c.l.b16 %v854
  %v1143 = vunpack.c.l.b16 %v855
  %v1144 = vunpack.c.l.b16 %v856
  %v1145 = vunpack.c.l.b16 %v857
  %v1146 = vunpack.c.l.b16 %v858
  %v1147 = vunpack.c.l.b16 %v859
  %v1148 = vunpack.c.l.b16 %v860
  %v1149 = vunpack.c.l.b16 %v861
  %v1150 = vunpack.c.l.b16 %v862
  %v1151 = vunpack.c.l.b16 %v863
  %v1152 = vunpack.c.l.b16 %v864
  %v1153 = vunpack.c.l.b16 %v865
  %v1154 = vunpack.c.l.b16 %v866
  %v1155 = vunpack.c.l.b16 %v867
  %v1156 = vunpack.c.l.b16 %v868
  %v1157 = vunpack.c.l.b16 %v869
  %v1158 = vunpack.c.l.b16 %v870
  %v1159 = vunpack.c.l.b16 %v871
  %v1160 = vunpack.c.l.b16 %v872
  %v1161 = vunpack.c.l.b16 %v873
  %v1162 = vunpack.c.l.b16 %v874
  %v1163 = vunpack.c.l.b16 %v875
  %v1164 = vunpack.c.l.b16 %v876
  %v1165 = vunpack.c.l.b16 %v877
  %v1166 = vunpack.c.l.b16 %v878
  %v1167 = vunpack.c.l.b16 %v879
  %v1168 = vunpack.c.l.b16 %v880
  %v1169 = vunpack.c.l.b16 %v881
  %v1170 = vunpack.c.l.b16 %v882
  %v1171 = vunpack.c.l.b16 %v883
  %v1172 = vunpack.c.l.b16 %v884
  %v1173 = vunpack.c.l.b16 %v885
  %v1174 = vunpack.c.l.b16 %v886
  %v1175 = vunpack.c.l.b16 %v887
  %v1176 = vunpack.c.l.b16 %v888
  %v1177 = vunpack.c.l.b16 %v889
  %v1178 = vunpack.c.l.b16 %v890
  %v1179 = vunpack.c.l.b16 %v891
  %v1180 = vunpack.c.l.b16 %v892
  %v1181 = vunpack.c.l.b16 %v893
  %v1182 = vunpack.c.l.b16 %v894
  %v1183 = vunpack.c.l.b16 %v895
  %v1184 = vunpack.c.l.b16 %v896
  %v1185 = vunpack.c.l.b16 %v897
  %v1186 = vunpack.c.l.b16 %v898
  %v1187 = vunpack.c.l.b16 %v899
  %v1188 = vunpack.c.l.b16 %v900
  %v1189 = vunpack.c.l.b16 %v901
  %v1190 = vunpack.c.l.b16 %v902
  %v1191 = vunpack.c.l.b16 %v903
  %v1192 = vunpack.c.l.b16 %v904
  %v1193 = vunpack.c.l.b16 %v905
  %v1194 = vunpack.c.l.b16 %v906
  %v1195 = vunpack.c.l.b16 %v907
  %v1196 = vunpack.c.l.b16 %v908
  %v1197 = vunpack.c.l.b16 %v909
  %v1198 = vunpack.c.l.b16 %v910
  %v1199 = vunpack.c.l.b16 %v911
  %v1200 = vunpack.c.l.b16 %v912
  %v1201 = vunpack.c.l.b16 %v913
  %v1202 = vunpack.c.l.b16 %v914
  %v1203 = vunpack.c.l.b16 %v915
  %v1204 = vunpack.c.l.b16 %v916
  %v1205 = vunpack.c.l.b16 %v917
  %v1206 = vunpack.c.l.b16 %v918
  %v1207 = vunpack.c.l.b16 %v919
  %v1208 = vunpack.c.l.b16 %v920
  %v1209 = vunpack.c.l.b16 %v921
  %v1210 = vunpack.c.l.b16 %v922
  %v1211 = vunpack.c.l.b16 %v923
  %v1212 = vunpack.c.l.b16 %v924
  %v1213 = vunpack.c.l.b16 %v925
  %v1214 = vunpack.c.l.b16 %v926
  %v1215 = vunpack.c.l.b16 %v927
  %v1216 = vunpack.c.l.b16 %v928
  %v1217 = vunpack.c.l.b16 %v929
  %v1218 = vunpack.c.l.b16 %v930
  %v1219 = vunpack.c.l.b16 %v931
  %v1220 = vunpack.c.l.b16 %v932
  %v1221 = vunpack.c.l.b16 %v933
  %v1222 = vunpack.c.l.b16 %v934
  %v1223 = vunpack.c.l.b16 %v935
  %v1224 = vunpack.c.l.b16 %v936
  %v1225 = vunpack.c.l.b16 %v937
  %v1226 = vunpack.c.l.b16 %v938
  %v1227 = vpack.c.b16 %v1084, %v1083
  %v1228 = vpack.c.b16 %v1086, %v1085
  %v1229 = vpack.c.b16 %v1088, %v1087
  %v1230 = vpack.c.b16 %v1090, %v1089
  %v1231 = vpack.c.b16 %v1092, %v1091
  %v1232 = vpack.c.b16 %v1094, %v1093
  %v1233 = vpack.c.b16 %v1096, %v1095
  %v1234 = vpack.c.b16 %v1098, %v1097
  %v1235 = vpack.c.b16 %v1100, %v1099
  %v1236 = vpack.c.b16 %v1102, %v1101
  %v1237 = vpack.c.b16 %v1104, %v1103
  %v1238 = vpack.c.b16 %v1106, %v1105
  %v1239 = vpack.c.b16 %v1108, %v1107
  %v1240 = vpack.c.b16 %v1110, %v1109
  %v1241 = vpack.c.b16 %v1112, %v1111
  %v1242 = vpack.c.b16 %v1114, %v1113
  %v1243 = vpack.c.b16 %v1116, %v1115
  %v1244 = vpack.c.b16 %v1118, %v1117
  %v1245 = vpack.c.b16 %v1120, %v1119
  %v1246 = vpack.c.b16 %v1122, %v1121
  %v1247 = vpack.c.b16 %v1124, %v1123
  %v1248 = vpack.c.b16 %v1126, %v1125
  %v1249 = vpack.c.b16 %v1128, %v1127
  %v1250 = vpack.c.b16 %v1130, %v1129
  %v1251 = vpack.c.b16 %v1132, %v1131
  %v1252 = vpack.c.b16 %v1134, %v1133
  %v1253 = vpack.c.b16 %v1136, %v1135
  %v1254 = vpack.c.b16 %v1138, %v1137
  %v1255 = vpack.c.b16 %v1140, %v1139
  %v1256 = vpack.c.b16 %v1142, %v1141
  %v1257 = vpack.c.b16 %v1144, %v1143
  %v1258 = vpack.c.b16 %v1146, %v1145
  %v1259 = vpack.c.b16 %v1148, %v1147
  %v1260 = vpack.c.b16 %v1150, %v1149
  %v1261 = vpack.c.b16 %v1152, %v1151
  %v1262 = vpack.c.b16 %v1154, %v1153
  %v1263 = vpack.c.b16 %v1156, %v1155
  %v1264 = vpack.c.b16 %v1158, %v1157
  %v1265 = vpack.c.b16 %v1160, %v1159
  %v1266 = vpack.c.b16 %v1162, %v1161
  %v1267 = vpack.c.b16 %v1164, %v1163
  %v1268 = vpack.c.b16 %v1166, %v1165
  %v1269 = vpack.c.b16 %v1168, %v1167
  %v1270 = vpack.c.b16 %v1170, %v1169
  %v1271 = vpack.c.b16 %v1172, %v1171
  %v1272 = vpack.c.b16 %v1174, %v1173
  %v1273 = vpack.c.b16 %v1176, %v1175
  %v1274 = vpack.c.b16 %v1178, %v1177
  %v1275 = vpack.c.b16 %v1180, %v1179
  %v1276 = vpack.c.b16 %v1182, %v1181
  %v1277 = vpack.c.b16 %v1184, %v1183
  %v1278 = vpack.c.b16 %v1186, %v1185
  %v1279 = vpack.c.b16 %v1188, %v1187
  %v1280 = vpack.c.b16 %v1190, %v1189
  %v1281 = vpack.c.b16 %v1192, %v1191
  %v1282 = vpack.c.b16 %v1194, %v1193
  %v1283 = vpack.c.b16 %v1196, %v1195
  %v1284 = vpack.c.b16 %v1198, %v1197
  %v1285 = vpack.c.b16 %v1200, %v1199
  %v1286 = vpack.c.b16 %v1202, %v1201
  %v1287 = vpack.c.b16 %v1204, %v1203
  %v1288 = vpack.c.b16 %v1206, %v1205
  %v1289 = vpack.c.b16 %v1208, %v1207
  %v1290 = vpack.c.b16 %v1210, %v1209
  %v1291 = vpack.c.b16 %v1212, %v1211
  %v1292 = vpack.c.b16 %v1214, %v1213
  %v1293 = vpack.c.b16 %v1216, %v1215
  %v1294 = vpack.c.b16 %v1218, %v1217
  %v1295 = vpack.c.b16 %v1220, %v1219
  %v1296 = vpack.c.b16 %v1222, %v1221
  %v1297 = vpack.c.b16 %v1224, %v1223
  %v1298 = vpack.c.b16 %v1226, %v1225
  %1371 = vmatpush.bf16.msra.mxu0 %v1234
  %1372 = vmatpush.bf16.msra.mxu0 %v1233
  %1373 = vmatpush.bf16.msra.mxu0 %v1232
  %1374 = vmatpush.bf16.msra.mxu0 %v1231
  %1375 = vmatpush.bf16.msra.mxu0 %v1230
  %1376 = vmatpush.bf16.msra.mxu0 %v1229
  %1377 = vmatpush.bf16.msra.mxu0 %v1228
  %1378 = vmatpush.bf16.msra.mxu0 %v1227
  %1379 = vmatmul.bf16.gmra.mxu0 %v723
  %v1380 = vpop.f32.mrf.mxu0
  %v1381 = vadd.f32 0.0, %v1380
  %v1382 = vpop.f32.mrf.mxu0
  %v1383 = vadd.f32 0.0, %v1382
  %1384 = vmatmul.bf16.gmra.mxu0 %v732
  %v1385 = vpop.f32.mrf.mxu0
  %v1386 = vadd.f32 0.0, %v1385
  %v1387 = vpop.f32.mrf.mxu0
  %v1388 = vadd.f32 0.0, %v1387
  %1389 = vmatmul.bf16.gmra.mxu0 %v741
  %v1390 = vpop.f32.mrf.mxu0
  %v1391 = vadd.f32 0.0, %v1390
  %v1392 = vpop.f32.mrf.mxu0
  %v1393 = vadd.f32 0.0, %v1392
  %1394 = vmatmul.bf16.gmra.mxu0 %v750
  %v1395 = vpop.f32.mrf.mxu0
  %v1396 = vadd.f32 0.0, %v1395
  %v1397 = vpop.f32.mrf.mxu0
  %v1398 = vadd.f32 0.0, %v1397
  %1399 = vmatmul.bf16.gmra.mxu0 %v759
  %v1400 = vpop.f32.mrf.mxu0
  %v1401 = vadd.f32 0.0, %v1400
  %v1402 = vpop.f32.mrf.mxu0
  %v1403 = vadd.f32 0.0, %v1402
  %1404 = vmatmul.bf16.gmra.mxu0 %v768
  %v1405 = vpop.f32.mrf.mxu0
  %v1406 = vadd.f32 0.0, %v1405
  %v1407 = vpop.f32.mrf.mxu0
  %v1408 = vadd.f32 0.0, %v1407
  %1409 = vmatmul.bf16.gmra.mxu0 %v777
  %v1410 = vpop.f32.mrf.mxu0
  %v1411 = vadd.f32 0.0, %v1410
  %v1412 = vpop.f32.mrf.mxu0
  %v1413 = vadd.f32 0.0, %v1412
  %1414 = vmatmul.bf16.gmra.mxu0 %v786
  %v1415 = vpop.f32.mrf.mxu0
  %v1416 = vadd.f32 0.0, %v1415
  %v1417 = vpop.f32.mrf.mxu0
  %v1418 = vadd.f32 0.0, %v1417
  %1419 = vdwg.mxu0
  %1420 = vmatpush.bf16.msra.mxu0 %v1242
  %1421 = vmatpush.bf16.msra.mxu0 %v1241
  %1422 = vmatpush.bf16.msra.mxu0 %v1240
  %1423 = vmatpush.bf16.msra.mxu0 %v1239
  %1424 = vmatpush.bf16.msra.mxu0 %v1238
  %1425 = vmatpush.bf16.msra.mxu0 %v1237
  %1426 = vmatpush.bf16.msra.mxu0 %v1236
  %1427 = vmatpush.bf16.msra.mxu0 %v1235
  %1428 = vmatmul.bf16.gmra.mxu0 %v724
  %v1429 = vpop.f32.mrf.mxu0
  %v1430 = vadd.f32 %v1381, %v1429
  %v1431 = vpop.f32.mrf.mxu0
  %v1432 = vadd.f32 %v1383, %v1431
  %1433 = vmatmul.bf16.gmra.mxu0 %v733
  %v1434 = vpop.f32.mrf.mxu0
  %v1435 = vadd.f32 %v1386, %v1434
  %v1436 = vpop.f32.mrf.mxu0
  %v1437 = vadd.f32 %v1388, %v1436
  %1438 = vmatmul.bf16.gmra.mxu0 %v742
  %v1439 = vpop.f32.mrf.mxu0
  %v1440 = vadd.f32 %v1391, %v1439
  %v1441 = vpop.f32.mrf.mxu0
  %v1442 = vadd.f32 %v1393, %v1441
  %1443 = vmatmul.bf16.gmra.mxu0 %v751
  %v1444 = vpop.f32.mrf.mxu0
  %v1445 = vadd.f32 %v1396, %v1444
  %v1446 = vpop.f32.mrf.mxu0
  %v1447 = vadd.f32 %v1398, %v1446
  %1448 = vmatmul.bf16.gmra.mxu0 %v760
  %v1449 = vpop.f32.mrf.mxu0
  %v1450 = vadd.f32 %v1401, %v1449
  %v1451 = vpop.f32.mrf.mxu0
  %v1452 = vadd.f32 %v1403, %v1451
  %1453 = vmatmul.bf16.gmra.mxu0 %v769
  %v1454 = vpop.f32.mrf.mxu0
  %v1455 = vadd.f32 %v1406, %v1454
  %v1456 = vpop.f32.mrf.mxu0
  %v1457 = vadd.f32 %v1408, %v1456
  %1458 = vmatmul.bf16.gmra.mxu0 %v778
  %v1459 = vpop.f32.mrf.mxu0
  %v1460 = vadd.f32 %v1411, %v1459
  %v1461 = vpop.f32.mrf.mxu0
  %v1462 = vadd.f32 %v1413, %v1461
  %1463 = vmatmul.bf16.gmra.mxu0 %v787
  %v1464 = vpop.f32.mrf.mxu0
  %v1465 = vadd.f32 %v1416, %v1464
  %v1466 = vpop.f32.mrf.mxu0
  %v1467 = vadd.f32 %v1418, %v1466
  %1468 = vdwg.mxu0
  %1469 = vmatpush.bf16.msra.mxu0 %v1250
  %1470 = vmatpush.bf16.msra.mxu0 %v1249
  %1471 = vmatpush.bf16.msra.mxu0 %v1248
  %1472 = vmatpush.bf16.msra.mxu0 %v1247
  %1473 = vmatpush.bf16.msra.mxu0 %v1246
  %1474 = vmatpush.bf16.msra.mxu0 %v1245
  %1475 = vmatpush.bf16.msra.mxu0 %v1244
  %1476 = vmatpush.bf16.msra.mxu0 %v1243
  %1477 = vmatmul.bf16.gmra.mxu0 %v725
  %v1478 = vpop.f32.mrf.mxu0
  %v1479 = vadd.f32 %v1430, %v1478
  %v1480 = vpop.f32.mrf.mxu0
  %v1481 = vadd.f32 %v1432, %v1480
  %1482 = vmatmul.bf16.gmra.mxu0 %v734
  %v1483 = vpop.f32.mrf.mxu0
  %v1484 = vadd.f32 %v1435, %v1483
  %v1485 = vpop.f32.mrf.mxu0
  %v1486 = vadd.f32 %v1437, %v1485
  %1487 = vmatmul.bf16.gmra.mxu0 %v743
  %v1488 = vpop.f32.mrf.mxu0
  %v1489 = vadd.f32 %v1440, %v1488
  %v1490 = vpop.f32.mrf.mxu0
  %v1491 = vadd.f32 %v1442, %v1490
  %1492 = vmatmul.bf16.gmra.mxu0 %v752
  %v1493 = vpop.f32.mrf.mxu0
  %v1494 = vadd.f32 %v1445, %v1493
  %v1495 = vpop.f32.mrf.mxu0
  %v1496 = vadd.f32 %v1447, %v1495
  %1497 = vmatmul.bf16.gmra.mxu0 %v761
  %v1498 = vpop.f32.mrf.mxu0
  %v1499 = vadd.f32 %v1450, %v1498
  %v1500 = vpop.f32.mrf.mxu0
  %v1501 = vadd.f32 %v1452, %v1500
  %1502 = vmatmul.bf16.gmra.mxu0 %v770
  %v1503 = vpop.f32.mrf.mxu0
  %v1504 = vadd.f32 %v1455, %v1503
  %v1505 = vpop.f32.mrf.mxu0
  %v1506 = vadd.f32 %v1457, %v1505
  %1507 = vmatmul.bf16.gmra.mxu0 %v779
  %v1508 = vpop.f32.mrf.mxu0
  %v1509 = vadd.f32 %v1460, %v1508
  %v1510 = vpop.f32.mrf.mxu0
  %v1511 = vadd.f32 %v1462, %v1510
  %1512 = vmatmul.bf16.gmra.mxu0 %v788
  %v1513 = vpop.f32.mrf.mxu0
  %v1514 = vadd.f32 %v1465, %v1513
  %v1515 = vpop.f32.mrf.mxu0
  %v1516 = vadd.f32 %v1467, %v1515
  %1517 = vdwg.mxu0
  %1518 = vmatpush.bf16.msra.mxu0 %v1258
  %1519 = vmatpush.bf16.msra.mxu0 %v1257
  %1520 = vmatpush.bf16.msra.mxu0 %v1256
  %1521 = vmatpush.bf16.msra.mxu0 %v1255
  %1522 = vmatpush.bf16.msra.mxu0 %v1254
  %1523 = vmatpush.bf16.msra.mxu0 %v1253
  %1524 = vmatpush.bf16.msra.mxu0 %v1252
  %1525 = vmatpush.bf16.msra.mxu0 %v1251
  %1526 = vmatmul.bf16.gmra.mxu0 %v726
  %v1527 = vpop.f32.mrf.mxu0
  %v1528 = vadd.f32 %v1479, %v1527
  %v1529 = vpop.f32.mrf.mxu0
  %v1530 = vadd.f32 %v1481, %v1529
  %1531 = vmatmul.bf16.gmra.mxu0 %v735
  %v1532 = vpop.f32.mrf.mxu0
  %v1533 = vadd.f32 %v1484, %v1532
  %v1534 = vpop.f32.mrf.mxu0
  %v1535 = vadd.f32 %v1486, %v1534
  %1536 = vmatmul.bf16.gmra.mxu0 %v744
  %v1537 = vpop.f32.mrf.mxu0
  %v1538 = vadd.f32 %v1489, %v1537
  %v1539 = vpop.f32.mrf.mxu0
  %v1540 = vadd.f32 %v1491, %v1539
  %1541 = vmatmul.bf16.gmra.mxu0 %v753
  %v1542 = vpop.f32.mrf.mxu0
  %v1543 = vadd.f32 %v1494, %v1542
  %v1544 = vpop.f32.mrf.mxu0
  %v1545 = vadd.f32 %v1496, %v1544
  %1546 = vmatmul.bf16.gmra.mxu0 %v762
  %v1547 = vpop.f32.mrf.mxu0
  %v1548 = vadd.f32 %v1499, %v1547
  %v1549 = vpop.f32.mrf.mxu0
  %v1550 = vadd.f32 %v1501, %v1549
  %1551 = vmatmul.bf16.gmra.mxu0 %v771
  %v1552 = vpop.f32.mrf.mxu0
  %v1553 = vadd.f32 %v1504, %v1552
  %v1554 = vpop.f32.mrf.mxu0
  %v1555 = vadd.f32 %v1506, %v1554
  %1556 = vmatmul.bf16.gmra.mxu0 %v780
  %v1557 = vpop.f32.mrf.mxu0
  %v1558 = vadd.f32 %v1509, %v1557
  %v1559 = vpop.f32.mrf.mxu0
  %v1560 = vadd.f32 %v1511, %v1559
  %1561 = vmatmul.bf16.gmra.mxu0 %v789
  %v1562 = vpop.f32.mrf.mxu0
  %v1563 = vadd.f32 %v1514, %v1562
  %v1564 = vpop.f32.mrf.mxu0
  %v1565 = vadd.f32 %v1516, %v1564
  %1566 = vdwg.mxu0
  %1567 = vmatpush.bf16.msra.mxu0 %v1266
  %1568 = vmatpush.bf16.msra.mxu0 %v1265
  %1569 = vmatpush.bf16.msra.mxu0 %v1264
  %1570 = vmatpush.bf16.msra.mxu0 %v1263
  %1571 = vmatpush.bf16.msra.mxu0 %v1262
  %1572 = vmatpush.bf16.msra.mxu0 %v1261
  %1573 = vmatpush.bf16.msra.mxu0 %v1260
  %1574 = vmatpush.bf16.msra.mxu0 %v1259
  %1575 = vmatmul.bf16.gmra.mxu0 %v727
  %v1576 = vpop.f32.mrf.mxu0
  %v1577 = vadd.f32 %v1528, %v1576
  %v1578 = vpop.f32.mrf.mxu0
  %v1579 = vadd.f32 %v1530, %v1578
  %1580 = vmatmul.bf16.gmra.mxu0 %v736
  %v1581 = vpop.f32.mrf.mxu0
  %v1582 = vadd.f32 %v1533, %v1581
  %v1583 = vpop.f32.mrf.mxu0
  %v1584 = vadd.f32 %v1535, %v1583
  %1585 = vmatmul.bf16.gmra.mxu0 %v745
  %v1586 = vpop.f32.mrf.mxu0
  %v1587 = vadd.f32 %v1538, %v1586
  %v1588 = vpop.f32.mrf.mxu0
  %v1589 = vadd.f32 %v1540, %v1588
  %1590 = vmatmul.bf16.gmra.mxu0 %v754
  %v1591 = vpop.f32.mrf.mxu0
  %v1592 = vadd.f32 %v1543, %v1591
  %v1593 = vpop.f32.mrf.mxu0
  %v1594 = vadd.f32 %v1545, %v1593
  %1595 = vmatmul.bf16.gmra.mxu0 %v763
  %v1596 = vpop.f32.mrf.mxu0
  %v1597 = vadd.f32 %v1548, %v1596
  %v1598 = vpop.f32.mrf.mxu0
  %v1599 = vadd.f32 %v1550, %v1598
  %1600 = vmatmul.bf16.gmra.mxu0 %v772
  %v1601 = vpop.f32.mrf.mxu0
  %v1602 = vadd.f32 %v1553, %v1601
  %v1603 = vpop.f32.mrf.mxu0
  %v1604 = vadd.f32 %v1555, %v1603
  %1605 = vmatmul.bf16.gmra.mxu0 %v781
  %v1606 = vpop.f32.mrf.mxu0
  %v1607 = vadd.f32 %v1558, %v1606
  %v1608 = vpop.f32.mrf.mxu0
  %v1609 = vadd.f32 %v1560, %v1608
  %1610 = vmatmul.bf16.gmra.mxu0 %v790
  %v1611 = vpop.f32.mrf.mxu0
  %v1612 = vadd.f32 %v1563, %v1611
  %v1613 = vpop.f32.mrf.mxu0
  %v1614 = vadd.f32 %v1565, %v1613
  %1615 = vdwg.mxu0
  %1616 = vmatpush.bf16.msra.mxu0 %v1274
  %1617 = vmatpush.bf16.msra.mxu0 %v1273
  %1618 = vmatpush.bf16.msra.mxu0 %v1272
  %1619 = vmatpush.bf16.msra.mxu0 %v1271
  %1620 = vmatpush.bf16.msra.mxu0 %v1270
  %1621 = vmatpush.bf16.msra.mxu0 %v1269
  %1622 = vmatpush.bf16.msra.mxu0 %v1268
  %1623 = vmatpush.bf16.msra.mxu0 %v1267
  %1624 = vmatmul.bf16.gmra.mxu0 %v728
  %v1625 = vpop.f32.mrf.mxu0
  %v1626 = vadd.f32 %v1577, %v1625
  %v1627 = vpop.f32.mrf.mxu0
  %v1628 = vadd.f32 %v1579, %v1627
  %1629 = vmatmul.bf16.gmra.mxu0 %v737
  %v1630 = vpop.f32.mrf.mxu0
  %v1631 = vadd.f32 %v1582, %v1630
  %v1632 = vpop.f32.mrf.mxu0
  %v1633 = vadd.f32 %v1584, %v1632
  %1634 = vmatmul.bf16.gmra.mxu0 %v746
  %v1635 = vpop.f32.mrf.mxu0
  %v1636 = vadd.f32 %v1587, %v1635
  %v1637 = vpop.f32.mrf.mxu0
  %v1638 = vadd.f32 %v1589, %v1637
  %1639 = vmatmul.bf16.gmra.mxu0 %v755
  %v1640 = vpop.f32.mrf.mxu0
  %v1641 = vadd.f32 %v1592, %v1640
  %v1642 = vpop.f32.mrf.mxu0
  %v1643 = vadd.f32 %v1594, %v1642
  %1644 = vmatmul.bf16.gmra.mxu0 %v764
  %v1645 = vpop.f32.mrf.mxu0
  %v1646 = vadd.f32 %v1597, %v1645
  %v1647 = vpop.f32.mrf.mxu0
  %v1648 = vadd.f32 %v1599, %v1647
  %1649 = vmatmul.bf16.gmra.mxu0 %v773
  %v1650 = vpop.f32.mrf.mxu0
  %v1651 = vadd.f32 %v1602, %v1650
  %v1652 = vpop.f32.mrf.mxu0
  %v1653 = vadd.f32 %v1604, %v1652
  %1654 = vmatmul.bf16.gmra.mxu0 %v782
  %v1655 = vpop.f32.mrf.mxu0
  %v1656 = vadd.f32 %v1607, %v1655
  %v1657 = vpop.f32.mrf.mxu0
  %v1658 = vadd.f32 %v1609, %v1657
  %1659 = vmatmul.bf16.gmra.mxu0 %v791
  %v1660 = vpop.f32.mrf.mxu0
  %v1661 = vadd.f32 %v1612, %v1660
  %v1662 = vpop.f32.mrf.mxu0
  %v1663 = vadd.f32 %v1614, %v1662
  %1664 = vdwg.mxu0
  %1665 = vmatpush.bf16.msra.mxu0 %v1282
  %1666 = vmatpush.bf16.msra.mxu0 %v1281
  %1667 = vmatpush.bf16.msra.mxu0 %v1280
  %1668 = vmatpush.bf16.msra.mxu0 %v1279
  %1669 = vmatpush.bf16.msra.mxu0 %v1278
  %1670 = vmatpush.bf16.msra.mxu0 %v1277
  %1671 = vmatpush.bf16.msra.mxu0 %v1276
  %1672 = vmatpush.bf16.msra.mxu0 %v1275
  %1673 = vmatmul.bf16.gmra.mxu0 %v729
  %v1674 = vpop.f32.mrf.mxu0
  %v1675 = vadd.f32 %v1626, %v1674
  %v1676 = vpop.f32.mrf.mxu0
  %v1677 = vadd.f32 %v1628, %v1676
  %1678 = vmatmul.bf16.gmra.mxu0 %v738
  %v1679 = vpop.f32.mrf.mxu0
  %v1680 = vadd.f32 %v1631, %v1679
  %v1681 = vpop.f32.mrf.mxu0
  %v1682 = vadd.f32 %v1633, %v1681
  %1683 = vmatmul.bf16.gmra.mxu0 %v747
  %v1684 = vpop.f32.mrf.mxu0
  %v1685 = vadd.f32 %v1636, %v1684
  %v1686 = vpop.f32.mrf.mxu0
  %v1687 = vadd.f32 %v1638, %v1686
  %1688 = vmatmul.bf16.gmra.mxu0 %v756
  %v1689 = vpop.f32.mrf.mxu0
  %v1690 = vadd.f32 %v1641, %v1689
  %v1691 = vpop.f32.mrf.mxu0
  %v1692 = vadd.f32 %v1643, %v1691
  %1693 = vmatmul.bf16.gmra.mxu0 %v765
  %v1694 = vpop.f32.mrf.mxu0
  %v1695 = vadd.f32 %v1646, %v1694
  %v1696 = vpop.f32.mrf.mxu0
  %v1697 = vadd.f32 %v1648, %v1696
  %1698 = vmatmul.bf16.gmra.mxu0 %v774
  %v1699 = vpop.f32.mrf.mxu0
  %v1700 = vadd.f32 %v1651, %v1699
  %v1701 = vpop.f32.mrf.mxu0
  %v1702 = vadd.f32 %v1653, %v1701
  %1703 = vmatmul.bf16.gmra.mxu0 %v783
  %v1704 = vpop.f32.mrf.mxu0
  %v1705 = vadd.f32 %v1656, %v1704
  %v1706 = vpop.f32.mrf.mxu0
  %v1707 = vadd.f32 %v1658, %v1706
  %1708 = vmatmul.bf16.gmra.mxu0 %v792
  %v1709 = vpop.f32.mrf.mxu0
  %v1710 = vadd.f32 %v1661, %v1709
  %v1711 = vpop.f32.mrf.mxu0
  %v1712 = vadd.f32 %v1663, %v1711
  %1713 = vdwg.mxu0
  %1714 = vmatpush.bf16.msra.mxu0 %v1290
  %1715 = vmatpush.bf16.msra.mxu0 %v1289
  %1716 = vmatpush.bf16.msra.mxu0 %v1288
  %1717 = vmatpush.bf16.msra.mxu0 %v1287
  %1718 = vmatpush.bf16.msra.mxu0 %v1286
  %1719 = vmatpush.bf16.msra.mxu0 %v1285
  %1720 = vmatpush.bf16.msra.mxu0 %v1284
  %1721 = vmatpush.bf16.msra.mxu0 %v1283
  %1722 = vmatmul.bf16.gmra.mxu0 %v730
  %v1723 = vpop.f32.mrf.mxu0
  %v1724 = vadd.f32 %v1675, %v1723
  %v1725 = vpop.f32.mrf.mxu0
  %v1726 = vadd.f32 %v1677, %v1725
  %1727 = vmatmul.bf16.gmra.mxu0 %v739
  %v1728 = vpop.f32.mrf.mxu0
  %v1729 = vadd.f32 %v1680, %v1728
  %v1730 = vpop.f32.mrf.mxu0
  %v1731 = vadd.f32 %v1682, %v1730
  %1732 = vmatmul.bf16.gmra.mxu0 %v748
  %v1733 = vpop.f32.mrf.mxu0
  %v1734 = vadd.f32 %v1685, %v1733
  %v1735 = vpop.f32.mrf.mxu0
  %v1736 = vadd.f32 %v1687, %v1735
  %1737 = vmatmul.bf16.gmra.mxu0 %v757
  %v1738 = vpop.f32.mrf.mxu0
  %v1739 = vadd.f32 %v1690, %v1738
  %v1740 = vpop.f32.mrf.mxu0
  %v1741 = vadd.f32 %v1692, %v1740
  %1742 = vmatmul.bf16.gmra.mxu0 %v766
  %v1743 = vpop.f32.mrf.mxu0
  %v1744 = vadd.f32 %v1695, %v1743
  %v1745 = vpop.f32.mrf.mxu0
  %v1746 = vadd.f32 %v1697, %v1745
  %1747 = vmatmul.bf16.gmra.mxu0 %v775
  %v1748 = vpop.f32.mrf.mxu0
  %v1749 = vadd.f32 %v1700, %v1748
  %v1750 = vpop.f32.mrf.mxu0
  %v1751 = vadd.f32 %v1702, %v1750
  %1752 = vmatmul.bf16.gmra.mxu0 %v784
  %v1753 = vpop.f32.mrf.mxu0
  %v1754 = vadd.f32 %v1705, %v1753
  %v1755 = vpop.f32.mrf.mxu0
  %v1756 = vadd.f32 %v1707, %v1755
  %1757 = vmatmul.bf16.gmra.mxu0 %v793
  %v1758 = vpop.f32.mrf.mxu0
  %v1759 = vadd.f32 %v1710, %v1758
  %v1760 = vpop.f32.mrf.mxu0
  %v1761 = vadd.f32 %v1712, %v1760
  %1762 = vdwg.mxu0
  %1763 = vmatpush.bf16.msra.mxu0 %v1298
  %1764 = vmatpush.bf16.msra.mxu0 %v1297
  %1765 = vmatpush.bf16.msra.mxu0 %v1296
  %1766 = vmatpush.bf16.msra.mxu0 %v1295
  %1767 = vmatpush.bf16.msra.mxu0 %v1294
  %1768 = vmatpush.bf16.msra.mxu0 %v1293
  %1769 = vmatpush.bf16.msra.mxu0 %v1292
  %1770 = vmatpush.bf16.msra.mxu0 %v1291
  %1771 = vmatmul.bf16.gmra.mxu0 %v731
  %v1772 = vpop.f32.mrf.mxu0
  %v1773 = vadd.f32 %v1724, %v1772
  %v1774 = vpop.f32.mrf.mxu0
  %v1775 = vadd.f32 %v1726, %v1774
  %1776 = vmatmul.bf16.gmra.mxu0 %v740
  %v1777 = vpop.f32.mrf.mxu0
  %v1778 = vadd.f32 %v1729, %v1777
  %v1779 = vpop.f32.mrf.mxu0
  %v1780 = vadd.f32 %v1731, %v1779
  %1781 = vmatmul.bf16.gmra.mxu0 %v749
  %v1782 = vpop.f32.mrf.mxu0
  %v1783 = vadd.f32 %v1734, %v1782
  %v1784 = vpop.f32.mrf.mxu0
  %v1785 = vadd.f32 %v1736, %v1784
  %1786 = vmatmul.bf16.gmra.mxu0 %v758
  %v1787 = vpop.f32.mrf.mxu0
  %v1788 = vadd.f32 %v1739, %v1787
  %v1789 = vpop.f32.mrf.mxu0
  %v1790 = vadd.f32 %v1741, %v1789
  %1791 = vmatmul.bf16.gmra.mxu0 %v767
  %v1792 = vpop.f32.mrf.mxu0
  %v1793 = vadd.f32 %v1744, %v1792
  %v1794 = vpop.f32.mrf.mxu0
  %v1795 = vadd.f32 %v1746, %v1794
  %1796 = vmatmul.bf16.gmra.mxu0 %v776
  %v1797 = vpop.f32.mrf.mxu0
  %v1798 = vadd.f32 %v1749, %v1797
  %v1799 = vpop.f32.mrf.mxu0
  %v1800 = vadd.f32 %v1751, %v1799
  %1801 = vmatmul.bf16.gmra.mxu0 %v785
  %v1802 = vpop.f32.mrf.mxu0
  %v1803 = vadd.f32 %v1754, %v1802
  %v1804 = vpop.f32.mrf.mxu0
  %v1805 = vadd.f32 %v1756, %v1804
  %1806 = vmatmul.bf16.gmra.mxu0 %v794
  %v1807 = vpop.f32.mrf.mxu0
  %v1808 = vadd.f32 %v1759, %v1807
  %v1809 = vpop.f32.mrf.mxu0
  %v1810 = vadd.f32 %v1761, %v1809
  %1811 = vdwg.mxu0
  %v1812 = vld [vmem:[%s4] sm:$0x1]
  %v1814 = vperm.slane %v1812, 0
  %v1816 = vmul.f32 %v1773, %v1814
  %v1817 = vmul.f32 %v1775, %v1814
  %v1818 = vmul.f32 %v1778, %v1814
  %v1819 = vmul.f32 %v1780, %v1814
  %v1820 = vmul.f32 %v1783, %v1814
  %v1821 = vmul.f32 %v1785, %v1814
  %v1822 = vmul.f32 %v1788, %v1814
  %v1823 = vmul.f32 %v1790, %v1814
  %v1824 = vmul.f32 %v1793, %v1814
  %v1825 = vmul.f32 %v1795, %v1814
  %v1826 = vmul.f32 %v1798, %v1814
  %v1827 = vmul.f32 %v1800, %v1814
  %v1828 = vmul.f32 %v1803, %v1814
  %v1829 = vmul.f32 %v1805, %v1814
  %v1830 = vmul.f32 %v1808, %v1814
  %v1831 = vmul.f32 %v1810, %v1814
  %v1832 = vld [vmem:[%s5] sm:$0x1]
  %v1834 = vperm.slane %v1832, 0
  %v1836 = vadd.f32 %v1816, %v1834
  %v1837 = vadd.f32 %v1817, %v1834
  %v1838 = vadd.f32 %v1818, %v1834
  %v1839 = vadd.f32 %v1819, %v1834
  %v1840 = vadd.f32 %v1820, %v1834
  %v1841 = vadd.f32 %v1821, %v1834
  %v1842 = vadd.f32 %v1822, %v1834
  %v1843 = vadd.f32 %v1823, %v1834
  %v1844 = vadd.f32 %v1824, %v1834
  %v1845 = vadd.f32 %v1825, %v1834
  %v1846 = vadd.f32 %v1826, %v1834
  %v1847 = vadd.f32 %v1827, %v1834
  %v1848 = vadd.f32 %v1828, %v1834
  %v1849 = vadd.f32 %v1829, %v1834
  %v1850 = vadd.f32 %v1830, %v1834
  %v1851 = vadd.f32 %v1831, %v1834
  %v1852 = vmax.f32 %v1836, 0.0
  %v1853 = vmax.f32 %v1837, 0.0
  %v1854 = vmax.f32 %v1838, 0.0
  %v1855 = vmax.f32 %v1839, 0.0
  %v1856 = vmax.f32 %v1840, 0.0
  %v1857 = vmax.f32 %v1841, 0.0
  %v1858 = vmax.f32 %v1842, 0.0
  %v1859 = vmax.f32 %v1843, 0.0
  %v1860 = vmax.f32 %v1844, 0.0
  %v1861 = vmax.f32 %v1845, 0.0
  %v1862 = vmax.f32 %v1846, 0.0
  %v1863 = vmax.f32 %v1847, 0.0
  %v1864 = vmax.f32 %v1848, 0.0
  %v1865 = vmax.f32 %v1849, 0.0
  %v1866 = vmax.f32 %v1850, 0.0
  %v1867 = vmax.f32 %v1851, 0.0
  %v1868 = vpack.c.bf16 %v1852, %v1852
  %v1869 = vpack.c.bf16 %v1853, %v1853
  %v1870 = vpack.c.bf16 %v1854, %v1854
  %v1871 = vpack.c.bf16 %v1855, %v1855
  %v1872 = vpack.c.bf16 %v1856, %v1856
  %v1873 = vpack.c.bf16 %v1857, %v1857
  %v1874 = vpack.c.bf16 %v1858, %v1858
  %v1875 = vpack.c.bf16 %v1859, %v1859
  %v1876 = vpack.c.bf16 %v1860, %v1860
  %v1877 = vpack.c.bf16 %v1861, %v1861
  %v1878 = vpack.c.bf16 %v1862, %v1862
  %v1879 = vpack.c.bf16 %v1863, %v1863
  %v1880 = vpack.c.bf16 %v1864, %v1864
  %v1881 = vpack.c.bf16 %v1865, %v1865
  %v1882 = vpack.c.bf16 %v1866, %v1866
  %v1883 = vpack.c.bf16 %v1867, %v1867
  %1884 = vst [vmem:[%s6] sm:$0xf] %v1868
  %1885 = vst [vmem:[%s6 + $0x4] sm:$0xf] %v1869
  %1886 = vst [vmem:[%s6 + $0x8] sm:$0xf] %v1870
  %1887 = vst [vmem:[%s6 + $0xc] sm:$0xf] %v1871
  %1888 = vst [vmem:[%s6 + $0x10] sm:$0xf] %v1872
  %1889 = vst [vmem:[%s6 + $0x14] sm:$0xf] %v1873
  %1890 = vst [vmem:[%s6 + $0x18] sm:$0xf] %v1874
  %1891 = vst [vmem:[%s6 + $0x1c] sm:$0xf] %v1875
  %1892 = vst [vmem:[%s6 + $0x20] sm:$0xf] %v1876
  %1893 = vst [vmem:[%s6 + $0x24] sm:$0xf] %v1877
  %1894 = vst [vmem:[%s6 + $0x28] sm:$0xf] %v1878
  %1895 = vst [vmem:[%s6 + $0x2c] sm:$0xf] %v1879
  %1896 = vst [vmem:[%s6 + $0x30] sm:$0xf] %v1880
  %1897 = vst [vmem:[%s6 + $0x34] sm:$0xf] %v1881
  %1898 = vst [vmem:[%s6 + $0x38] sm:$0xf] %v1882
  %1899 = vst [vmem:[%s6 + $0x3c] sm:$0xf] %v1883
  // Predicated region
  $region26: #{network_block_forward.5} parent=0 // pred_check
    _
  $region27: #{network_block_forward.5} parent=0 // pred_check_branch
    %1901 = sbr.rel (0) target = $region29
  $region28: #{network_block_forward.5} parent=0 // pred_region
    _
  $region29: #{network_block_forward.5} parent=0 // pred_fallthru
    _
  // Predicated region
  $region30: #{network_block_forward.5} parent=0 // pred_check
    _
  $region31: #{network_block_forward.5} parent=0 // pred_check_branch
    %1903 = sbr.rel (0) target = $region33
  $region32: #{network_block_forward.5} parent=0 // pred_region
    _
  $region33: #{network_block_forward.5} parent=0 // pred_fallthru
    _

// kernel: network_block_forward.7
$region0: #{network_block_forward.7}
  #allocation0 [shape = 'u32[]', space=smem, size = 0x4, offset = 0x4, fixed_abs, tag = 'smem constant byte address 0x4 - core index']
  #allocation1 [shape = 'u32[72,128]{1,0:T(1,128)}', space=vmem, size = 0x9000, scoped, tag = 'internal scratch']
  %s0 = inlined_call_operand.vmem [shape: bf16[128,1152], index: 0, kind: input, shape index: {}]
  %s1 = inlined_call_operand.vmem [shape: bf16[1152,128], index: 1, kind: input, shape index: {}]
  %s2 = inlined_call_operand.vmem [shape: bf16[128,128], index: 2, kind: input, shape index: {}]
  %s3 = inlined_call_operand.vmem [shape: bf16[128,128], index: 3, kind: output, shape index: {}]
  %s4 = sld [smem:[#allocation0]]
  $region22: #{network_block_forward.7} parent=0
    _
  %s6 = ssub.s32 1, %s4
  %s7 = scalar_select 0, %s6, %s4
  // Predicated region
  $region2: #{network_block_forward.7} parent=0 // pred_check
    _
  $region3: #{network_block_forward.7} parent=0 // pred_check_branch
    %9 = sbr.rel (0) target = $region5
  $region4: #{network_block_forward.7} parent=0 // pred_region
    _
  $region5: #{network_block_forward.7} parent=0 // pred_fallthru
    _
  // Predicated region
  $region6: #{network_block_forward.7} parent=0 // pred_check
    _
  $region7: #{network_block_forward.7} parent=0 // pred_check_branch
    %11 = sbr.rel (0) target = $region9
  $region8: #{network_block_forward.7} parent=0 // pred_region
    _
  $region9: #{network_block_forward.7} parent=0 // pred_fallthru
    _
  // Predicated region
  $region10: #{network_block_forward.7} parent=0 // pred_check
    _
  $region11: #{network_block_forward.7} parent=0 // pred_check_branch
    %13 = sbr.rel (0) target = $region13
  $region12: #{network_block_forward.7} parent=0 // pred_region
    _
  $region13: #{network_block_forward.7} parent=0 // pred_fallthru
    _
  %v14 = vld [vmem:[%s0] sm:$0xff]
  %v15 = vld [vmem:[%s0 + $0x8] sm:$0xff]
  %v16 = vld [vmem:[%s0 + $0x10] sm:$0xff]
  %v17 = vld [vmem:[%s0 + $0x18] sm:$0xff]
  %v18 = vld [vmem:[%s0 + $0x20] sm:$0xf]
  %v19 = vld [vmem:[%s0 + $0x24] sm:$0xff]
  %v20 = vld [vmem:[%s0 + $0x2c] sm:$0xff]
  %v21 = vld [vmem:[%s0 + $0x34] sm:$0xff]
  %v22 = vld [vmem:[%s0 + $0x3c] sm:$0xff]
  %v23 = vld [vmem:[%s0 + $0x44] sm:$0xf]
  %v24 = vld [vmem:[%s0 + $0x48] sm:$0xff]
  %v25 = vld [vmem:[%s0 + $0x50] sm:$0xff]
  %v26 = vld [vmem:[%s0 + $0x58] sm:$0xff]
  %v27 = vld [vmem:[%s0 + $0x60] sm:$0xff]
  %v28 = vld [vmem:[%s0 + $0x68] sm:$0xf]
  %v29 = vld [vmem:[%s0 + $0x6c] sm:$0xff]
  %v30 = vld [vmem:[%s0 + $0x74] sm:$0xff]
  %v31 = vld [vmem:[%s0 + $0x7c] sm:$0xff]
  %v32 = vld [vmem:[%s0 + $0x84] sm:$0xff]
  %v33 = vld [vmem:[%s0 + $0x8c] sm:$0xf]
  %v34 = vld [vmem:[%s0 + $0x90] sm:$0xff]
  %v35 = vld [vmem:[%s0 + $0x98] sm:$0xff]
  %v36 = vld [vmem:[%s0 + $0xa0] sm:$0xff]
  %v37 = vld [vmem:[%s0 + $0xa8] sm:$0xff]
  %v38 = vld [vmem:[%s0 + $0xb0] sm:$0xf]
  %v39 = vld [vmem:[%s0 + $0xb4] sm:$0xff]
  %v40 = vld [vmem:[%s0 + $0xbc] sm:$0xff]
  %v41 = vld [vmem:[%s0 + $0xc4] sm:$0xff]
  %v42 = vld [vmem:[%s0 + $0xcc] sm:$0xff]
  %v43 = vld [vmem:[%s0 + $0xd4] sm:$0xf]
  %v44 = vld [vmem:[%s0 + $0xd8] sm:$0xff]
  %v45 = vld [vmem:[%s0 + $0xe0] sm:$0xff]
  %v46 = vld [vmem:[%s0 + $0xe8] sm:$0xff]
  %v47 = vld [vmem:[%s0 + $0xf0] sm:$0xff]
  %v48 = vld [vmem:[%s0 + $0xf8] sm:$0xf]
  %v49 = vld [vmem:[%s0 + $0xfc] sm:$0xff]
  %v50 = vld [vmem:[%s0 + $0x104] sm:$0xff]
  %v51 = vld [vmem:[%s0 + $0x10c] sm:$0xff]
  %v52 = vld [vmem:[%s0 + $0x114] sm:$0xff]
  %v53 = vld [vmem:[%s0 + $0x11c] sm:$0xf]
  %v54 = vld [vmem:[%s0 + $0x120] sm:$0xff]
  %v55 = vld [vmem:[%s0 + $0x128] sm:$0xff]
  %v56 = vld [vmem:[%s0 + $0x130] sm:$0xff]
  %v57 = vld [vmem:[%s0 + $0x138] sm:$0xff]
  %v58 = vld [vmem:[%s0 + $0x140] sm:$0xf]
  %v59 = vld [vmem:[%s0 + $0x144] sm:$0xff]
  %v60 = vld [vmem:[%s0 + $0x14c] sm:$0xff]
  %v61 = vld [vmem:[%s0 + $0x154] sm:$0xff]
  %v62 = vld [vmem:[%s0 + $0x15c] sm:$0xff]
  %v63 = vld [vmem:[%s0 + $0x164] sm:$0xf]
  %v64 = vld [vmem:[%s0 + $0x168] sm:$0xff]
  %v65 = vld [vmem:[%s0 + $0x170] sm:$0xff]
  %v66 = vld [vmem:[%s0 + $0x178] sm:$0xff]
  %v67 = vld [vmem:[%s0 + $0x180] sm:$0xff]
  %v68 = vld [vmem:[%s0 + $0x188] sm:$0xf]
  %v69 = vld [vmem:[%s0 + $0x18c] sm:$0xff]
  %v70 = vld [vmem:[%s0 + $0x194] sm:$0xff]
  %v71 = vld [vmem:[%s0 + $0x19c] sm:$0xff]
  %v72 = vld [vmem:[%s0 + $0x1a4] sm:$0xff]
  %v73 = vld [vmem:[%s0 + $0x1ac] sm:$0xf]
  %v74 = vld [vmem:[%s0 + $0x1b0] sm:$0xff]
  %v75 = vld [vmem:[%s0 + $0x1b8] sm:$0xff]
  %v76 = vld [vmem:[%s0 + $0x1c0] sm:$0xff]
  %v77 = vld [vmem:[%s0 + $0x1c8] sm:$0xff]
  %v78 = vld [vmem:[%s0 + $0x1d0] sm:$0xf]
  %v79 = vld [vmem:[%s0 + $0x1d4] sm:$0xff]
  %v80 = vld [vmem:[%s0 + $0x1dc] sm:$0xff]
  %v81 = vld [vmem:[%s0 + $0x1e4] sm:$0xff]
  %v82 = vld [vmem:[%s0 + $0x1ec] sm:$0xff]
  %v83 = vld [vmem:[%s0 + $0x1f4] sm:$0xf]
  %v84 = vld [vmem:[%s0 + $0x1f8] sm:$0xff]
  %v85 = vld [vmem:[%s0 + $0x200] sm:$0xff]
  %v86 = vld [vmem:[%s0 + $0x208] sm:$0xff]
  %v87 = vld [vmem:[%s0 + $0x210] sm:$0xff]
  %v88 = vld [vmem:[%s0 + $0x218] sm:$0xf]
  %v89 = vld [vmem:[%s0 + $0x21c] sm:$0xff]
  %v90 = vld [vmem:[%s0 + $0x224] sm:$0xff]
  %v91 = vld [vmem:[%s0 + $0x22c] sm:$0xff]
  %v92 = vld [vmem:[%s0 + $0x234] sm:$0xff]
  %v93 = vld [vmem:[%s0 + $0x23c] sm:$0xf]
  %v94 = vld [vmem:[%s1] sm:$0xf]
  %v95 = vld [vmem:[%s1 + $0x4] sm:$0xf]
  %v96 = vld [vmem:[%s1 + $0x8] sm:$0xf]
  %v97 = vld [vmem:[%s1 + $0xc] sm:$0xf]
  %v98 = vld [vmem:[%s1 + $0x10] sm:$0xf]
  %v99 = vld [vmem:[%s1 + $0x14] sm:$0xf]
  %v100 = vld [vmem:[%s1 + $0x18] sm:$0xf]
  %v101 = vld [vmem:[%s1 + $0x1c] sm:$0xf]
  %v102 = vld [vmem:[%s1 + $0x20] sm:$0xf]
  %v103 = vld [vmem:[%s1 + $0x24] sm:$0xf]
  %v104 = vld [vmem:[%s1 + $0x28] sm:$0xf]
  %v105 = vld [vmem:[%s1 + $0x2c] sm:$0xf]
  %v106 = vld [vmem:[%s1 + $0x30] sm:$0xf]
  %v107 = vld [vmem:[%s1 + $0x34] sm:$0xf]
  %v108 = vld [vmem:[%s1 + $0x38] sm:$0xf]
  %v109 = vld [vmem:[%s1 + $0x3c] sm:$0xf]
  %v110 = vld [vmem:[%s1 + $0x40] sm:$0xf]
  %v111 = vld [vmem:[%s1 + $0x44] sm:$0xf]
  %v112 = vld [vmem:[%s1 + $0x48] sm:$0xf]
  %v113 = vld [vmem:[%s1 + $0x4c] sm:$0xf]
  %v114 = vld [vmem:[%s1 + $0x50] sm:$0xf]
  %v115 = vld [vmem:[%s1 + $0x54] sm:$0xf]
  %v116 = vld [vmem:[%s1 + $0x58] sm:$0xf]
  %v117 = vld [vmem:[%s1 + $0x5c] sm:$0xf]
  %v118 = vld [vmem:[%s1 + $0x60] sm:$0xf]
  %v119 = vld [vmem:[%s1 + $0x64] sm:$0xf]
  %v120 = vld [vmem:[%s1 + $0x68] sm:$0xf]
  %v121 = vld [vmem:[%s1 + $0x6c] sm:$0xf]
  %v122 = vld [vmem:[%s1 + $0x70] sm:$0xf]
  %v123 = vld [vmem:[%s1 + $0x74] sm:$0xf]
  %v124 = vld [vmem:[%s1 + $0x78] sm:$0xf]
  %v125 = vld [vmem:[%s1 + $0x7c] sm:$0xf]
  %v126 = vld [vmem:[%s1 + $0x80] sm:$0xf]
  %v127 = vld [vmem:[%s1 + $0x84] sm:$0xf]
  %v128 = vld [vmem:[%s1 + $0x88] sm:$0xf]
  %v129 = vld [vmem:[%s1 + $0x8c] sm:$0xf]
  %v130 = vld [vmem:[%s1 + $0x90] sm:$0xf]
  %v131 = vld [vmem:[%s1 + $0x94] sm:$0xf]
  %v132 = vld [vmem:[%s1 + $0x98] sm:$0xf]
  %v133 = vld [vmem:[%s1 + $0x9c] sm:$0xf]
  %v134 = vld [vmem:[%s1 + $0xa0] sm:$0xf]
  %v135 = vld [vmem:[%s1 + $0xa4] sm:$0xf]
  %v136 = vld [vmem:[%s1 + $0xa8] sm:$0xf]
  %v137 = vld [vmem:[%s1 + $0xac] sm:$0xf]
  %v138 = vld [vmem:[%s1 + $0xb0] sm:$0xf]
  %v139 = vld [vmem:[%s1 + $0xb4] sm:$0xf]
  %v140 = vld [vmem:[%s1 + $0xb8] sm:$0xf]
  %v141 = vld [vmem:[%s1 + $0xbc] sm:$0xf]
  %v142 = vld [vmem:[%s1 + $0xc0] sm:$0xf]
  %v143 = vld [vmem:[%s1 + $0xc4] sm:$0xf]
  %v144 = vld [vmem:[%s1 + $0xc8] sm:$0xf]
  %v145 = vld [vmem:[%s1 + $0xcc] sm:$0xf]
  %v146 = vld [vmem:[%s1 + $0xd0] sm:$0xf]
  %v147 = vld [vmem:[%s1 + $0xd4] sm:$0xf]
  %v148 = vld [vmem:[%s1 + $0xd8] sm:$0xf]
  %v149 = vld [vmem:[%s1 + $0xdc] sm:$0xf]
  %v150 = vld [vmem:[%s1 + $0xe0] sm:$0xf]
  %v151 = vld [vmem:[%s1 + $0xe4] sm:$0xf]
  %v152 = vld [vmem:[%s1 + $0xe8] sm:$0xf]
  %v153 = vld [vmem:[%s1 + $0xec] sm:$0xf]
  %v154 = vld [vmem:[%s1 + $0xf0] sm:$0xf]
  %v155 = vld [vmem:[%s1 + $0xf4] sm:$0xf]
  %v156 = vld [vmem:[%s1 + $0xf8] sm:$0xf]
  %v157 = vld [vmem:[%s1 + $0xfc] sm:$0xf]
  %v158 = vld [vmem:[%s1 + $0x100] sm:$0xf]
  %v159 = vld [vmem:[%s1 + $0x104] sm:$0xf]
  %v160 = vld [vmem:[%s1 + $0x108] sm:$0xf]
  %v161 = vld [vmem:[%s1 + $0x10c] sm:$0xf]
  %v162 = vld [vmem:[%s1 + $0x110] sm:$0xf]
  %v163 = vld [vmem:[%s1 + $0x114] sm:$0xf]
  %v164 = vld [vmem:[%s1 + $0x118] sm:$0xf]
  %v165 = vld [vmem:[%s1 + $0x11c] sm:$0xf]
  %v166 = vld [vmem:[%s1 + $0x120] sm:$0xf]
  %v167 = vld [vmem:[%s1 + $0x124] sm:$0xf]
  %v168 = vld [vmem:[%s1 + $0x128] sm:$0xf]
  %v169 = vld [vmem:[%s1 + $0x12c] sm:$0xf]
  %v170 = vld [vmem:[%s1 + $0x130] sm:$0xf]
  %v171 = vld [vmem:[%s1 + $0x134] sm:$0xf]
  %v172 = vld [vmem:[%s1 + $0x138] sm:$0xf]
  %v173 = vld [vmem:[%s1 + $0x13c] sm:$0xf]
  %v174 = vld [vmem:[%s1 + $0x140] sm:$0xf]
  %v175 = vld [vmem:[%s1 + $0x144] sm:$0xf]
  %v176 = vld [vmem:[%s1 + $0x148] sm:$0xf]
  %v177 = vld [vmem:[%s1 + $0x14c] sm:$0xf]
  %v178 = vld [vmem:[%s1 + $0x150] sm:$0xf]
  %v179 = vld [vmem:[%s1 + $0x154] sm:$0xf]
  %v180 = vld [vmem:[%s1 + $0x158] sm:$0xf]
  %v181 = vld [vmem:[%s1 + $0x15c] sm:$0xf]
  %v182 = vld [vmem:[%s1 + $0x160] sm:$0xf]
  %v183 = vld [vmem:[%s1 + $0x164] sm:$0xf]
  %v184 = vld [vmem:[%s1 + $0x168] sm:$0xf]
  %v185 = vld [vmem:[%s1 + $0x16c] sm:$0xf]
  %v186 = vld [vmem:[%s1 + $0x170] sm:$0xf]
  %v187 = vld [vmem:[%s1 + $0x174] sm:$0xf]
  %v188 = vld [vmem:[%s1 + $0x178] sm:$0xf]
  %v189 = vld [vmem:[%s1 + $0x17c] sm:$0xf]
  %v190 = vld [vmem:[%s1 + $0x180] sm:$0xf]
  %v191 = vld [vmem:[%s1 + $0x184] sm:$0xf]
  %v192 = vld [vmem:[%s1 + $0x188] sm:$0xf]
  %v193 = vld [vmem:[%s1 + $0x18c] sm:$0xf]
  %v194 = vld [vmem:[%s1 + $0x190] sm:$0xf]
  %v195 = vld [vmem:[%s1 + $0x194] sm:$0xf]
  %v196 = vld [vmem:[%s1 + $0x198] sm:$0xf]
  %v197 = vld [vmem:[%s1 + $0x19c] sm:$0xf]
  %v198 = vld [vmem:[%s1 + $0x1a0] sm:$0xf]
  %v199 = vld [vmem:[%s1 + $0x1a4] sm:$0xf]
  %v200 = vld [vmem:[%s1 + $0x1a8] sm:$0xf]
  %v201 = vld [vmem:[%s1 + $0x1ac] sm:$0xf]
  %v202 = vld [vmem:[%s1 + $0x1b0] sm:$0xf]
  %v203 = vld [vmem:[%s1 + $0x1b4] sm:$0xf]
  %v204 = vld [vmem:[%s1 + $0x1b8] sm:$0xf]
  %v205 = vld [vmem:[%s1 + $0x1bc] sm:$0xf]
  %v206 = vld [vmem:[%s1 + $0x1c0] sm:$0xf]
  %v207 = vld [vmem:[%s1 + $0x1c4] sm:$0xf]
  %v208 = vld [vmem:[%s1 + $0x1c8] sm:$0xf]
  %v209 = vld [vmem:[%s1 + $0x1cc] sm:$0xf]
  %v210 = vld [vmem:[%s1 + $0x1d0] sm:$0xf]
  %v211 = vld [vmem:[%s1 + $0x1d4] sm:$0xf]
  %v212 = vld [vmem:[%s1 + $0x1d8] sm:$0xf]
  %v213 = vld [vmem:[%s1 + $0x1dc] sm:$0xf]
  %v214 = vld [vmem:[%s1 + $0x1e0] sm:$0xf]
  %v215 = vld [vmem:[%s1 + $0x1e4] sm:$0xf]
  %v216 = vld [vmem:[%s1 + $0x1e8] sm:$0xf]
  %v217 = vld [vmem:[%s1 + $0x1ec] sm:$0xf]
  %v218 = vld [vmem:[%s1 + $0x1f0] sm:$0xf]
  %v219 = vld [vmem:[%s1 + $0x1f4] sm:$0xf]
  %v220 = vld [vmem:[%s1 + $0x1f8] sm:$0xf]
  %v221 = vld [vmem:[%s1 + $0x1fc] sm:$0xf]
  %v222 = vld [vmem:[%s1 + $0x200] sm:$0xf]
  %v223 = vld [vmem:[%s1 + $0x204] sm:$0xf]
  %v224 = vld [vmem:[%s1 + $0x208] sm:$0xf]
  %v225 = vld [vmem:[%s1 + $0x20c] sm:$0xf]
  %v226 = vld [vmem:[%s1 + $0x210] sm:$0xf]
  %v227 = vld [vmem:[%s1 + $0x214] sm:$0xf]
  %v228 = vld [vmem:[%s1 + $0x218] sm:$0xf]
  %v229 = vld [vmem:[%s1 + $0x21c] sm:$0xf]
  %v230 = vld [vmem:[%s1 + $0x220] sm:$0xf]
  %v231 = vld [vmem:[%s1 + $0x224] sm:$0xf]
  %v232 = vld [vmem:[%s1 + $0x228] sm:$0xf]
  %v233 = vld [vmem:[%s1 + $0x22c] sm:$0xf]
  %v234 = vld [vmem:[%s1 + $0x230] sm:$0xf]
  %v235 = vld [vmem:[%s1 + $0x234] sm:$0xf]
  %v236 = vld [vmem:[%s1 + $0x238] sm:$0xf]
  %v237 = vld [vmem:[%s1 + $0x23c] sm:$0xf]
  %v238 = vld [vmem:[%s2] sm:$0xf]
  %v239 = vld [vmem:[%s2 + $0x4] sm:$0xf]
  %v240 = vld [vmem:[%s2 + $0x8] sm:$0xf]
  %v241 = vld [vmem:[%s2 + $0xc] sm:$0xf]
  %v242 = vld [vmem:[%s2 + $0x10] sm:$0xf]
  %v243 = vld [vmem:[%s2 + $0x14] sm:$0xf]
  %v244 = vld [vmem:[%s2 + $0x18] sm:$0xf]
  %v245 = vld [vmem:[%s2 + $0x1c] sm:$0xf]
  %v246 = vld [vmem:[%s2 + $0x20] sm:$0xf]
  %v247 = vld [vmem:[%s2 + $0x24] sm:$0xf]
  %v248 = vld [vmem:[%s2 + $0x28] sm:$0xf]
  %v249 = vld [vmem:[%s2 + $0x2c] sm:$0xf]
  %v250 = vld [vmem:[%s2 + $0x30] sm:$0xf]
  %v251 = vld [vmem:[%s2 + $0x34] sm:$0xf]
  %v252 = vld [vmem:[%s2 + $0x38] sm:$0xf]
  %v253 = vld [vmem:[%s2 + $0x3c] sm:$0xf]
  %v254 = vunpack.c.l.bf16 %v238
  %v255 = vunpack.c.l.bf16 %v239
  %v256 = vunpack.c.l.bf16 %v240
  %v257 = vunpack.c.l.bf16 %v241
  %v258 = vunpack.c.l.bf16 %v242
  %v259 = vunpack.c.l.bf16 %v243
  %v260 = vunpack.c.l.bf16 %v244
  %v261 = vunpack.c.l.bf16 %v245
  %v262 = vunpack.c.l.bf16 %v246
  %v263 = vunpack.c.l.bf16 %v247
  %v264 = vunpack.c.l.bf16 %v248
  %v265 = vunpack.c.l.bf16 %v249
  %v266 = vunpack.c.l.bf16 %v250
  %v267 = vunpack.c.l.bf16 %v251
  %v268 = vunpack.c.l.bf16 %v252
  %v269 = vunpack.c.l.bf16 %v253
  %v350 = vunpack.c.l.b16 %v14
  %v351 = vunpack.c.h.b16 %v14
  %v352 = vunpack.c.l.b16 %v15
  %v353 = vunpack.c.h.b16 %v15
  %v354 = vunpack.c.l.b16 %v16
  %v355 = vunpack.c.h.b16 %v16
  %v356 = vunpack.c.l.b16 %v17
  %v357 = vunpack.c.h.b16 %v17
  %v358 = vunpack.c.l.b16 %v18
  %v359 = vunpack.c.l.b16 %v19
  %v360 = vunpack.c.h.b16 %v19
  %v361 = vunpack.c.l.b16 %v20
  %v362 = vunpack.c.h.b16 %v20
  %v363 = vunpack.c.l.b16 %v21
  %v364 = vunpack.c.h.b16 %v21
  %v365 = vunpack.c.l.b16 %v22
  %v366 = vunpack.c.h.b16 %v22
  %v367 = vunpack.c.l.b16 %v23
  %v368 = vunpack.c.l.b16 %v24
  %v369 = vunpack.c.h.b16 %v24
  %v370 = vunpack.c.l.b16 %v25
  %v371 = vunpack.c.h.b16 %v25
  %v372 = vunpack.c.l.b16 %v26
  %v373 = vunpack.c.h.b16 %v26
  %v374 = vunpack.c.l.b16 %v27
  %v375 = vunpack.c.h.b16 %v27
  %v376 = vunpack.c.l.b16 %v28
  %v377 = vunpack.c.l.b16 %v29
  %v378 = vunpack.c.h.b16 %v29
  %v379 = vunpack.c.l.b16 %v30
  %v380 = vunpack.c.h.b16 %v30
  %v381 = vunpack.c.l.b16 %v31
  %v382 = vunpack.c.h.b16 %v31
  %v383 = vunpack.c.l.b16 %v32
  %v384 = vunpack.c.h.b16 %v32
  %v385 = vunpack.c.l.b16 %v33
  %v386 = vunpack.c.l.b16 %v34
  %v387 = vunpack.c.h.b16 %v34
  %v388 = vunpack.c.l.b16 %v35
  %v389 = vunpack.c.h.b16 %v35
  %v390 = vunpack.c.l.b16 %v36
  %v391 = vunpack.c.h.b16 %v36
  %v392 = vunpack.c.l.b16 %v37
  %v393 = vunpack.c.h.b16 %v37
  %v394 = vunpack.c.l.b16 %v38
  %v395 = vunpack.c.l.b16 %v39
  %v396 = vunpack.c.h.b16 %v39
  %v397 = vunpack.c.l.b16 %v40
  %v398 = vunpack.c.h.b16 %v40
  %v399 = vunpack.c.l.b16 %v41
  %v400 = vunpack.c.h.b16 %v41
  %v401 = vunpack.c.l.b16 %v42
  %v402 = vunpack.c.h.b16 %v42
  %v403 = vunpack.c.l.b16 %v43
  %v404 = vunpack.c.l.b16 %v44
  %v405 = vunpack.c.h.b16 %v44
  %v406 = vunpack.c.l.b16 %v45
  %v407 = vunpack.c.h.b16 %v45
  %v408 = vunpack.c.l.b16 %v46
  %v409 = vunpack.c.h.b16 %v46
  %v410 = vunpack.c.l.b16 %v47
  %v411 = vunpack.c.h.b16 %v47
  %v412 = vunpack.c.l.b16 %v48
  %v413 = vunpack.c.l.b16 %v49
  %v414 = vunpack.c.h.b16 %v49
  %v415 = vunpack.c.l.b16 %v50
  %v416 = vunpack.c.h.b16 %v50
  %v417 = vunpack.c.l.b16 %v51
  %v418 = vunpack.c.h.b16 %v51
  %v419 = vunpack.c.l.b16 %v52
  %v420 = vunpack.c.h.b16 %v52
  %v421 = vunpack.c.l.b16 %v53
  %v422 = vunpack.c.l.b16 %v54
  %v423 = vunpack.c.h.b16 %v54
  %v424 = vunpack.c.l.b16 %v55
  %v425 = vunpack.c.h.b16 %v55
  %v426 = vunpack.c.l.b16 %v56
  %v427 = vunpack.c.h.b16 %v56
  %v428 = vunpack.c.l.b16 %v57
  %v429 = vunpack.c.h.b16 %v57
  %v430 = vunpack.c.l.b16 %v58
  %v431 = vunpack.c.l.b16 %v59
  %v432 = vunpack.c.h.b16 %v59
  %v433 = vunpack.c.l.b16 %v60
  %v434 = vunpack.c.h.b16 %v60
  %v435 = vunpack.c.l.b16 %v61
  %v436 = vunpack.c.h.b16 %v61
  %v437 = vunpack.c.l.b16 %v62
  %v438 = vunpack.c.h.b16 %v62
  %v439 = vunpack.c.l.b16 %v63
  %v440 = vunpack.c.l.b16 %v64
  %v441 = vunpack.c.h.b16 %v64
  %v442 = vunpack.c.l.b16 %v65
  %v443 = vunpack.c.h.b16 %v65
  %v444 = vunpack.c.l.b16 %v66
  %v445 = vunpack.c.h.b16 %v66
  %v446 = vunpack.c.l.b16 %v67
  %v447 = vunpack.c.h.b16 %v67
  %v448 = vunpack.c.l.b16 %v68
  %v449 = vunpack.c.l.b16 %v69
  %v450 = vunpack.c.h.b16 %v69
  %v451 = vunpack.c.l.b16 %v70
  %v452 = vunpack.c.h.b16 %v70
  %v453 = vunpack.c.l.b16 %v71
  %v454 = vunpack.c.h.b16 %v71
  %v455 = vunpack.c.l.b16 %v72
  %v456 = vunpack.c.h.b16 %v72
  %v457 = vunpack.c.l.b16 %v73
  %v458 = vunpack.c.l.b16 %v74
  %v459 = vunpack.c.h.b16 %v74
  %v460 = vunpack.c.l.b16 %v75
  %v461 = vunpack.c.h.b16 %v75
  %v462 = vunpack.c.l.b16 %v76
  %v463 = vunpack.c.h.b16 %v76
  %v464 = vunpack.c.l.b16 %v77
  %v465 = vunpack.c.h.b16 %v77
  %v466 = vunpack.c.l.b16 %v78
  %v467 = vunpack.c.l.b16 %v79
  %v468 = vunpack.c.h.b16 %v79
  %v469 = vunpack.c.l.b16 %v80
  %v470 = vunpack.c.h.b16 %v80
  %v471 = vunpack.c.l.b16 %v81
  %v472 = vunpack.c.h.b16 %v81
  %v473 = vunpack.c.l.b16 %v82
  %v474 = vunpack.c.h.b16 %v82
  %v475 = vunpack.c.l.b16 %v83
  %v476 = vunpack.c.l.b16 %v84
  %v477 = vunpack.c.h.b16 %v84
  %v478 = vunpack.c.l.b16 %v85
  %v479 = vunpack.c.h.b16 %v85
  %v480 = vunpack.c.l.b16 %v86
  %v481 = vunpack.c.h.b16 %v86
  %v482 = vunpack.c.l.b16 %v87
  %v483 = vunpack.c.h.b16 %v87
  %v484 = vunpack.c.l.b16 %v88
  %v485 = vunpack.c.l.b16 %v89
  %v486 = vunpack.c.h.b16 %v89
  %v487 = vunpack.c.l.b16 %v90
  %v488 = vunpack.c.h.b16 %v90
  %v489 = vunpack.c.l.b16 %v91
  %v490 = vunpack.c.h.b16 %v91
  %v491 = vunpack.c.l.b16 %v92
  %v492 = vunpack.c.h.b16 %v92
  %v493 = vunpack.c.l.b16 %v93
  %v494 = vpack.c.b16 %v359, %v350
  %v495 = vpack.c.b16 %v360, %v351
  %v496 = vpack.c.b16 %v361, %v352
  %v497 = vpack.c.b16 %v362, %v353
  %v498 = vpack.c.b16 %v363, %v354
  %v499 = vpack.c.b16 %v364, %v355
  %v500 = vpack.c.b16 %v365, %v356
  %v501 = vpack.c.b16 %v366, %v357
  %v502 = vpack.c.b16 %v367, %v358
  %v503 = vpack.c.b16 %v377, %v368
  %v504 = vpack.c.b16 %v378, %v369
  %v505 = vpack.c.b16 %v379, %v370
  %v506 = vpack.c.b16 %v380, %v371
  %v507 = vpack.c.b16 %v381, %v372
  %v508 = vpack.c.b16 %v382, %v373
  %v509 = vpack.c.b16 %v383, %v374
  %v510 = vpack.c.b16 %v384, %v375
  %v511 = vpack.c.b16 %v385, %v376
  %v512 = vpack.c.b16 %v395, %v386
  %v513 = vpack.c.b16 %v396, %v387
  %v514 = vpack.c.b16 %v397, %v388
  %v515 = vpack.c.b16 %v398, %v389
  %v516 = vpack.c.b16 %v399, %v390
  %v517 = vpack.c.b16 %v400, %v391
  %v518 = vpack.c.b16 %v401, %v392
  %v519 = vpack.c.b16 %v402, %v393
  %v520 = vpack.c.b16 %v403, %v394
  %v521 = vpack.c.b16 %v413, %v404
  %v522 = vpack.c.b16 %v414, %v405
  %v523 = vpack.c.b16 %v415, %v406
  %v524 = vpack.c.b16 %v416, %v407
  %v525 = vpack.c.b16 %v417, %v408
  %v526 = vpack.c.b16 %v418, %v409
  %v527 = vpack.c.b16 %v419, %v410
  %v528 = vpack.c.b16 %v420, %v411
  %v529 = vpack.c.b16 %v421, %v412
  %v530 = vpack.c.b16 %v431, %v422
  %v531 = vpack.c.b16 %v432, %v423
  %v532 = vpack.c.b16 %v433, %v424
  %v533 = vpack.c.b16 %v434, %v425
  %v534 = vpack.c.b16 %v435, %v426
  %v535 = vpack.c.b16 %v436, %v427
  %v536 = vpack.c.b16 %v437, %v428
  %v537 = vpack.c.b16 %v438, %v429
  %v538 = vpack.c.b16 %v439, %v430
  %v539 = vpack.c.b16 %v449, %v440
  %v540 = vpack.c.b16 %v450, %v441
  %v541 = vpack.c.b16 %v451, %v442
  %v542 = vpack.c.b16 %v452, %v443
  %v543 = vpack.c.b16 %v453, %v444
  %v544 = vpack.c.b16 %v454, %v445
  %v545 = vpack.c.b16 %v455, %v446
  %v546 = vpack.c.b16 %v456, %v447
  %v547 = vpack.c.b16 %v457, %v448
  %v548 = vpack.c.b16 %v467, %v458
  %v549 = vpack.c.b16 %v468, %v459
  %v550 = vpack.c.b16 %v469, %v460
  %v551 = vpack.c.b16 %v470, %v461
  %v552 = vpack.c.b16 %v471, %v462
  %v553 = vpack.c.b16 %v472, %v463
  %v554 = vpack.c.b16 %v473, %v464
  %v555 = vpack.c.b16 %v474, %v465
  %v556 = vpack.c.b16 %v475, %v466
  %v557 = vpack.c.b16 %v485, %v476
  %v558 = vpack.c.b16 %v486, %v477
  %v559 = vpack.c.b16 %v487, %v478
  %v560 = vpack.c.b16 %v488, %v479
  %v561 = vpack.c.b16 %v489, %v480
  %v562 = vpack.c.b16 %v490, %v481
  %v563 = vpack.c.b16 %v491, %v482
  %v564 = vpack.c.b16 %v492, %v483
  %v565 = vpack.c.b16 %v493, %v484
  %v782 = vunpack.c.l.b16 %v94
  %v783 = vunpack.c.l.b16 %v95
  %v784 = vunpack.c.l.b16 %v96
  %v785 = vunpack.c.l.b16 %v97
  %v786 = vunpack.c.l.b16 %v98
  %v787 = vunpack.c.l.b16 %v99
  %v788 = vunpack.c.l.b16 %v100
  %v789 = vunpack.c.l.b16 %v101
  %v790 = vunpack.c.l.b16 %v102
  %v791 = vunpack.c.l.b16 %v103
  %v792 = vunpack.c.l.b16 %v104
  %v793 = vunpack.c.l.b16 %v105
  %v794 = vunpack.c.l.b16 %v106
  %v795 = vunpack.c.l.b16 %v107
  %v796 = vunpack.c.l.b16 %v108
  %v797 = vunpack.c.l.b16 %v109
  %v798 = vunpack.c.l.b16 %v110
  %v799 = vunpack.c.l.b16 %v111
  %v800 = vunpack.c.l.b16 %v112
  %v801 = vunpack.c.l.b16 %v113
  %v802 = vunpack.c.l.b16 %v114
  %v803 = vunpack.c.l.b16 %v115
  %v804 = vunpack.c.l.b16 %v116
  %v805 = vunpack.c.l.b16 %v117
  %v806 = vunpack.c.l.b16 %v118
  %v807 = vunpack.c.l.b16 %v119
  %v808 = vunpack.c.l.b16 %v120
  %v809 = vunpack.c.l.b16 %v121
  %v810 = vunpack.c.l.b16 %v122
  %v811 = vunpack.c.l.b16 %v123
  %v812 = vunpack.c.l.b16 %v124
  %v813 = vunpack.c.l.b16 %v125
  %v814 = vunpack.c.l.b16 %v126
  %v815 = vunpack.c.l.b16 %v127
  %v816 = vunpack.c.l.b16 %v128
  %v817 = vunpack.c.l.b16 %v129
  %v818 = vunpack.c.l.b16 %v130
  %v819 = vunpack.c.l.b16 %v131
  %v820 = vunpack.c.l.b16 %v132
  %v821 = vunpack.c.l.b16 %v133
  %v822 = vunpack.c.l.b16 %v134
  %v823 = vunpack.c.l.b16 %v135
  %v824 = vunpack.c.l.b16 %v136
  %v825 = vunpack.c.l.b16 %v137
  %v826 = vunpack.c.l.b16 %v138
  %v827 = vunpack.c.l.b16 %v139
  %v828 = vunpack.c.l.b16 %v140
  %v829 = vunpack.c.l.b16 %v141
  %v830 = vunpack.c.l.b16 %v142
  %v831 = vunpack.c.l.b16 %v143
  %v832 = vunpack.c.l.b16 %v144
  %v833 = vunpack.c.l.b16 %v145
  %v834 = vunpack.c.l.b16 %v146
  %v835 = vunpack.c.l.b16 %v147
  %v836 = vunpack.c.l.b16 %v148
  %v837 = vunpack.c.l.b16 %v149
  %v838 = vunpack.c.l.b16 %v150
  %v839 = vunpack.c.l.b16 %v151
  %v840 = vunpack.c.l.b16 %v152
  %v841 = vunpack.c.l.b16 %v153
  %v842 = vunpack.c.l.b16 %v154
  %v843 = vunpack.c.l.b16 %v155
  %v844 = vunpack.c.l.b16 %v156
  %v845 = vunpack.c.l.b16 %v157
  %v846 = vunpack.c.l.b16 %v158
  %v847 = vunpack.c.l.b16 %v159
  %v848 = vunpack.c.l.b16 %v160
  %v849 = vunpack.c.l.b16 %v161
  %v850 = vunpack.c.l.b16 %v162
  %v851 = vunpack.c.l.b16 %v163
  %v852 = vunpack.c.l.b16 %v164
  %v853 = vunpack.c.l.b16 %v165
  %v854 = vunpack.c.l.b16 %v166
  %v855 = vunpack.c.l.b16 %v167
  %v856 = vunpack.c.l.b16 %v168
  %v857 = vunpack.c.l.b16 %v169
  %v858 = vunpack.c.l.b16 %v170
  %v859 = vunpack.c.l.b16 %v171
  %v860 = vunpack.c.l.b16 %v172
  %v861 = vunpack.c.l.b16 %v173
  %v862 = vunpack.c.l.b16 %v174
  %v863 = vunpack.c.l.b16 %v175
  %v864 = vunpack.c.l.b16 %v176
  %v865 = vunpack.c.l.b16 %v177
  %v866 = vunpack.c.l.b16 %v178
  %v867 = vunpack.c.l.b16 %v179
  %v868 = vunpack.c.l.b16 %v180
  %v869 = vunpack.c.l.b16 %v181
  %v870 = vunpack.c.l.b16 %v182
  %v871 = vunpack.c.l.b16 %v183
  %v872 = vunpack.c.l.b16 %v184
  %v873 = vunpack.c.l.b16 %v185
  %v874 = vunpack.c.l.b16 %v186
  %v875 = vunpack.c.l.b16 %v187
  %v876 = vunpack.c.l.b16 %v188
  %v877 = vunpack.c.l.b16 %v189
  %v878 = vunpack.c.l.b16 %v190
  %v879 = vunpack.c.l.b16 %v191
  %v880 = vunpack.c.l.b16 %v192
  %v881 = vunpack.c.l.b16 %v193
  %v882 = vunpack.c.l.b16 %v194
  %v883 = vunpack.c.l.b16 %v195
  %v884 = vunpack.c.l.b16 %v196
  %v885 = vunpack.c.l.b16 %v197
  %v886 = vunpack.c.l.b16 %v198
  %v887 = vunpack.c.l.b16 %v199
  %v888 = vunpack.c.l.b16 %v200
  %v889 = vunpack.c.l.b16 %v201
  %v890 = vunpack.c.l.b16 %v202
  %v891 = vunpack.c.l.b16 %v203
  %v892 = vunpack.c.l.b16 %v204
  %v893 = vunpack.c.l.b16 %v205
  %v894 = vunpack.c.l.b16 %v206
  %v895 = vunpack.c.l.b16 %v207
  %v896 = vunpack.c.l.b16 %v208
  %v897 = vunpack.c.l.b16 %v209
  %v898 = vunpack.c.l.b16 %v210
  %v899 = vunpack.c.l.b16 %v211
  %v900 = vunpack.c.l.b16 %v212
  %v901 = vunpack.c.l.b16 %v213
  %v902 = vunpack.c.l.b16 %v214
  %v903 = vunpack.c.l.b16 %v215
  %v904 = vunpack.c.l.b16 %v216
  %v905 = vunpack.c.l.b16 %v217
  %v906 = vunpack.c.l.b16 %v218
  %v907 = vunpack.c.l.b16 %v219
  %v908 = vunpack.c.l.b16 %v220
  %v909 = vunpack.c.l.b16 %v221
  %v910 = vunpack.c.l.b16 %v222
  %v911 = vunpack.c.l.b16 %v223
  %v912 = vunpack.c.l.b16 %v224
  %v913 = vunpack.c.l.b16 %v225
  %v914 = vunpack.c.l.b16 %v226
  %v915 = vunpack.c.l.b16 %v227
  %v916 = vunpack.c.l.b16 %v228
  %v917 = vunpack.c.l.b16 %v229
  %v918 = vunpack.c.l.b16 %v230
  %v919 = vunpack.c.l.b16 %v231
  %v920 = vunpack.c.l.b16 %v232
  %v921 = vunpack.c.l.b16 %v233
  %v922 = vunpack.c.l.b16 %v234
  %v923 = vunpack.c.l.b16 %v235
  %v924 = vunpack.c.l.b16 %v236
  %v925 = vunpack.c.l.b16 %v237
  %v926 = vpack.c.b16 %v783, %v782
  %v927 = vpack.c.b16 %v785, %v784
  %v928 = vpack.c.b16 %v787, %v786
  %v929 = vpack.c.b16 %v789, %v788
  %v930 = vpack.c.b16 %v791, %v790
  %v931 = vpack.c.b16 %v793, %v792
  %v932 = vpack.c.b16 %v795, %v794
  %v933 = vpack.c.b16 %v797, %v796
  %v934 = vpack.c.b16 %v799, %v798
  %v935 = vpack.c.b16 %v801, %v800
  %v936 = vpack.c.b16 %v803, %v802
  %v937 = vpack.c.b16 %v805, %v804
  %v938 = vpack.c.b16 %v807, %v806
  %v939 = vpack.c.b16 %v809, %v808
  %v940 = vpack.c.b16 %v811, %v810
  %v941 = vpack.c.b16 %v813, %v812
  %v942 = vpack.c.b16 %v815, %v814
  %v943 = vpack.c.b16 %v817, %v816
  %v944 = vpack.c.b16 %v819, %v818
  %v945 = vpack.c.b16 %v821, %v820
  %v946 = vpack.c.b16 %v823, %v822
  %v947 = vpack.c.b16 %v825, %v824
  %v948 = vpack.c.b16 %v827, %v826
  %v949 = vpack.c.b16 %v829, %v828
  %v950 = vpack.c.b16 %v831, %v830
  %v951 = vpack.c.b16 %v833, %v832
  %v952 = vpack.c.b16 %v835, %v834
  %v953 = vpack.c.b16 %v837, %v836
  %v954 = vpack.c.b16 %v839, %v838
  %v955 = vpack.c.b16 %v841, %v840
  %v956 = vpack.c.b16 %v843, %v842
  %v957 = vpack.c.b16 %v845, %v844
  %v958 = vpack.c.b16 %v847, %v846
  %v959 = vpack.c.b16 %v849, %v848
  %v960 = vpack.c.b16 %v851, %v850
  %v961 = vpack.c.b16 %v853, %v852
  %v962 = vpack.c.b16 %v855, %v854
  %v963 = vpack.c.b16 %v857, %v856
  %v964 = vpack.c.b16 %v859, %v858
  %v965 = vpack.c.b16 %v861, %v860
  %v966 = vpack.c.b16 %v863, %v862
  %v967 = vpack.c.b16 %v865, %v864
  %v968 = vpack.c.b16 %v867, %v866
  %v969 = vpack.c.b16 %v869, %v868
  %v970 = vpack.c.b16 %v871, %v870
  %v971 = vpack.c.b16 %v873, %v872
  %v972 = vpack.c.b16 %v875, %v874
  %v973 = vpack.c.b16 %v877, %v876
  %v974 = vpack.c.b16 %v879, %v878
  %v975 = vpack.c.b16 %v881, %v880
  %v976 = vpack.c.b16 %v883, %v882
  %v977 = vpack.c.b16 %v885, %v884
  %v978 = vpack.c.b16 %v887, %v886
  %v979 = vpack.c.b16 %v889, %v888
  %v980 = vpack.c.b16 %v891, %v890
  %v981 = vpack.c.b16 %v893, %v892
  %v982 = vpack.c.b16 %v895, %v894
  %v983 = vpack.c.b16 %v897, %v896
  %v984 = vpack.c.b16 %v899, %v898
  %v985 = vpack.c.b16 %v901, %v900
  %v986 = vpack.c.b16 %v903, %v902
  %v987 = vpack.c.b16 %v905, %v904
  %v988 = vpack.c.b16 %v907, %v906
  %v989 = vpack.c.b16 %v909, %v908
  %v990 = vpack.c.b16 %v911, %v910
  %v991 = vpack.c.b16 %v913, %v912
  %v992 = vpack.c.b16 %v915, %v914
  %v993 = vpack.c.b16 %v917, %v916
  %v994 = vpack.c.b16 %v919, %v918
  %v995 = vpack.c.b16 %v921, %v920
  %v996 = vpack.c.b16 %v923, %v922
  %v997 = vpack.c.b16 %v925, %v924
  %1070 = vmatpush.bf16.msra.mxu0 %v933
  %1071 = vmatpush.bf16.msra.mxu0 %v932
  %1072 = vmatpush.bf16.msra.mxu0 %v931
  %1073 = vmatpush.bf16.msra.mxu0 %v930
  %1074 = vmatpush.bf16.msra.mxu0 %v929
  %1075 = vmatpush.bf16.msra.mxu0 %v928
  %1076 = vmatpush.bf16.msra.mxu0 %v927
  %1077 = vmatpush.bf16.msra.mxu0 %v926
  %1078 = vmatmul.bf16.gmra.mxu0 %v494
  %v1079 = vpop.f32.mrf.mxu0
  %v1080 = vadd.f32 %v254, %v1079
  %v1081 = vpop.f32.mrf.mxu0
  %v1082 = vadd.f32 %v255, %v1081
  %1083 = vmatmul.bf16.gmra.mxu0 %v503
  %v1084 = vpop.f32.mrf.mxu0
  %v1085 = vadd.f32 %v256, %v1084
  %v1086 = vpop.f32.mrf.mxu0
  %v1087 = vadd.f32 %v257, %v1086
  %1088 = vmatmul.bf16.gmra.mxu0 %v512
  %v1089 = vpop.f32.mrf.mxu0
  %v1090 = vadd.f32 %v258, %v1089
  %v1091 = vpop.f32.mrf.mxu0
  %v1092 = vadd.f32 %v259, %v1091
  %1093 = vmatmul.bf16.gmra.mxu0 %v521
  %v1094 = vpop.f32.mrf.mxu0
  %v1095 = vadd.f32 %v260, %v1094
  %v1096 = vpop.f32.mrf.mxu0
  %v1097 = vadd.f32 %v261, %v1096
  %1098 = vmatmul.bf16.gmra.mxu0 %v530
  %v1099 = vpop.f32.mrf.mxu0
  %v1100 = vadd.f32 %v262, %v1099
  %v1101 = vpop.f32.mrf.mxu0
  %v1102 = vadd.f32 %v263, %v1101
  %1103 = vmatmul.bf16.gmra.mxu0 %v539
  %v1104 = vpop.f32.mrf.mxu0
  %v1105 = vadd.f32 %v264, %v1104
  %v1106 = vpop.f32.mrf.mxu0
  %v1107 = vadd.f32 %v265, %v1106
  %1108 = vmatmul.bf16.gmra.mxu0 %v548
  %v1109 = vpop.f32.mrf.mxu0
  %v1110 = vadd.f32 %v266, %v1109
  %v1111 = vpop.f32.mrf.mxu0
  %v1112 = vadd.f32 %v267, %v1111
  %1113 = vmatmul.bf16.gmra.mxu0 %v557
  %v1114 = vpop.f32.mrf.mxu0
  %v1115 = vadd.f32 %v268, %v1114
  %v1116 = vpop.f32.mrf.mxu0
  %v1117 = vadd.f32 %v269, %v1116
  %1118 = vdwg.mxu0
  %1119 = vmatpush.bf16.msra.mxu0 %v941
  %1120 = vmatpush.bf16.msra.mxu0 %v940
  %1121 = vmatpush.bf16.msra.mxu0 %v939
  %1122 = vmatpush.bf16.msra.mxu0 %v938
  %1123 = vmatpush.bf16.msra.mxu0 %v937
  %1124 = vmatpush.bf16.msra.mxu0 %v936
  %1125 = vmatpush.bf16.msra.mxu0 %v935
  %1126 = vmatpush.bf16.msra.mxu0 %v934
  %1127 = vmatmul.bf16.gmra.mxu0 %v495
  %v1128 = vpop.f32.mrf.mxu0
  %v1129 = vadd.f32 %v1080, %v1128
  %v1130 = vpop.f32.mrf.mxu0
  %v1131 = vadd.f32 %v1082, %v1130
  %1132 = vmatmul.bf16.gmra.mxu0 %v504
  %v1133 = vpop.f32.mrf.mxu0
  %v1134 = vadd.f32 %v1085, %v1133
  %v1135 = vpop.f32.mrf.mxu0
  %v1136 = vadd.f32 %v1087, %v1135
  %1137 = vmatmul.bf16.gmra.mxu0 %v513
  %v1138 = vpop.f32.mrf.mxu0
  %v1139 = vadd.f32 %v1090, %v1138
  %v1140 = vpop.f32.mrf.mxu0
  %v1141 = vadd.f32 %v1092, %v1140
  %1142 = vmatmul.bf16.gmra.mxu0 %v522
  %v1143 = vpop.f32.mrf.mxu0
  %v1144 = vadd.f32 %v1095, %v1143
  %v1145 = vpop.f32.mrf.mxu0
  %v1146 = vadd.f32 %v1097, %v1145
  %1147 = vmatmul.bf16.gmra.mxu0 %v531
  %v1148 = vpop.f32.mrf.mxu0
  %v1149 = vadd.f32 %v1100, %v1148
  %v1150 = vpop.f32.mrf.mxu0
  %v1151 = vadd.f32 %v1102, %v1150
  %1152 = vmatmul.bf16.gmra.mxu0 %v540
  %v1153 = vpop.f32.mrf.mxu0
  %v1154 = vadd.f32 %v1105, %v1153
  %v1155 = vpop.f32.mrf.mxu0
  %v1156 = vadd.f32 %v1107, %v1155
  %1157 = vmatmul.bf16.gmra.mxu0 %v549
  %v1158 = vpop.f32.mrf.mxu0
  %v1159 = vadd.f32 %v1110, %v1158
  %v1160 = vpop.f32.mrf.mxu0
  %v1161 = vadd.f32 %v1112, %v1160
  %1162 = vmatmul.bf16.gmra.mxu0 %v558
  %v1163 = vpop.f32.mrf.mxu0
  %v1164 = vadd.f32 %v1115, %v1163
  %v1165 = vpop.f32.mrf.mxu0
  %v1166 = vadd.f32 %v1117, %v1165
  %1167 = vdwg.mxu0
  %1168 = vmatpush.bf16.msra.mxu0 %v949
  %1169 = vmatpush.bf16.msra.mxu0 %v948
  %1170 = vmatpush.bf16.msra.mxu0 %v947
  %1171 = vmatpush.bf16.msra.mxu0 %v946
  %1172 = vmatpush.bf16.msra.mxu0 %v945
  %1173 = vmatpush.bf16.msra.mxu0 %v944
  %1174 = vmatpush.bf16.msra.mxu0 %v943
  %1175 = vmatpush.bf16.msra.mxu0 %v942
  %1176 = vmatmul.bf16.gmra.mxu0 %v496
  %v1177 = vpop.f32.mrf.mxu0
  %v1178 = vadd.f32 %v1129, %v1177
  %v1179 = vpop.f32.mrf.mxu0
  %v1180 = vadd.f32 %v1131, %v1179
  %1181 = vmatmul.bf16.gmra.mxu0 %v505
  %v1182 = vpop.f32.mrf.mxu0
  %v1183 = vadd.f32 %v1134, %v1182
  %v1184 = vpop.f32.mrf.mxu0
  %v1185 = vadd.f32 %v1136, %v1184
  %1186 = vmatmul.bf16.gmra.mxu0 %v514
  %v1187 = vpop.f32.mrf.mxu0
  %v1188 = vadd.f32 %v1139, %v1187
  %v1189 = vpop.f32.mrf.mxu0
  %v1190 = vadd.f32 %v1141, %v1189
  %1191 = vmatmul.bf16.gmra.mxu0 %v523
  %v1192 = vpop.f32.mrf.mxu0
  %v1193 = vadd.f32 %v1144, %v1192
  %v1194 = vpop.f32.mrf.mxu0
  %v1195 = vadd.f32 %v1146, %v1194
  %1196 = vmatmul.bf16.gmra.mxu0 %v532
  %v1197 = vpop.f32.mrf.mxu0
  %v1198 = vadd.f32 %v1149, %v1197
  %v1199 = vpop.f32.mrf.mxu0
  %v1200 = vadd.f32 %v1151, %v1199
  %1201 = vmatmul.bf16.gmra.mxu0 %v541
  %v1202 = vpop.f32.mrf.mxu0
  %v1203 = vadd.f32 %v1154, %v1202
  %v1204 = vpop.f32.mrf.mxu0
  %v1205 = vadd.f32 %v1156, %v1204
  %1206 = vmatmul.bf16.gmra.mxu0 %v550
  %v1207 = vpop.f32.mrf.mxu0
  %v1208 = vadd.f32 %v1159, %v1207
  %v1209 = vpop.f32.mrf.mxu0
  %v1210 = vadd.f32 %v1161, %v1209
  %1211 = vmatmul.bf16.gmra.mxu0 %v559
  %v1212 = vpop.f32.mrf.mxu0
  %v1213 = vadd.f32 %v1164, %v1212
  %v1214 = vpop.f32.mrf.mxu0
  %v1215 = vadd.f32 %v1166, %v1214
  %1216 = vdwg.mxu0
  %1217 = vmatpush.bf16.msra.mxu0 %v957
  %1218 = vmatpush.bf16.msra.mxu0 %v956
  %1219 = vmatpush.bf16.msra.mxu0 %v955
  %1220 = vmatpush.bf16.msra.mxu0 %v954
  %1221 = vmatpush.bf16.msra.mxu0 %v953
  %1222 = vmatpush.bf16.msra.mxu0 %v952
  %1223 = vmatpush.bf16.msra.mxu0 %v951
  %1224 = vmatpush.bf16.msra.mxu0 %v950
  %1225 = vmatmul.bf16.gmra.mxu0 %v497
  %v1226 = vpop.f32.mrf.mxu0
  %v1227 = vadd.f32 %v1178, %v1226
  %v1228 = vpop.f32.mrf.mxu0
  %v1229 = vadd.f32 %v1180, %v1228
  %1230 = vmatmul.bf16.gmra.mxu0 %v506
  %v1231 = vpop.f32.mrf.mxu0
  %v1232 = vadd.f32 %v1183, %v1231
  %v1233 = vpop.f32.mrf.mxu0
  %v1234 = vadd.f32 %v1185, %v1233
  %1235 = vmatmul.bf16.gmra.mxu0 %v515
  %v1236 = vpop.f32.mrf.mxu0
  %v1237 = vadd.f32 %v1188, %v1236
  %v1238 = vpop.f32.mrf.mxu0
  %v1239 = vadd.f32 %v1190, %v1238
  %1240 = vmatmul.bf16.gmra.mxu0 %v524
  %v1241 = vpop.f32.mrf.mxu0
  %v1242 = vadd.f32 %v1193, %v1241
  %v1243 = vpop.f32.mrf.mxu0
  %v1244 = vadd.f32 %v1195, %v1243
  %1245 = vmatmul.bf16.gmra.mxu0 %v533
  %v1246 = vpop.f32.mrf.mxu0
  %v1247 = vadd.f32 %v1198, %v1246
  %v1248 = vpop.f32.mrf.mxu0
  %v1249 = vadd.f32 %v1200, %v1248
  %1250 = vmatmul.bf16.gmra.mxu0 %v542
  %v1251 = vpop.f32.mrf.mxu0
  %v1252 = vadd.f32 %v1203, %v1251
  %v1253 = vpop.f32.mrf.mxu0
  %v1254 = vadd.f32 %v1205, %v1253
  %1255 = vmatmul.bf16.gmra.mxu0 %v551
  %v1256 = vpop.f32.mrf.mxu0
  %v1257 = vadd.f32 %v1208, %v1256
  %v1258 = vpop.f32.mrf.mxu0
  %v1259 = vadd.f32 %v1210, %v1258
  %1260 = vmatmul.bf16.gmra.mxu0 %v560
  %v1261 = vpop.f32.mrf.mxu0
  %v1262 = vadd.f32 %v1213, %v1261
  %v1263 = vpop.f32.mrf.mxu0
  %v1264 = vadd.f32 %v1215, %v1263
  %1265 = vdwg.mxu0
  %1266 = vmatpush.bf16.msra.mxu0 %v965
  %1267 = vmatpush.bf16.msra.mxu0 %v964
  %1268 = vmatpush.bf16.msra.mxu0 %v963
  %1269 = vmatpush.bf16.msra.mxu0 %v962
  %1270 = vmatpush.bf16.msra.mxu0 %v961
  %1271 = vmatpush.bf16.msra.mxu0 %v960
  %1272 = vmatpush.bf16.msra.mxu0 %v959
  %1273 = vmatpush.bf16.msra.mxu0 %v958
  %1274 = vmatmul.bf16.gmra.mxu0 %v498
  %v1275 = vpop.f32.mrf.mxu0
  %v1276 = vadd.f32 %v1227, %v1275
  %v1277 = vpop.f32.mrf.mxu0
  %v1278 = vadd.f32 %v1229, %v1277
  %1279 = vmatmul.bf16.gmra.mxu0 %v507
  %v1280 = vpop.f32.mrf.mxu0
  %v1281 = vadd.f32 %v1232, %v1280
  %v1282 = vpop.f32.mrf.mxu0
  %v1283 = vadd.f32 %v1234, %v1282
  %1284 = vmatmul.bf16.gmra.mxu0 %v516
  %v1285 = vpop.f32.mrf.mxu0
  %v1286 = vadd.f32 %v1237, %v1285
  %v1287 = vpop.f32.mrf.mxu0
  %v1288 = vadd.f32 %v1239, %v1287
  %1289 = vmatmul.bf16.gmra.mxu0 %v525
  %v1290 = vpop.f32.mrf.mxu0
  %v1291 = vadd.f32 %v1242, %v1290
  %v1292 = vpop.f32.mrf.mxu0
  %v1293 = vadd.f32 %v1244, %v1292
  %1294 = vmatmul.bf16.gmra.mxu0 %v534
  %v1295 = vpop.f32.mrf.mxu0
  %v1296 = vadd.f32 %v1247, %v1295
  %v1297 = vpop.f32.mrf.mxu0
  %v1298 = vadd.f32 %v1249, %v1297
  %1299 = vmatmul.bf16.gmra.mxu0 %v543
  %v1300 = vpop.f32.mrf.mxu0
  %v1301 = vadd.f32 %v1252, %v1300
  %v1302 = vpop.f32.mrf.mxu0
  %v1303 = vadd.f32 %v1254, %v1302
  %1304 = vmatmul.bf16.gmra.mxu0 %v552
  %v1305 = vpop.f32.mrf.mxu0
  %v1306 = vadd.f32 %v1257, %v1305
  %v1307 = vpop.f32.mrf.mxu0
  %v1308 = vadd.f32 %v1259, %v1307
  %1309 = vmatmul.bf16.gmra.mxu0 %v561
  %v1310 = vpop.f32.mrf.mxu0
  %v1311 = vadd.f32 %v1262, %v1310
  %v1312 = vpop.f32.mrf.mxu0
  %v1313 = vadd.f32 %v1264, %v1312
  %1314 = vdwg.mxu0
  %1315 = vmatpush.bf16.msra.mxu0 %v973
  %1316 = vmatpush.bf16.msra.mxu0 %v972
  %1317 = vmatpush.bf16.msra.mxu0 %v971
  %1318 = vmatpush.bf16.msra.mxu0 %v970
  %1319 = vmatpush.bf16.msra.mxu0 %v969
  %1320 = vmatpush.bf16.msra.mxu0 %v968
  %1321 = vmatpush.bf16.msra.mxu0 %v967
  %1322 = vmatpush.bf16.msra.mxu0 %v966
  %1323 = vmatmul.bf16.gmra.mxu0 %v499
  %v1324 = vpop.f32.mrf.mxu0
  %v1325 = vadd.f32 %v1276, %v1324
  %v1326 = vpop.f32.mrf.mxu0
  %v1327 = vadd.f32 %v1278, %v1326
  %1328 = vmatmul.bf16.gmra.mxu0 %v508
  %v1329 = vpop.f32.mrf.mxu0
  %v1330 = vadd.f32 %v1281, %v1329
  %v1331 = vpop.f32.mrf.mxu0
  %v1332 = vadd.f32 %v1283, %v1331
  %1333 = vmatmul.bf16.gmra.mxu0 %v517
  %v1334 = vpop.f32.mrf.mxu0
  %v1335 = vadd.f32 %v1286, %v1334
  %v1336 = vpop.f32.mrf.mxu0
  %v1337 = vadd.f32 %v1288, %v1336
  %1338 = vmatmul.bf16.gmra.mxu0 %v526
  %v1339 = vpop.f32.mrf.mxu0
  %v1340 = vadd.f32 %v1291, %v1339
  %v1341 = vpop.f32.mrf.mxu0
  %v1342 = vadd.f32 %v1293, %v1341
  %1343 = vmatmul.bf16.gmra.mxu0 %v535
  %v1344 = vpop.f32.mrf.mxu0
  %v1345 = vadd.f32 %v1296, %v1344
  %v1346 = vpop.f32.mrf.mxu0
  %v1347 = vadd.f32 %v1298, %v1346
  %1348 = vmatmul.bf16.gmra.mxu0 %v544
  %v1349 = vpop.f32.mrf.mxu0
  %v1350 = vadd.f32 %v1301, %v1349
  %v1351 = vpop.f32.mrf.mxu0
  %v1352 = vadd.f32 %v1303, %v1351
  %1353 = vmatmul.bf16.gmra.mxu0 %v553
  %v1354 = vpop.f32.mrf.mxu0
  %v1355 = vadd.f32 %v1306, %v1354
  %v1356 = vpop.f32.mrf.mxu0
  %v1357 = vadd.f32 %v1308, %v1356
  %1358 = vmatmul.bf16.gmra.mxu0 %v562
  %v1359 = vpop.f32.mrf.mxu0
  %v1360 = vadd.f32 %v1311, %v1359
  %v1361 = vpop.f32.mrf.mxu0
  %v1362 = vadd.f32 %v1313, %v1361
  %1363 = vdwg.mxu0
  %1364 = vmatpush.bf16.msra.mxu0 %v981
  %1365 = vmatpush.bf16.msra.mxu0 %v980
  %1366 = vmatpush.bf16.msra.mxu0 %v979
  %1367 = vmatpush.bf16.msra.mxu0 %v978
  %1368 = vmatpush.bf16.msra.mxu0 %v977
  %1369 = vmatpush.bf16.msra.mxu0 %v976
  %1370 = vmatpush.bf16.msra.mxu0 %v975
  %1371 = vmatpush.bf16.msra.mxu0 %v974
  %1372 = vmatmul.bf16.gmra.mxu0 %v500
  %v1373 = vpop.f32.mrf.mxu0
  %v1374 = vadd.f32 %v1325, %v1373
  %v1375 = vpop.f32.mrf.mxu0
  %v1376 = vadd.f32 %v1327, %v1375
  %1377 = vmatmul.bf16.gmra.mxu0 %v509
  %v1378 = vpop.f32.mrf.mxu0
  %v1379 = vadd.f32 %v1330, %v1378
  %v1380 = vpop.f32.mrf.mxu0
  %v1381 = vadd.f32 %v1332, %v1380
  %1382 = vmatmul.bf16.gmra.mxu0 %v518
  %v1383 = vpop.f32.mrf.mxu0
  %v1384 = vadd.f32 %v1335, %v1383
  %v1385 = vpop.f32.mrf.mxu0
  %v1386 = vadd.f32 %v1337, %v1385
  %1387 = vmatmul.bf16.gmra.mxu0 %v527
  %v1388 = vpop.f32.mrf.mxu0
  %v1389 = vadd.f32 %v1340, %v1388
  %v1390 = vpop.f32.mrf.mxu0
  %v1391 = vadd.f32 %v1342, %v1390
  %1392 = vmatmul.bf16.gmra.mxu0 %v536
  %v1393 = vpop.f32.mrf.mxu0
  %v1394 = vadd.f32 %v1345, %v1393
  %v1395 = vpop.f32.mrf.mxu0
  %v1396 = vadd.f32 %v1347, %v1395
  %1397 = vmatmul.bf16.gmra.mxu0 %v545
  %v1398 = vpop.f32.mrf.mxu0
  %v1399 = vadd.f32 %v1350, %v1398
  %v1400 = vpop.f32.mrf.mxu0
  %v1401 = vadd.f32 %v1352, %v1400
  %1402 = vmatmul.bf16.gmra.mxu0 %v554
  %v1403 = vpop.f32.mrf.mxu0
  %v1404 = vadd.f32 %v1355, %v1403
  %v1405 = vpop.f32.mrf.mxu0
  %v1406 = vadd.f32 %v1357, %v1405
  %1407 = vmatmul.bf16.gmra.mxu0 %v563
  %v1408 = vpop.f32.mrf.mxu0
  %v1409 = vadd.f32 %v1360, %v1408
  %v1410 = vpop.f32.mrf.mxu0
  %v1411 = vadd.f32 %v1362, %v1410
  %1412 = vdwg.mxu0
  %1413 = vmatpush.bf16.msra.mxu0 %v989
  %1414 = vmatpush.bf16.msra.mxu0 %v988
  %1415 = vmatpush.bf16.msra.mxu0 %v987
  %1416 = vmatpush.bf16.msra.mxu0 %v986
  %1417 = vmatpush.bf16.msra.mxu0 %v985
  %1418 = vmatpush.bf16.msra.mxu0 %v984
  %1419 = vmatpush.bf16.msra.mxu0 %v983
  %1420 = vmatpush.bf16.msra.mxu0 %v982
  %1421 = vmatmul.bf16.gmra.mxu0 %v501
  %v1422 = vpop.f32.mrf.mxu0
  %v1423 = vadd.f32 %v1374, %v1422
  %v1424 = vpop.f32.mrf.mxu0
  %v1425 = vadd.f32 %v1376, %v1424
  %1426 = vmatmul.bf16.gmra.mxu0 %v510
  %v1427 = vpop.f32.mrf.mxu0
  %v1428 = vadd.f32 %v1379, %v1427
  %v1429 = vpop.f32.mrf.mxu0
  %v1430 = vadd.f32 %v1381, %v1429
  %1431 = vmatmul.bf16.gmra.mxu0 %v519
  %v1432 = vpop.f32.mrf.mxu0
  %v1433 = vadd.f32 %v1384, %v1432
  %v1434 = vpop.f32.mrf.mxu0
  %v1435 = vadd.f32 %v1386, %v1434
  %1436 = vmatmul.bf16.gmra.mxu0 %v528
  %v1437 = vpop.f32.mrf.mxu0
  %v1438 = vadd.f32 %v1389, %v1437
  %v1439 = vpop.f32.mrf.mxu0
  %v1440 = vadd.f32 %v1391, %v1439
  %1441 = vmatmul.bf16.gmra.mxu0 %v537
  %v1442 = vpop.f32.mrf.mxu0
  %v1443 = vadd.f32 %v1394, %v1442
  %v1444 = vpop.f32.mrf.mxu0
  %v1445 = vadd.f32 %v1396, %v1444
  %1446 = vmatmul.bf16.gmra.mxu0 %v546
  %v1447 = vpop.f32.mrf.mxu0
  %v1448 = vadd.f32 %v1399, %v1447
  %v1449 = vpop.f32.mrf.mxu0
  %v1450 = vadd.f32 %v1401, %v1449
  %1451 = vmatmul.bf16.gmra.mxu0 %v555
  %v1452 = vpop.f32.mrf.mxu0
  %v1453 = vadd.f32 %v1404, %v1452
  %v1454 = vpop.f32.mrf.mxu0
  %v1455 = vadd.f32 %v1406, %v1454
  %1456 = vmatmul.bf16.gmra.mxu0 %v564
  %v1457 = vpop.f32.mrf.mxu0
  %v1458 = vadd.f32 %v1409, %v1457
  %v1459 = vpop.f32.mrf.mxu0
  %v1460 = vadd.f32 %v1411, %v1459
  %1461 = vdwg.mxu0
  %1462 = vmatpush.bf16.msra.mxu0 %v997
  %1463 = vmatpush.bf16.msra.mxu0 %v996
  %1464 = vmatpush.bf16.msra.mxu0 %v995
  %1465 = vmatpush.bf16.msra.mxu0 %v994
  %1466 = vmatpush.bf16.msra.mxu0 %v993
  %1467 = vmatpush.bf16.msra.mxu0 %v992
  %1468 = vmatpush.bf16.msra.mxu0 %v991
  %1469 = vmatpush.bf16.msra.mxu0 %v990
  %1470 = vmatmul.bf16.gmra.mxu0 %v502
  %v1471 = vpop.f32.mrf.mxu0
  %v1472 = vadd.f32 %v1423, %v1471
  %v1473 = vpop.f32.mrf.mxu0
  %v1474 = vadd.f32 %v1425, %v1473
  %1475 = vmatmul.bf16.gmra.mxu0 %v511
  %v1476 = vpop.f32.mrf.mxu0
  %v1477 = vadd.f32 %v1428, %v1476
  %v1478 = vpop.f32.mrf.mxu0
  %v1479 = vadd.f32 %v1430, %v1478
  %1480 = vmatmul.bf16.gmra.mxu0 %v520
  %v1481 = vpop.f32.mrf.mxu0
  %v1482 = vadd.f32 %v1433, %v1481
  %v1483 = vpop.f32.mrf.mxu0
  %v1484 = vadd.f32 %v1435, %v1483
  %1485 = vmatmul.bf16.gmra.mxu0 %v529
  %v1486 = vpop.f32.mrf.mxu0
  %v1487 = vadd.f32 %v1438, %v1486
  %v1488 = vpop.f32.mrf.mxu0
  %v1489 = vadd.f32 %v1440, %v1488
  %1490 = vmatmul.bf16.gmra.mxu0 %v538
  %v1491 = vpop.f32.mrf.mxu0
  %v1492 = vadd.f32 %v1443, %v1491
  %v1493 = vpop.f32.mrf.mxu0
  %v1494 = vadd.f32 %v1445, %v1493
  %1495 = vmatmul.bf16.gmra.mxu0 %v547
  %v1496 = vpop.f32.mrf.mxu0
  %v1497 = vadd.f32 %v1448, %v1496
  %v1498 = vpop.f32.mrf.mxu0
  %v1499 = vadd.f32 %v1450, %v1498
  %1500 = vmatmul.bf16.gmra.mxu0 %v556
  %v1501 = vpop.f32.mrf.mxu0
  %v1502 = vadd.f32 %v1453, %v1501
  %v1503 = vpop.f32.mrf.mxu0
  %v1504 = vadd.f32 %v1455, %v1503
  %1505 = vmatmul.bf16.gmra.mxu0 %v565
  %v1506 = vpop.f32.mrf.mxu0
  %v1507 = vadd.f32 %v1458, %v1506
  %v1508 = vpop.f32.mrf.mxu0
  %v1509 = vadd.f32 %v1460, %v1508
  %1510 = vdwg.mxu0
  %v1511 = vpack.c.bf16 %v1472, %v1472
  %v1512 = vpack.c.bf16 %v1474, %v1474
  %v1513 = vpack.c.bf16 %v1477, %v1477
  %v1514 = vpack.c.bf16 %v1479, %v1479
  %v1515 = vpack.c.bf16 %v1482, %v1482
  %v1516 = vpack.c.bf16 %v1484, %v1484
  %v1517 = vpack.c.bf16 %v1487, %v1487
  %v1518 = vpack.c.bf16 %v1489, %v1489
  %v1519 = vpack.c.bf16 %v1492, %v1492
  %v1520 = vpack.c.bf16 %v1494, %v1494
  %v1521 = vpack.c.bf16 %v1497, %v1497
  %v1522 = vpack.c.bf16 %v1499, %v1499
  %v1523 = vpack.c.bf16 %v1502, %v1502
  %v1524 = vpack.c.bf16 %v1504, %v1504
  %v1525 = vpack.c.bf16 %v1507, %v1507
  %v1526 = vpack.c.bf16 %v1509, %v1509
  %1527 = vst [vmem:[%s3] sm:$0xf] %v1511
  %1528 = vst [vmem:[%s3 + $0x4] sm:$0xf] %v1512
  %1529 = vst [vmem:[%s3 + $0x8] sm:$0xf] %v1513
  %1530 = vst [vmem:[%s3 + $0xc] sm:$0xf] %v1514
  %1531 = vst [vmem:[%s3 + $0x10] sm:$0xf] %v1515
  %1532 = vst [vmem:[%s3 + $0x14] sm:$0xf] %v1516
  %1533 = vst [vmem:[%s3 + $0x18] sm:$0xf] %v1517
  %1534 = vst [vmem:[%s3 + $0x1c] sm:$0xf] %v1518
  %1535 = vst [vmem:[%s3 + $0x20] sm:$0xf] %v1519
  %1536 = vst [vmem:[%s3 + $0x24] sm:$0xf] %v1520
  %1537 = vst [vmem:[%s3 + $0x28] sm:$0xf] %v1521
  %1538 = vst [vmem:[%s3 + $0x2c] sm:$0xf] %v1522
  %1539 = vst [vmem:[%s3 + $0x30] sm:$0xf] %v1523
  %1540 = vst [vmem:[%s3 + $0x34] sm:$0xf] %v1524
  %1541 = vst [vmem:[%s3 + $0x38] sm:$0xf] %v1525
  %1542 = vst [vmem:[%s3 + $0x3c] sm:$0xf] %v1526
  // Predicated region
  $region14: #{network_block_forward.7} parent=0 // pred_check
    _
  $region15: #{network_block_forward.7} parent=0 // pred_check_branch
    %1544 = sbr.rel (0) target = $region17
  $region16: #{network_block_forward.7} parent=0 // pred_region
    _
  $region17: #{network_block_forward.7} parent=0 // pred_fallthru
    _
  // Predicated region
  $region18: #{network_block_forward.7} parent=0 // pred_check
    _
  $region19: #{network_block_forward.7} parent=0 // pred_check_branch
    %1546 = sbr.rel (0) target = $region21
  $region20: #{network_block_forward.7} parent=0 // pred_region
    _
  $region21: #{network_block_forward.7} parent=0 // pred_fallthru
    _

// kernel: network_block_forward.9
$region0: #{network_block_forward.9}
  #allocation0 [shape = 'u32[]', space=smem, size = 0x4, offset = 0x4, fixed_abs, tag = 'smem constant byte address 0x4 - core index']
  #allocation1 [shape = 'u32[72,128]{1,0:T(1,128)}', space=vmem, size = 0x9000, scoped, tag = 'internal scratch']
  %s0 = inlined_call_operand.vmem [shape: bf16[128,1152], index: 0, kind: input, shape index: {}]
  %s1 = inlined_call_operand.vmem [shape: bf16[1152,128], index: 1, kind: input, shape index: {}]
  %s2 = inlined_call_operand.vmem [shape: bf16[128,128], index: 2, kind: input, shape index: {}]
  %s3 = inlined_call_operand.hbm [shape: bf16[128,128], index: 3, kind: output, shape index: {}]
  %s4 = sld [smem:[#allocation0]]
  $region22: #{network_block_forward.9} parent=0
    _
  %s6 = ssub.s32 1, %s4
  %s7 = scalar_select 0, %s6, %s4
  $region1: #{network_block_forward.9} parent=0
    #allocation2 [shape = 'u8[32768]{0}', space=vmem, size = 0x8000, scoped, tag = 'output window, operand 0, single buffered']
    #allocation3 [shape = 's32[1]{0}', space=sflag, size = 0x4, scoped, tag = 'scoped memory for network_block_forward.9']
    %8 = vsyncpa [#allocation3], 0
    // Predicated region
    $region2: #{network_block_forward.9} parent=1 // pred_check
      _
    $region3: #{network_block_forward.9} parent=1 // pred_check_branch
      %10 = sbr.rel (0) target = $region5
    $region4: #{network_block_forward.9} parent=1 // pred_region
      _
    $region5: #{network_block_forward.9} parent=1 // pred_fallthru
      _
    // Predicated region
    $region6: #{network_block_forward.9} parent=1 // pred_check
      _
    $region7: #{network_block_forward.9} parent=1 // pred_check_branch
      %12 = sbr.rel (0) target = $region9
    $region8: #{network_block_forward.9} parent=1 // pred_region
      _
    $region9: #{network_block_forward.9} parent=1 // pred_fallthru
      _
    // Predicated region
    $region10: #{network_block_forward.9} parent=1 // pred_check
      _
    $region11: #{network_block_forward.9} parent=1 // pred_check_branch
      %14 = sbr.rel (0) target = $region13
    $region12: #{network_block_forward.9} parent=1 // pred_region
      _
    $region13: #{network_block_forward.9} parent=1 // pred_fallthru
      _
    %v15 = vld [vmem:[%s0] sm:$0xff]
    %v16 = vld [vmem:[%s0 + $0x8] sm:$0xff]
    %v17 = vld [vmem:[%s0 + $0x10] sm:$0xff]
    %v18 = vld [vmem:[%s0 + $0x18] sm:$0xff]
    %v19 = vld [vmem:[%s0 + $0x20] sm:$0xf]
    %v20 = vld [vmem:[%s0 + $0x24] sm:$0xff]
    %v21 = vld [vmem:[%s0 + $0x2c] sm:$0xff]
    %v22 = vld [vmem:[%s0 + $0x34] sm:$0xff]
    %v23 = vld [vmem:[%s0 + $0x3c] sm:$0xff]
    %v24 = vld [vmem:[%s0 + $0x44] sm:$0xf]
    %v25 = vld [vmem:[%s0 + $0x48] sm:$0xff]
    %v26 = vld [vmem:[%s0 + $0x50] sm:$0xff]
    %v27 = vld [vmem:[%s0 + $0x58] sm:$0xff]
    %v28 = vld [vmem:[%s0 + $0x60] sm:$0xff]
    %v29 = vld [vmem:[%s0 + $0x68] sm:$0xf]
    %v30 = vld [vmem:[%s0 + $0x6c] sm:$0xff]
    %v31 = vld [vmem:[%s0 + $0x74] sm:$0xff]
    %v32 = vld [vmem:[%s0 + $0x7c] sm:$0xff]
    %v33 = vld [vmem:[%s0 + $0x84] sm:$0xff]
    %v34 = vld [vmem:[%s0 + $0x8c] sm:$0xf]
    %v35 = vld [vmem:[%s0 + $0x90] sm:$0xff]
    %v36 = vld [vmem:[%s0 + $0x98] sm:$0xff]
    %v37 = vld [vmem:[%s0 + $0xa0] sm:$0xff]
    %v38 = vld [vmem:[%s0 + $0xa8] sm:$0xff]
    %v39 = vld [vmem:[%s0 + $0xb0] sm:$0xf]
    %v40 = vld [vmem:[%s0 + $0xb4] sm:$0xff]
    %v41 = vld [vmem:[%s0 + $0xbc] sm:$0xff]
    %v42 = vld [vmem:[%s0 + $0xc4] sm:$0xff]
    %v43 = vld [vmem:[%s0 + $0xcc] sm:$0xff]
    %v44 = vld [vmem:[%s0 + $0xd4] sm:$0xf]
    %v45 = vld [vmem:[%s0 + $0xd8] sm:$0xff]
    %v46 = vld [vmem:[%s0 + $0xe0] sm:$0xff]
    %v47 = vld [vmem:[%s0 + $0xe8] sm:$0xff]
    %v48 = vld [vmem:[%s0 + $0xf0] sm:$0xff]
    %v49 = vld [vmem:[%s0 + $0xf8] sm:$0xf]
    %v50 = vld [vmem:[%s0 + $0xfc] sm:$0xff]
    %v51 = vld [vmem:[%s0 + $0x104] sm:$0xff]
    %v52 = vld [vmem:[%s0 + $0x10c] sm:$0xff]
    %v53 = vld [vmem:[%s0 + $0x114] sm:$0xff]
    %v54 = vld [vmem:[%s0 + $0x11c] sm:$0xf]
    %v55 = vld [vmem:[%s0 + $0x120] sm:$0xff]
    %v56 = vld [vmem:[%s0 + $0x128] sm:$0xff]
    %v57 = vld [vmem:[%s0 + $0x130] sm:$0xff]
    %v58 = vld [vmem:[%s0 + $0x138] sm:$0xff]
    %v59 = vld [vmem:[%s0 + $0x140] sm:$0xf]
    %v60 = vld [vmem:[%s0 + $0x144] sm:$0xff]
    %v61 = vld [vmem:[%s0 + $0x14c] sm:$0xff]
    %v62 = vld [vmem:[%s0 + $0x154] sm:$0xff]
    %v63 = vld [vmem:[%s0 + $0x15c] sm:$0xff]
    %v64 = vld [vmem:[%s0 + $0x164] sm:$0xf]
    %v65 = vld [vmem:[%s0 + $0x168] sm:$0xff]
    %v66 = vld [vmem:[%s0 + $0x170] sm:$0xff]
    %v67 = vld [vmem:[%s0 + $0x178] sm:$0xff]
    %v68 = vld [vmem:[%s0 + $0x180] sm:$0xff]
    %v69 = vld [vmem:[%s0 + $0x188] sm:$0xf]
    %v70 = vld [vmem:[%s0 + $0x18c] sm:$0xff]
    %v71 = vld [vmem:[%s0 + $0x194] sm:$0xff]
    %v72 = vld [vmem:[%s0 + $0x19c] sm:$0xff]
    %v73 = vld [vmem:[%s0 + $0x1a4] sm:$0xff]
    %v74 = vld [vmem:[%s0 + $0x1ac] sm:$0xf]
    %v75 = vld [vmem:[%s0 + $0x1b0] sm:$0xff]
    %v76 = vld [vmem:[%s0 + $0x1b8] sm:$0xff]
    %v77 = vld [vmem:[%s0 + $0x1c0] sm:$0xff]
    %v78 = vld [vmem:[%s0 + $0x1c8] sm:$0xff]
    %v79 = vld [vmem:[%s0 + $0x1d0] sm:$0xf]
    %v80 = vld [vmem:[%s0 + $0x1d4] sm:$0xff]
    %v81 = vld [vmem:[%s0 + $0x1dc] sm:$0xff]
    %v82 = vld [vmem:[%s0 + $0x1e4] sm:$0xff]
    %v83 = vld [vmem:[%s0 + $0x1ec] sm:$0xff]
    %v84 = vld [vmem:[%s0 + $0x1f4] sm:$0xf]
    %v85 = vld [vmem:[%s0 + $0x1f8] sm:$0xff]
    %v86 = vld [vmem:[%s0 + $0x200] sm:$0xff]
    %v87 = vld [vmem:[%s0 + $0x208] sm:$0xff]
    %v88 = vld [vmem:[%s0 + $0x210] sm:$0xff]
    %v89 = vld [vmem:[%s0 + $0x218] sm:$0xf]
    %v90 = vld [vmem:[%s0 + $0x21c] sm:$0xff]
    %v91 = vld [vmem:[%s0 + $0x224] sm:$0xff]
    %v92 = vld [vmem:[%s0 + $0x22c] sm:$0xff]
    %v93 = vld [vmem:[%s0 + $0x234] sm:$0xff]
    %v94 = vld [vmem:[%s0 + $0x23c] sm:$0xf]
    %v95 = vld [vmem:[%s1] sm:$0xf]
    %v96 = vld [vmem:[%s1 + $0x4] sm:$0xf]
    %v97 = vld [vmem:[%s1 + $0x8] sm:$0xf]
    %v98 = vld [vmem:[%s1 + $0xc] sm:$0xf]
    %v99 = vld [vmem:[%s1 + $0x10] sm:$0xf]
    %v100 = vld [vmem:[%s1 + $0x14] sm:$0xf]
    %v101 = vld [vmem:[%s1 + $0x18] sm:$0xf]
    %v102 = vld [vmem:[%s1 + $0x1c] sm:$0xf]
    %v103 = vld [vmem:[%s1 + $0x20] sm:$0xf]
    %v104 = vld [vmem:[%s1 + $0x24] sm:$0xf]
    %v105 = vld [vmem:[%s1 + $0x28] sm:$0xf]
    %v106 = vld [vmem:[%s1 + $0x2c] sm:$0xf]
    %v107 = vld [vmem:[%s1 + $0x30] sm:$0xf]
    %v108 = vld [vmem:[%s1 + $0x34] sm:$0xf]
    %v109 = vld [vmem:[%s1 + $0x38] sm:$0xf]
    %v110 = vld [vmem:[%s1 + $0x3c] sm:$0xf]
    %v111 = vld [vmem:[%s1 + $0x40] sm:$0xf]
    %v112 = vld [vmem:[%s1 + $0x44] sm:$0xf]
    %v113 = vld [vmem:[%s1 + $0x48] sm:$0xf]
    %v114 = vld [vmem:[%s1 + $0x4c] sm:$0xf]
    %v115 = vld [vmem:[%s1 + $0x50] sm:$0xf]
    %v116 = vld [vmem:[%s1 + $0x54] sm:$0xf]
    %v117 = vld [vmem:[%s1 + $0x58] sm:$0xf]
    %v118 = vld [vmem:[%s1 + $0x5c] sm:$0xf]
    %v119 = vld [vmem:[%s1 + $0x60] sm:$0xf]
    %v120 = vld [vmem:[%s1 + $0x64] sm:$0xf]
    %v121 = vld [vmem:[%s1 + $0x68] sm:$0xf]
    %v122 = vld [vmem:[%s1 + $0x6c] sm:$0xf]
    %v123 = vld [vmem:[%s1 + $0x70] sm:$0xf]
    %v124 = vld [vmem:[%s1 + $0x74] sm:$0xf]
    %v125 = vld [vmem:[%s1 + $0x78] sm:$0xf]
    %v126 = vld [vmem:[%s1 + $0x7c] sm:$0xf]
    %v127 = vld [vmem:[%s1 + $0x80] sm:$0xf]
    %v128 = vld [vmem:[%s1 + $0x84] sm:$0xf]
    %v129 = vld [vmem:[%s1 + $0x88] sm:$0xf]
    %v130 = vld [vmem:[%s1 + $0x8c] sm:$0xf]
    %v131 = vld [vmem:[%s1 + $0x90] sm:$0xf]
    %v132 = vld [vmem:[%s1 + $0x94] sm:$0xf]
    %v133 = vld [vmem:[%s1 + $0x98] sm:$0xf]
    %v134 = vld [vmem:[%s1 + $0x9c] sm:$0xf]
    %v135 = vld [vmem:[%s1 + $0xa0] sm:$0xf]
    %v136 = vld [vmem:[%s1 + $0xa4] sm:$0xf]
    %v137 = vld [vmem:[%s1 + $0xa8] sm:$0xf]
    %v138 = vld [vmem:[%s1 + $0xac] sm:$0xf]
    %v139 = vld [vmem:[%s1 + $0xb0] sm:$0xf]
    %v140 = vld [vmem:[%s1 + $0xb4] sm:$0xf]
    %v141 = vld [vmem:[%s1 + $0xb8] sm:$0xf]
    %v142 = vld [vmem:[%s1 + $0xbc] sm:$0xf]
    %v143 = vld [vmem:[%s1 + $0xc0] sm:$0xf]
    %v144 = vld [vmem:[%s1 + $0xc4] sm:$0xf]
    %v145 = vld [vmem:[%s1 + $0xc8] sm:$0xf]
    %v146 = vld [vmem:[%s1 + $0xcc] sm:$0xf]
    %v147 = vld [vmem:[%s1 + $0xd0] sm:$0xf]
    %v148 = vld [vmem:[%s1 + $0xd4] sm:$0xf]
    %v149 = vld [vmem:[%s1 + $0xd8] sm:$0xf]
    %v150 = vld [vmem:[%s1 + $0xdc] sm:$0xf]
    %v151 = vld [vmem:[%s1 + $0xe0] sm:$0xf]
    %v152 = vld [vmem:[%s1 + $0xe4] sm:$0xf]
    %v153 = vld [vmem:[%s1 + $0xe8] sm:$0xf]
    %v154 = vld [vmem:[%s1 + $0xec] sm:$0xf]
    %v155 = vld [vmem:[%s1 + $0xf0] sm:$0xf]
    %v156 = vld [vmem:[%s1 + $0xf4] sm:$0xf]
    %v157 = vld [vmem:[%s1 + $0xf8] sm:$0xf]
    %v158 = vld [vmem:[%s1 + $0xfc] sm:$0xf]
    %v159 = vld [vmem:[%s1 + $0x100] sm:$0xf]
    %v160 = vld [vmem:[%s1 + $0x104] sm:$0xf]
    %v161 = vld [vmem:[%s1 + $0x108] sm:$0xf]
    %v162 = vld [vmem:[%s1 + $0x10c] sm:$0xf]
    %v163 = vld [vmem:[%s1 + $0x110] sm:$0xf]
    %v164 = vld [vmem:[%s1 + $0x114] sm:$0xf]
    %v165 = vld [vmem:[%s1 + $0x118] sm:$0xf]
    %v166 = vld [vmem:[%s1 + $0x11c] sm:$0xf]
    %v167 = vld [vmem:[%s1 + $0x120] sm:$0xf]
    %v168 = vld [vmem:[%s1 + $0x124] sm:$0xf]
    %v169 = vld [vmem:[%s1 + $0x128] sm:$0xf]
    %v170 = vld [vmem:[%s1 + $0x12c] sm:$0xf]
    %v171 = vld [vmem:[%s1 + $0x130] sm:$0xf]
    %v172 = vld [vmem:[%s1 + $0x134] sm:$0xf]
    %v173 = vld [vmem:[%s1 + $0x138] sm:$0xf]
    %v174 = vld [vmem:[%s1 + $0x13c] sm:$0xf]
    %v175 = vld [vmem:[%s1 + $0x140] sm:$0xf]
    %v176 = vld [vmem:[%s1 + $0x144] sm:$0xf]
    %v177 = vld [vmem:[%s1 + $0x148] sm:$0xf]
    %v178 = vld [vmem:[%s1 + $0x14c] sm:$0xf]
    %v179 = vld [vmem:[%s1 + $0x150] sm:$0xf]
    %v180 = vld [vmem:[%s1 + $0x154] sm:$0xf]
    %v181 = vld [vmem:[%s1 + $0x158] sm:$0xf]
    %v182 = vld [vmem:[%s1 + $0x15c] sm:$0xf]
    %v183 = vld [vmem:[%s1 + $0x160] sm:$0xf]
    %v184 = vld [vmem:[%s1 + $0x164] sm:$0xf]
    %v185 = vld [vmem:[%s1 + $0x168] sm:$0xf]
    %v186 = vld [vmem:[%s1 + $0x16c] sm:$0xf]
    %v187 = vld [vmem:[%s1 + $0x170] sm:$0xf]
    %v188 = vld [vmem:[%s1 + $0x174] sm:$0xf]
    %v189 = vld [vmem:[%s1 + $0x178] sm:$0xf]
    %v190 = vld [vmem:[%s1 + $0x17c] sm:$0xf]
    %v191 = vld [vmem:[%s1 + $0x180] sm:$0xf]
    %v192 = vld [vmem:[%s1 + $0x184] sm:$0xf]
    %v193 = vld [vmem:[%s1 + $0x188] sm:$0xf]
    %v194 = vld [vmem:[%s1 + $0x18c] sm:$0xf]
    %v195 = vld [vmem:[%s1 + $0x190] sm:$0xf]
    %v196 = vld [vmem:[%s1 + $0x194] sm:$0xf]
    %v197 = vld [vmem:[%s1 + $0x198] sm:$0xf]
    %v198 = vld [vmem:[%s1 + $0x19c] sm:$0xf]
    %v199 = vld [vmem:[%s1 + $0x1a0] sm:$0xf]
    %v200 = vld [vmem:[%s1 + $0x1a4] sm:$0xf]
    %v201 = vld [vmem:[%s1 + $0x1a8] sm:$0xf]
    %v202 = vld [vmem:[%s1 + $0x1ac] sm:$0xf]
    %v203 = vld [vmem:[%s1 + $0x1b0] sm:$0xf]
    %v204 = vld [vmem:[%s1 + $0x1b4] sm:$0xf]
    %v205 = vld [vmem:[%s1 + $0x1b8] sm:$0xf]
    %v206 = vld [vmem:[%s1 + $0x1bc] sm:$0xf]
    %v207 = vld [vmem:[%s1 + $0x1c0] sm:$0xf]
    %v208 = vld [vmem:[%s1 + $0x1c4] sm:$0xf]
    %v209 = vld [vmem:[%s1 + $0x1c8] sm:$0xf]
    %v210 = vld [vmem:[%s1 + $0x1cc] sm:$0xf]
    %v211 = vld [vmem:[%s1 + $0x1d0] sm:$0xf]
    %v212 = vld [vmem:[%s1 + $0x1d4] sm:$0xf]
    %v213 = vld [vmem:[%s1 + $0x1d8] sm:$0xf]
    %v214 = vld [vmem:[%s1 + $0x1dc] sm:$0xf]
    %v215 = vld [vmem:[%s1 + $0x1e0] sm:$0xf]
    %v216 = vld [vmem:[%s1 + $0x1e4] sm:$0xf]
    %v217 = vld [vmem:[%s1 + $0x1e8] sm:$0xf]
    %v218 = vld [vmem:[%s1 + $0x1ec] sm:$0xf]
    %v219 = vld [vmem:[%s1 + $0x1f0] sm:$0xf]
    %v220 = vld [vmem:[%s1 + $0x1f4] sm:$0xf]
    %v221 = vld [vmem:[%s1 + $0x1f8] sm:$0xf]
    %v222 = vld [vmem:[%s1 + $0x1fc] sm:$0xf]
    %v223 = vld [vmem:[%s1 + $0x200] sm:$0xf]
    %v224 = vld [vmem:[%s1 + $0x204] sm:$0xf]
    %v225 = vld [vmem:[%s1 + $0x208] sm:$0xf]
    %v226 = vld [vmem:[%s1 + $0x20c] sm:$0xf]
    %v227 = vld [vmem:[%s1 + $0x210] sm:$0xf]
    %v228 = vld [vmem:[%s1 + $0x214] sm:$0xf]
    %v229 = vld [vmem:[%s1 + $0x218] sm:$0xf]
    %v230 = vld [vmem:[%s1 + $0x21c] sm:$0xf]
    %v231 = vld [vmem:[%s1 + $0x220] sm:$0xf]
    %v232 = vld [vmem:[%s1 + $0x224] sm:$0xf]
    %v233 = vld [vmem:[%s1 + $0x228] sm:$0xf]
    %v234 = vld [vmem:[%s1 + $0x22c] sm:$0xf]
    %v235 = vld [vmem:[%s1 + $0x230] sm:$0xf]
    %v236 = vld [vmem:[%s1 + $0x234] sm:$0xf]
    %v237 = vld [vmem:[%s1 + $0x238] sm:$0xf]
    %v238 = vld [vmem:[%s1 + $0x23c] sm:$0xf]
    %v239 = vld [vmem:[%s2] sm:$0xf]
    %v240 = vld [vmem:[%s2 + $0x4] sm:$0xf]
    %v241 = vld [vmem:[%s2 + $0x8] sm:$0xf]
    %v242 = vld [vmem:[%s2 + $0xc] sm:$0xf]
    %v243 = vld [vmem:[%s2 + $0x10] sm:$0xf]
    %v244 = vld [vmem:[%s2 + $0x14] sm:$0xf]
    %v245 = vld [vmem:[%s2 + $0x18] sm:$0xf]
    %v246 = vld [vmem:[%s2 + $0x1c] sm:$0xf]
    %v247 = vld [vmem:[%s2 + $0x20] sm:$0xf]
    %v248 = vld [vmem:[%s2 + $0x24] sm:$0xf]
    %v249 = vld [vmem:[%s2 + $0x28] sm:$0xf]
    %v250 = vld [vmem:[%s2 + $0x2c] sm:$0xf]
    %v251 = vld [vmem:[%s2 + $0x30] sm:$0xf]
    %v252 = vld [vmem:[%s2 + $0x34] sm:$0xf]
    %v253 = vld [vmem:[%s2 + $0x38] sm:$0xf]
    %v254 = vld [vmem:[%s2 + $0x3c] sm:$0xf]
    %v255 = vunpack.c.l.bf16 %v239
    %v256 = vunpack.c.l.bf16 %v240
    %v257 = vunpack.c.l.bf16 %v241
    %v258 = vunpack.c.l.bf16 %v242
    %v259 = vunpack.c.l.bf16 %v243
    %v260 = vunpack.c.l.bf16 %v244
    %v261 = vunpack.c.l.bf16 %v245
    %v262 = vunpack.c.l.bf16 %v246
    %v263 = vunpack.c.l.bf16 %v247
    %v264 = vunpack.c.l.bf16 %v248
    %v265 = vunpack.c.l.bf16 %v249
    %v266 = vunpack.c.l.bf16 %v250
    %v267 = vunpack.c.l.bf16 %v251
    %v268 = vunpack.c.l.bf16 %v252
    %v269 = vunpack.c.l.bf16 %v253
    %v270 = vunpack.c.l.bf16 %v254
    %v351 = vunpack.c.l.b16 %v15
    %v352 = vunpack.c.h.b16 %v15
    %v353 = vunpack.c.l.b16 %v16
    %v354 = vunpack.c.h.b16 %v16
    %v355 = vunpack.c.l.b16 %v17
    %v356 = vunpack.c.h.b16 %v17
    %v357 = vunpack.c.l.b16 %v18
    %v358 = vunpack.c.h.b16 %v18
    %v359 = vunpack.c.l.b16 %v19
    %v360 = vunpack.c.l.b16 %v20
    %v361 = vunpack.c.h.b16 %v20
    %v362 = vunpack.c.l.b16 %v21
    %v363 = vunpack.c.h.b16 %v21
    %v364 = vunpack.c.l.b16 %v22
    %v365 = vunpack.c.h.b16 %v22
    %v366 = vunpack.c.l.b16 %v23
    %v367 = vunpack.c.h.b16 %v23
    %v368 = vunpack.c.l.b16 %v24
    %v369 = vunpack.c.l.b16 %v25
    %v370 = vunpack.c.h.b16 %v25
    %v371 = vunpack.c.l.b16 %v26
    %v372 = vunpack.c.h.b16 %v26
    %v373 = vunpack.c.l.b16 %v27
    %v374 = vunpack.c.h.b16 %v27
    %v375 = vunpack.c.l.b16 %v28
    %v376 = vunpack.c.h.b16 %v28
    %v377 = vunpack.c.l.b16 %v29
    %v378 = vunpack.c.l.b16 %v30
    %v379 = vunpack.c.h.b16 %v30
    %v380 = vunpack.c.l.b16 %v31
    %v381 = vunpack.c.h.b16 %v31
    %v382 = vunpack.c.l.b16 %v32
    %v383 = vunpack.c.h.b16 %v32
    %v384 = vunpack.c.l.b16 %v33
    %v385 = vunpack.c.h.b16 %v33
    %v386 = vunpack.c.l.b16 %v34
    %v387 = vunpack.c.l.b16 %v35
    %v388 = vunpack.c.h.b16 %v35
    %v389 = vunpack.c.l.b16 %v36
    %v390 = vunpack.c.h.b16 %v36
    %v391 = vunpack.c.l.b16 %v37
    %v392 = vunpack.c.h.b16 %v37
    %v393 = vunpack.c.l.b16 %v38
    %v394 = vunpack.c.h.b16 %v38
    %v395 = vunpack.c.l.b16 %v39
    %v396 = vunpack.c.l.b16 %v40
    %v397 = vunpack.c.h.b16 %v40
    %v398 = vunpack.c.l.b16 %v41
    %v399 = vunpack.c.h.b16 %v41
    %v400 = vunpack.c.l.b16 %v42
    %v401 = vunpack.c.h.b16 %v42
    %v402 = vunpack.c.l.b16 %v43
    %v403 = vunpack.c.h.b16 %v43
    %v404 = vunpack.c.l.b16 %v44
    %v405 = vunpack.c.l.b16 %v45
    %v406 = vunpack.c.h.b16 %v45
    %v407 = vunpack.c.l.b16 %v46
    %v408 = vunpack.c.h.b16 %v46
    %v409 = vunpack.c.l.b16 %v47
    %v410 = vunpack.c.h.b16 %v47
    %v411 = vunpack.c.l.b16 %v48
    %v412 = vunpack.c.h.b16 %v48
    %v413 = vunpack.c.l.b16 %v49
    %v414 = vunpack.c.l.b16 %v50
    %v415 = vunpack.c.h.b16 %v50
    %v416 = vunpack.c.l.b16 %v51
    %v417 = vunpack.c.h.b16 %v51
    %v418 = vunpack.c.l.b16 %v52
    %v419 = vunpack.c.h.b16 %v52
    %v420 = vunpack.c.l.b16 %v53
    %v421 = vunpack.c.h.b16 %v53
    %v422 = vunpack.c.l.b16 %v54
    %v423 = vunpack.c.l.b16 %v55
    %v424 = vunpack.c.h.b16 %v55
    %v425 = vunpack.c.l.b16 %v56
    %v426 = vunpack.c.h.b16 %v56
    %v427 = vunpack.c.l.b16 %v57
    %v428 = vunpack.c.h.b16 %v57
    %v429 = vunpack.c.l.b16 %v58
    %v430 = vunpack.c.h.b16 %v58
    %v431 = vunpack.c.l.b16 %v59
    %v432 = vunpack.c.l.b16 %v60
    %v433 = vunpack.c.h.b16 %v60
    %v434 = vunpack.c.l.b16 %v61
    %v435 = vunpack.c.h.b16 %v61
    %v436 = vunpack.c.l.b16 %v62
    %v437 = vunpack.c.h.b16 %v62
    %v438 = vunpack.c.l.b16 %v63
    %v439 = vunpack.c.h.b16 %v63
    %v440 = vunpack.c.l.b16 %v64
    %v441 = vunpack.c.l.b16 %v65
    %v442 = vunpack.c.h.b16 %v65
    %v443 = vunpack.c.l.b16 %v66
    %v444 = vunpack.c.h.b16 %v66
    %v445 = vunpack.c.l.b16 %v67
    %v446 = vunpack.c.h.b16 %v67
    %v447 = vunpack.c.l.b16 %v68
    %v448 = vunpack.c.h.b16 %v68
    %v449 = vunpack.c.l.b16 %v69
    %v450 = vunpack.c.l.b16 %v70
    %v451 = vunpack.c.h.b16 %v70
    %v452 = vunpack.c.l.b16 %v71
    %v453 = vunpack.c.h.b16 %v71
    %v454 = vunpack.c.l.b16 %v72
    %v455 = vunpack.c.h.b16 %v72
    %v456 = vunpack.c.l.b16 %v73
    %v457 = vunpack.c.h.b16 %v73
    %v458 = vunpack.c.l.b16 %v74
    %v459 = vunpack.c.l.b16 %v75
    %v460 = vunpack.c.h.b16 %v75
    %v461 = vunpack.c.l.b16 %v76
    %v462 = vunpack.c.h.b16 %v76
    %v463 = vunpack.c.l.b16 %v77
    %v464 = vunpack.c.h.b16 %v77
    %v465 = vunpack.c.l.b16 %v78
    %v466 = vunpack.c.h.b16 %v78
    %v467 = vunpack.c.l.b16 %v79
    %v468 = vunpack.c.l.b16 %v80
    %v469 = vunpack.c.h.b16 %v80
    %v470 = vunpack.c.l.b16 %v81
    %v471 = vunpack.c.h.b16 %v81
    %v472 = vunpack.c.l.b16 %v82
    %v473 = vunpack.c.h.b16 %v82
    %v474 = vunpack.c.l.b16 %v83
    %v475 = vunpack.c.h.b16 %v83
    %v476 = vunpack.c.l.b16 %v84
    %v477 = vunpack.c.l.b16 %v85
    %v478 = vunpack.c.h.b16 %v85
    %v479 = vunpack.c.l.b16 %v86
    %v480 = vunpack.c.h.b16 %v86
    %v481 = vunpack.c.l.b16 %v87
    %v482 = vunpack.c.h.b16 %v87
    %v483 = vunpack.c.l.b16 %v88
    %v484 = vunpack.c.h.b16 %v88
    %v485 = vunpack.c.l.b16 %v89
    %v486 = vunpack.c.l.b16 %v90
    %v487 = vunpack.c.h.b16 %v90
    %v488 = vunpack.c.l.b16 %v91
    %v489 = vunpack.c.h.b16 %v91
    %v490 = vunpack.c.l.b16 %v92
    %v491 = vunpack.c.h.b16 %v92
    %v492 = vunpack.c.l.b16 %v93
    %v493 = vunpack.c.h.b16 %v93
    %v494 = vunpack.c.l.b16 %v94
    %v495 = vpack.c.b16 %v360, %v351
    %v496 = vpack.c.b16 %v361, %v352
    %v497 = vpack.c.b16 %v362, %v353
    %v498 = vpack.c.b16 %v363, %v354
    %v499 = vpack.c.b16 %v364, %v355
    %v500 = vpack.c.b16 %v365, %v356
    %v501 = vpack.c.b16 %v366, %v357
    %v502 = vpack.c.b16 %v367, %v358
    %v503 = vpack.c.b16 %v368, %v359
    %v504 = vpack.c.b16 %v378, %v369
    %v505 = vpack.c.b16 %v379, %v370
    %v506 = vpack.c.b16 %v380, %v371
    %v507 = vpack.c.b16 %v381, %v372
    %v508 = vpack.c.b16 %v382, %v373
    %v509 = vpack.c.b16 %v383, %v374
    %v510 = vpack.c.b16 %v384, %v375
    %v511 = vpack.c.b16 %v385, %v376
    %v512 = vpack.c.b16 %v386, %v377
    %v513 = vpack.c.b16 %v396, %v387
    %v514 = vpack.c.b16 %v397, %v388
    %v515 = vpack.c.b16 %v398, %v389
    %v516 = vpack.c.b16 %v399, %v390
    %v517 = vpack.c.b16 %v400, %v391
    %v518 = vpack.c.b16 %v401, %v392
    %v519 = vpack.c.b16 %v402, %v393
    %v520 = vpack.c.b16 %v403, %v394
    %v521 = vpack.c.b16 %v404, %v395
    %v522 = vpack.c.b16 %v414, %v405
    %v523 = vpack.c.b16 %v415, %v406
    %v524 = vpack.c.b16 %v416, %v407
    %v525 = vpack.c.b16 %v417, %v408
    %v526 = vpack.c.b16 %v418, %v409
    %v527 = vpack.c.b16 %v419, %v410
    %v528 = vpack.c.b16 %v420, %v411
    %v529 = vpack.c.b16 %v421, %v412
    %v530 = vpack.c.b16 %v422, %v413
    %v531 = vpack.c.b16 %v432, %v423
    %v532 = vpack.c.b16 %v433, %v424
    %v533 = vpack.c.b16 %v434, %v425
    %v534 = vpack.c.b16 %v435, %v426
    %v535 = vpack.c.b16 %v436, %v427
    %v536 = vpack.c.b16 %v437, %v428
    %v537 = vpack.c.b16 %v438, %v429
    %v538 = vpack.c.b16 %v439, %v430
    %v539 = vpack.c.b16 %v440, %v431
    %v540 = vpack.c.b16 %v450, %v441
    %v541 = vpack.c.b16 %v451, %v442
    %v542 = vpack.c.b16 %v452, %v443
    %v543 = vpack.c.b16 %v453, %v444
    %v544 = vpack.c.b16 %v454, %v445
    %v545 = vpack.c.b16 %v455, %v446
    %v546 = vpack.c.b16 %v456, %v447
    %v547 = vpack.c.b16 %v457, %v448
    %v548 = vpack.c.b16 %v458, %v449
    %v549 = vpack.c.b16 %v468, %v459
    %v550 = vpack.c.b16 %v469, %v460
    %v551 = vpack.c.b16 %v470, %v461
    %v552 = vpack.c.b16 %v471, %v462
    %v553 = vpack.c.b16 %v472, %v463
    %v554 = vpack.c.b16 %v473, %v464
    %v555 = vpack.c.b16 %v474, %v465
    %v556 = vpack.c.b16 %v475, %v466
    %v557 = vpack.c.b16 %v476, %v467
    %v558 = vpack.c.b16 %v486, %v477
    %v559 = vpack.c.b16 %v487, %v478
    %v560 = vpack.c.b16 %v488, %v479
    %v561 = vpack.c.b16 %v489, %v480
    %v562 = vpack.c.b16 %v490, %v481
    %v563 = vpack.c.b16 %v491, %v482
    %v564 = vpack.c.b16 %v492, %v483
    %v565 = vpack.c.b16 %v493, %v484
    %v566 = vpack.c.b16 %v494, %v485
    %v783 = vunpack.c.l.b16 %v95
    %v784 = vunpack.c.l.b16 %v96
    %v785 = vunpack.c.l.b16 %v97
    %v786 = vunpack.c.l.b16 %v98
    %v787 = vunpack.c.l.b16 %v99
    %v788 = vunpack.c.l.b16 %v100
    %v789 = vunpack.c.l.b16 %v101
    %v790 = vunpack.c.l.b16 %v102
    %v791 = vunpack.c.l.b16 %v103
    %v792 = vunpack.c.l.b16 %v104
    %v793 = vunpack.c.l.b16 %v105
    %v794 = vunpack.c.l.b16 %v106
    %v795 = vunpack.c.l.b16 %v107
    %v796 = vunpack.c.l.b16 %v108
    %v797 = vunpack.c.l.b16 %v109
    %v798 = vunpack.c.l.b16 %v110
    %v799 = vunpack.c.l.b16 %v111
    %v800 = vunpack.c.l.b16 %v112
    %v801 = vunpack.c.l.b16 %v113
    %v802 = vunpack.c.l.b16 %v114
    %v803 = vunpack.c.l.b16 %v115
    %v804 = vunpack.c.l.b16 %v116
    %v805 = vunpack.c.l.b16 %v117
    %v806 = vunpack.c.l.b16 %v118
    %v807 = vunpack.c.l.b16 %v119
    %v808 = vunpack.c.l.b16 %v120
    %v809 = vunpack.c.l.b16 %v121
    %v810 = vunpack.c.l.b16 %v122
    %v811 = vunpack.c.l.b16 %v123
    %v812 = vunpack.c.l.b16 %v124
    %v813 = vunpack.c.l.b16 %v125
    %v814 = vunpack.c.l.b16 %v126
    %v815 = vunpack.c.l.b16 %v127
    %v816 = vunpack.c.l.b16 %v128
    %v817 = vunpack.c.l.b16 %v129
    %v818 = vunpack.c.l.b16 %v130
    %v819 = vunpack.c.l.b16 %v131
    %v820 = vunpack.c.l.b16 %v132
    %v821 = vunpack.c.l.b16 %v133
    %v822 = vunpack.c.l.b16 %v134
    %v823 = vunpack.c.l.b16 %v135
    %v824 = vunpack.c.l.b16 %v136
    %v825 = vunpack.c.l.b16 %v137
    %v826 = vunpack.c.l.b16 %v138
    %v827 = vunpack.c.l.b16 %v139
    %v828 = vunpack.c.l.b16 %v140
    %v829 = vunpack.c.l.b16 %v141
    %v830 = vunpack.c.l.b16 %v142
    %v831 = vunpack.c.l.b16 %v143
    %v832 = vunpack.c.l.b16 %v144
    %v833 = vunpack.c.l.b16 %v145
    %v834 = vunpack.c.l.b16 %v146
    %v835 = vunpack.c.l.b16 %v147
    %v836 = vunpack.c.l.b16 %v148
    %v837 = vunpack.c.l.b16 %v149
    %v838 = vunpack.c.l.b16 %v150
    %v839 = vunpack.c.l.b16 %v151
    %v840 = vunpack.c.l.b16 %v152
    %v841 = vunpack.c.l.b16 %v153
    %v842 = vunpack.c.l.b16 %v154
    %v843 = vunpack.c.l.b16 %v155
    %v844 = vunpack.c.l.b16 %v156
    %v845 = vunpack.c.l.b16 %v157
    %v846 = vunpack.c.l.b16 %v158
    %v847 = vunpack.c.l.b16 %v159
    %v848 = vunpack.c.l.b16 %v160
    %v849 = vunpack.c.l.b16 %v161
    %v850 = vunpack.c.l.b16 %v162
    %v851 = vunpack.c.l.b16 %v163
    %v852 = vunpack.c.l.b16 %v164
    %v853 = vunpack.c.l.b16 %v165
    %v854 = vunpack.c.l.b16 %v166
    %v855 = vunpack.c.l.b16 %v167
    %v856 = vunpack.c.l.b16 %v168
    %v857 = vunpack.c.l.b16 %v169
    %v858 = vunpack.c.l.b16 %v170
    %v859 = vunpack.c.l.b16 %v171
    %v860 = vunpack.c.l.b16 %v172
    %v861 = vunpack.c.l.b16 %v173
    %v862 = vunpack.c.l.b16 %v174
    %v863 = vunpack.c.l.b16 %v175
    %v864 = vunpack.c.l.b16 %v176
    %v865 = vunpack.c.l.b16 %v177
    %v866 = vunpack.c.l.b16 %v178
    %v867 = vunpack.c.l.b16 %v179
    %v868 = vunpack.c.l.b16 %v180
    %v869 = vunpack.c.l.b16 %v181
    %v870 = vunpack.c.l.b16 %v182
    %v871 = vunpack.c.l.b16 %v183
    %v872 = vunpack.c.l.b16 %v184
    %v873 = vunpack.c.l.b16 %v185
    %v874 = vunpack.c.l.b16 %v186
    %v875 = vunpack.c.l.b16 %v187
    %v876 = vunpack.c.l.b16 %v188
    %v877 = vunpack.c.l.b16 %v189
    %v878 = vunpack.c.l.b16 %v190
    %v879 = vunpack.c.l.b16 %v191
    %v880 = vunpack.c.l.b16 %v192
    %v881 = vunpack.c.l.b16 %v193
    %v882 = vunpack.c.l.b16 %v194
    %v883 = vunpack.c.l.b16 %v195
    %v884 = vunpack.c.l.b16 %v196
    %v885 = vunpack.c.l.b16 %v197
    %v886 = vunpack.c.l.b16 %v198
    %v887 = vunpack.c.l.b16 %v199
    %v888 = vunpack.c.l.b16 %v200
    %v889 = vunpack.c.l.b16 %v201
    %v890 = vunpack.c.l.b16 %v202
    %v891 = vunpack.c.l.b16 %v203
    %v892 = vunpack.c.l.b16 %v204
    %v893 = vunpack.c.l.b16 %v205
    %v894 = vunpack.c.l.b16 %v206
    %v895 = vunpack.c.l.b16 %v207
    %v896 = vunpack.c.l.b16 %v208
    %v897 = vunpack.c.l.b16 %v209
    %v898 = vunpack.c.l.b16 %v210
    %v899 = vunpack.c.l.b16 %v211
    %v900 = vunpack.c.l.b16 %v212
    %v901 = vunpack.c.l.b16 %v213
    %v902 = vunpack.c.l.b16 %v214
    %v903 = vunpack.c.l.b16 %v215
    %v904 = vunpack.c.l.b16 %v216
    %v905 = vunpack.c.l.b16 %v217
    %v906 = vunpack.c.l.b16 %v218
    %v907 = vunpack.c.l.b16 %v219
    %v908 = vunpack.c.l.b16 %v220
    %v909 = vunpack.c.l.b16 %v221
    %v910 = vunpack.c.l.b16 %v222
    %v911 = vunpack.c.l.b16 %v223
    %v912 = vunpack.c.l.b16 %v224
    %v913 = vunpack.c.l.b16 %v225
    %v914 = vunpack.c.l.b16 %v226
    %v915 = vunpack.c.l.b16 %v227
    %v916 = vunpack.c.l.b16 %v228
    %v917 = vunpack.c.l.b16 %v229
    %v918 = vunpack.c.l.b16 %v230
    %v919 = vunpack.c.l.b16 %v231
    %v920 = vunpack.c.l.b16 %v232
    %v921 = vunpack.c.l.b16 %v233
    %v922 = vunpack.c.l.b16 %v234
    %v923 = vunpack.c.l.b16 %v235
    %v924 = vunpack.c.l.b16 %v236
    %v925 = vunpack.c.l.b16 %v237
    %v926 = vunpack.c.l.b16 %v238
    %v927 = vpack.c.b16 %v784, %v783
    %v928 = vpack.c.b16 %v786, %v785
    %v929 = vpack.c.b16 %v788, %v787
    %v930 = vpack.c.b16 %v790, %v789
    %v931 = vpack.c.b16 %v792, %v791
    %v932 = vpack.c.b16 %v794, %v793
    %v933 = vpack.c.b16 %v796, %v795
    %v934 = vpack.c.b16 %v798, %v797
    %v935 = vpack.c.b16 %v800, %v799
    %v936 = vpack.c.b16 %v802, %v801
    %v937 = vpack.c.b16 %v804, %v803
    %v938 = vpack.c.b16 %v806, %v805
    %v939 = vpack.c.b16 %v808, %v807
    %v940 = vpack.c.b16 %v810, %v809
    %v941 = vpack.c.b16 %v812, %v811
    %v942 = vpack.c.b16 %v814, %v813
    %v943 = vpack.c.b16 %v816, %v815
    %v944 = vpack.c.b16 %v818, %v817
    %v945 = vpack.c.b16 %v820, %v819
    %v946 = vpack.c.b16 %v822, %v821
    %v947 = vpack.c.b16 %v824, %v823
    %v948 = vpack.c.b16 %v826, %v825
    %v949 = vpack.c.b16 %v828, %v827
    %v950 = vpack.c.b16 %v830, %v829
    %v951 = vpack.c.b16 %v832, %v831
    %v952 = vpack.c.b16 %v834, %v833
    %v953 = vpack.c.b16 %v836, %v835
    %v954 = vpack.c.b16 %v838, %v837
    %v955 = vpack.c.b16 %v840, %v839
    %v956 = vpack.c.b16 %v842, %v841
    %v957 = vpack.c.b16 %v844, %v843
    %v958 = vpack.c.b16 %v846, %v845
    %v959 = vpack.c.b16 %v848, %v847
    %v960 = vpack.c.b16 %v850, %v849
    %v961 = vpack.c.b16 %v852, %v851
    %v962 = vpack.c.b16 %v854, %v853
    %v963 = vpack.c.b16 %v856, %v855
    %v964 = vpack.c.b16 %v858, %v857
    %v965 = vpack.c.b16 %v860, %v859
    %v966 = vpack.c.b16 %v862, %v861
    %v967 = vpack.c.b16 %v864, %v863
    %v968 = vpack.c.b16 %v866, %v865
    %v969 = vpack.c.b16 %v868, %v867
    %v970 = vpack.c.b16 %v870, %v869
    %v971 = vpack.c.b16 %v872, %v871
    %v972 = vpack.c.b16 %v874, %v873
    %v973 = vpack.c.b16 %v876, %v875
    %v974 = vpack.c.b16 %v878, %v877
    %v975 = vpack.c.b16 %v880, %v879
    %v976 = vpack.c.b16 %v882, %v881
    %v977 = vpack.c.b16 %v884, %v883
    %v978 = vpack.c.b16 %v886, %v885
    %v979 = vpack.c.b16 %v888, %v887
    %v980 = vpack.c.b16 %v890, %v889
    %v981 = vpack.c.b16 %v892, %v891
    %v982 = vpack.c.b16 %v894, %v893
    %v983 = vpack.c.b16 %v896, %v895
    %v984 = vpack.c.b16 %v898, %v897
    %v985 = vpack.c.b16 %v900, %v899
    %v986 = vpack.c.b16 %v902, %v901
    %v987 = vpack.c.b16 %v904, %v903
    %v988 = vpack.c.b16 %v906, %v905
    %v989 = vpack.c.b16 %v908, %v907
    %v990 = vpack.c.b16 %v910, %v909
    %v991 = vpack.c.b16 %v912, %v911
    %v992 = vpack.c.b16 %v914, %v913
    %v993 = vpack.c.b16 %v916, %v915
    %v994 = vpack.c.b16 %v918, %v917
    %v995 = vpack.c.b16 %v920, %v919
    %v996 = vpack.c.b16 %v922, %v921
    %v997 = vpack.c.b16 %v924, %v923
    %v998 = vpack.c.b16 %v926, %v925
    %1071 = vmatpush.bf16.msra.mxu0 %v934
    %1072 = vmatpush.bf16.msra.mxu0 %v933
    %1073 = vmatpush.bf16.msra.mxu0 %v932
    %1074 = vmatpush.bf16.msra.mxu0 %v931
    %1075 = vmatpush.bf16.msra.mxu0 %v930
    %1076 = vmatpush.bf16.msra.mxu0 %v929
    %1077 = vmatpush.bf16.msra.mxu0 %v928
    %1078 = vmatpush.bf16.msra.mxu0 %v927
    %1079 = vmatmul.bf16.gmra.mxu0 %v495
    %v1080 = vpop.f32.mrf.mxu0
    %v1081 = vadd.f32 %v255, %v1080
    %v1082 = vpop.f32.mrf.mxu0
    %v1083 = vadd.f32 %v256, %v1082
    %1084 = vmatmul.bf16.gmra.mxu0 %v504
    %v1085 = vpop.f32.mrf.mxu0
    %v1086 = vadd.f32 %v257, %v1085
    %v1087 = vpop.f32.mrf.mxu0
    %v1088 = vadd.f32 %v258, %v1087
    %1089 = vmatmul.bf16.gmra.mxu0 %v513
    %v1090 = vpop.f32.mrf.mxu0
    %v1091 = vadd.f32 %v259, %v1090
    %v1092 = vpop.f32.mrf.mxu0
    %v1093 = vadd.f32 %v260, %v1092
    %1094 = vmatmul.bf16.gmra.mxu0 %v522
    %v1095 = vpop.f32.mrf.mxu0
    %v1096 = vadd.f32 %v261, %v1095
    %v1097 = vpop.f32.mrf.mxu0
    %v1098 = vadd.f32 %v262, %v1097
    %1099 = vmatmul.bf16.gmra.mxu0 %v531
    %v1100 = vpop.f32.mrf.mxu0
    %v1101 = vadd.f32 %v263, %v1100
    %v1102 = vpop.f32.mrf.mxu0
    %v1103 = vadd.f32 %v264, %v1102
    %1104 = vmatmul.bf16.gmra.mxu0 %v540
    %v1105 = vpop.f32.mrf.mxu0
    %v1106 = vadd.f32 %v265, %v1105
    %v1107 = vpop.f32.mrf.mxu0
    %v1108 = vadd.f32 %v266, %v1107
    %1109 = vmatmul.bf16.gmra.mxu0 %v549
    %v1110 = vpop.f32.mrf.mxu0
    %v1111 = vadd.f32 %v267, %v1110
    %v1112 = vpop.f32.mrf.mxu0
    %v1113 = vadd.f32 %v268, %v1112
    %1114 = vmatmul.bf16.gmra.mxu0 %v558
    %v1115 = vpop.f32.mrf.mxu0
    %v1116 = vadd.f32 %v269, %v1115
    %v1117 = vpop.f32.mrf.mxu0
    %v1118 = vadd.f32 %v270, %v1117
    %1119 = vdwg.mxu0
    %1120 = vmatpush.bf16.msra.mxu0 %v942
    %1121 = vmatpush.bf16.msra.mxu0 %v941
    %1122 = vmatpush.bf16.msra.mxu0 %v940
    %1123 = vmatpush.bf16.msra.mxu0 %v939
    %1124 = vmatpush.bf16.msra.mxu0 %v938
    %1125 = vmatpush.bf16.msra.mxu0 %v937
    %1126 = vmatpush.bf16.msra.mxu0 %v936
    %1127 = vmatpush.bf16.msra.mxu0 %v935
    %1128 = vmatmul.bf16.gmra.mxu0 %v496
    %v1129 = vpop.f32.mrf.mxu0
    %v1130 = vadd.f32 %v1081, %v1129
    %v1131 = vpop.f32.mrf.mxu0
    %v1132 = vadd.f32 %v1083, %v1131
    %1133 = vmatmul.bf16.gmra.mxu0 %v505
    %v1134 = vpop.f32.mrf.mxu0
    %v1135 = vadd.f32 %v1086, %v1134
    %v1136 = vpop.f32.mrf.mxu0
    %v1137 = vadd.f32 %v1088, %v1136
    %1138 = vmatmul.bf16.gmra.mxu0 %v514
    %v1139 = vpop.f32.mrf.mxu0
    %v1140 = vadd.f32 %v1091, %v1139
    %v1141 = vpop.f32.mrf.mxu0
    %v1142 = vadd.f32 %v1093, %v1141
    %1143 = vmatmul.bf16.gmra.mxu0 %v523
    %v1144 = vpop.f32.mrf.mxu0
    %v1145 = vadd.f32 %v1096, %v1144
    %v1146 = vpop.f32.mrf.mxu0
    %v1147 = vadd.f32 %v1098, %v1146
    %1148 = vmatmul.bf16.gmra.mxu0 %v532
    %v1149 = vpop.f32.mrf.mxu0
    %v1150 = vadd.f32 %v1101, %v1149
    %v1151 = vpop.f32.mrf.mxu0
    %v1152 = vadd.f32 %v1103, %v1151
    %1153 = vmatmul.bf16.gmra.mxu0 %v541
    %v1154 = vpop.f32.mrf.mxu0
    %v1155 = vadd.f32 %v1106, %v1154
    %v1156 = vpop.f32.mrf.mxu0
    %v1157 = vadd.f32 %v1108, %v1156
    %1158 = vmatmul.bf16.gmra.mxu0 %v550
    %v1159 = vpop.f32.mrf.mxu0
    %v1160 = vadd.f32 %v1111, %v1159
    %v1161 = vpop.f32.mrf.mxu0
    %v1162 = vadd.f32 %v1113, %v1161
    %1163 = vmatmul.bf16.gmra.mxu0 %v559
    %v1164 = vpop.f32.mrf.mxu0
    %v1165 = vadd.f32 %v1116, %v1164
    %v1166 = vpop.f32.mrf.mxu0
    %v1167 = vadd.f32 %v1118, %v1166
    %1168 = vdwg.mxu0
    %1169 = vmatpush.bf16.msra.mxu0 %v950
    %1170 = vmatpush.bf16.msra.mxu0 %v949
    %1171 = vmatpush.bf16.msra.mxu0 %v948
    %1172 = vmatpush.bf16.msra.mxu0 %v947
    %1173 = vmatpush.bf16.msra.mxu0 %v946
    %1174 = vmatpush.bf16.msra.mxu0 %v945
    %1175 = vmatpush.bf16.msra.mxu0 %v944
    %1176 = vmatpush.bf16.msra.mxu0 %v943
    %1177 = vmatmul.bf16.gmra.mxu0 %v497
    %v1178 = vpop.f32.mrf.mxu0
    %v1179 = vadd.f32 %v1130, %v1178
    %v1180 = vpop.f32.mrf.mxu0
    %v1181 = vadd.f32 %v1132, %v1180
    %1182 = vmatmul.bf16.gmra.mxu0 %v506
    %v1183 = vpop.f32.mrf.mxu0
    %v1184 = vadd.f32 %v1135, %v1183
    %v1185 = vpop.f32.mrf.mxu0
    %v1186 = vadd.f32 %v1137, %v1185
    %1187 = vmatmul.bf16.gmra.mxu0 %v515
    %v1188 = vpop.f32.mrf.mxu0
    %v1189 = vadd.f32 %v1140, %v1188
    %v1190 = vpop.f32.mrf.mxu0
    %v1191 = vadd.f32 %v1142, %v1190
    %1192 = vmatmul.bf16.gmra.mxu0 %v524
    %v1193 = vpop.f32.mrf.mxu0
    %v1194 = vadd.f32 %v1145, %v1193
    %v1195 = vpop.f32.mrf.mxu0
    %v1196 = vadd.f32 %v1147, %v1195
    %1197 = vmatmul.bf16.gmra.mxu0 %v533
    %v1198 = vpop.f32.mrf.mxu0
    %v1199 = vadd.f32 %v1150, %v1198
    %v1200 = vpop.f32.mrf.mxu0
    %v1201 = vadd.f32 %v1152, %v1200
    %1202 = vmatmul.bf16.gmra.mxu0 %v542
    %v1203 = vpop.f32.mrf.mxu0
    %v1204 = vadd.f32 %v1155, %v1203
    %v1205 = vpop.f32.mrf.mxu0
    %v1206 = vadd.f32 %v1157, %v1205
    %1207 = vmatmul.bf16.gmra.mxu0 %v551
    %v1208 = vpop.f32.mrf.mxu0
    %v1209 = vadd.f32 %v1160, %v1208
    %v1210 = vpop.f32.mrf.mxu0
    %v1211 = vadd.f32 %v1162, %v1210
    %1212 = vmatmul.bf16.gmra.mxu0 %v560
    %v1213 = vpop.f32.mrf.mxu0
    %v1214 = vadd.f32 %v1165, %v1213
    %v1215 = vpop.f32.mrf.mxu0
    %v1216 = vadd.f32 %v1167, %v1215
    %1217 = vdwg.mxu0
    %1218 = vmatpush.bf16.msra.mxu0 %v958
    %1219 = vmatpush.bf16.msra.mxu0 %v957
    %1220 = vmatpush.bf16.msra.mxu0 %v956
    %1221 = vmatpush.bf16.msra.mxu0 %v955
    %1222 = vmatpush.bf16.msra.mxu0 %v954
    %1223 = vmatpush.bf16.msra.mxu0 %v953
    %1224 = vmatpush.bf16.msra.mxu0 %v952
    %1225 = vmatpush.bf16.msra.mxu0 %v951
    %1226 = vmatmul.bf16.gmra.mxu0 %v498
    %v1227 = vpop.f32.mrf.mxu0
    %v1228 = vadd.f32 %v1179, %v1227
    %v1229 = vpop.f32.mrf.mxu0
    %v1230 = vadd.f32 %v1181, %v1229
    %1231 = vmatmul.bf16.gmra.mxu0 %v507
    %v1232 = vpop.f32.mrf.mxu0
    %v1233 = vadd.f32 %v1184, %v1232
    %v1234 = vpop.f32.mrf.mxu0
    %v1235 = vadd.f32 %v1186, %v1234
    %1236 = vmatmul.bf16.gmra.mxu0 %v516
    %v1237 = vpop.f32.mrf.mxu0
    %v1238 = vadd.f32 %v1189, %v1237
    %v1239 = vpop.f32.mrf.mxu0
    %v1240 = vadd.f32 %v1191, %v1239
    %1241 = vmatmul.bf16.gmra.mxu0 %v525
    %v1242 = vpop.f32.mrf.mxu0
    %v1243 = vadd.f32 %v1194, %v1242
    %v1244 = vpop.f32.mrf.mxu0
    %v1245 = vadd.f32 %v1196, %v1244
    %1246 = vmatmul.bf16.gmra.mxu0 %v534
    %v1247 = vpop.f32.mrf.mxu0
    %v1248 = vadd.f32 %v1199, %v1247
    %v1249 = vpop.f32.mrf.mxu0
    %v1250 = vadd.f32 %v1201, %v1249
    %1251 = vmatmul.bf16.gmra.mxu0 %v543
    %v1252 = vpop.f32.mrf.mxu0
    %v1253 = vadd.f32 %v1204, %v1252
    %v1254 = vpop.f32.mrf.mxu0
    %v1255 = vadd.f32 %v1206, %v1254
    %1256 = vmatmul.bf16.gmra.mxu0 %v552
    %v1257 = vpop.f32.mrf.mxu0
    %v1258 = vadd.f32 %v1209, %v1257
    %v1259 = vpop.f32.mrf.mxu0
    %v1260 = vadd.f32 %v1211, %v1259
    %1261 = vmatmul.bf16.gmra.mxu0 %v561
    %v1262 = vpop.f32.mrf.mxu0
    %v1263 = vadd.f32 %v1214, %v1262
    %v1264 = vpop.f32.mrf.mxu0
    %v1265 = vadd.f32 %v1216, %v1264
    %1266 = vdwg.mxu0
    %1267 = vmatpush.bf16.msra.mxu0 %v966
    %1268 = vmatpush.bf16.msra.mxu0 %v965
    %1269 = vmatpush.bf16.msra.mxu0 %v964
    %1270 = vmatpush.bf16.msra.mxu0 %v963
    %1271 = vmatpush.bf16.msra.mxu0 %v962
    %1272 = vmatpush.bf16.msra.mxu0 %v961
    %1273 = vmatpush.bf16.msra.mxu0 %v960
    %1274 = vmatpush.bf16.msra.mxu0 %v959
    %1275 = vmatmul.bf16.gmra.mxu0 %v499
    %v1276 = vpop.f32.mrf.mxu0
    %v1277 = vadd.f32 %v1228, %v1276
    %v1278 = vpop.f32.mrf.mxu0
    %v1279 = vadd.f32 %v1230, %v1278
    %1280 = vmatmul.bf16.gmra.mxu0 %v508
    %v1281 = vpop.f32.mrf.mxu0
    %v1282 = vadd.f32 %v1233, %v1281
    %v1283 = vpop.f32.mrf.mxu0
    %v1284 = vadd.f32 %v1235, %v1283
    %1285 = vmatmul.bf16.gmra.mxu0 %v517
    %v1286 = vpop.f32.mrf.mxu0
    %v1287 = vadd.f32 %v1238, %v1286
    %v1288 = vpop.f32.mrf.mxu0
    %v1289 = vadd.f32 %v1240, %v1288
    %1290 = vmatmul.bf16.gmra.mxu0 %v526
    %v1291 = vpop.f32.mrf.mxu0
    %v1292 = vadd.f32 %v1243, %v1291
    %v1293 = vpop.f32.mrf.mxu0
    %v1294 = vadd.f32 %v1245, %v1293
    %1295 = vmatmul.bf16.gmra.mxu0 %v535
    %v1296 = vpop.f32.mrf.mxu0
    %v1297 = vadd.f32 %v1248, %v1296
    %v1298 = vpop.f32.mrf.mxu0
    %v1299 = vadd.f32 %v1250, %v1298
    %1300 = vmatmul.bf16.gmra.mxu0 %v544
    %v1301 = vpop.f32.mrf.mxu0
    %v1302 = vadd.f32 %v1253, %v1301
    %v1303 = vpop.f32.mrf.mxu0
    %v1304 = vadd.f32 %v1255, %v1303
    %1305 = vmatmul.bf16.gmra.mxu0 %v553
    %v1306 = vpop.f32.mrf.mxu0
    %v1307 = vadd.f32 %v1258, %v1306
    %v1308 = vpop.f32.mrf.mxu0
    %v1309 = vadd.f32 %v1260, %v1308
    %1310 = vmatmul.bf16.gmra.mxu0 %v562
    %v1311 = vpop.f32.mrf.mxu0
    %v1312 = vadd.f32 %v1263, %v1311
    %v1313 = vpop.f32.mrf.mxu0
    %v1314 = vadd.f32 %v1265, %v1313
    %1315 = vdwg.mxu0
    %1316 = vmatpush.bf16.msra.mxu0 %v974
    %1317 = vmatpush.bf16.msra.mxu0 %v973
    %1318 = vmatpush.bf16.msra.mxu0 %v972
    %1319 = vmatpush.bf16.msra.mxu0 %v971
    %1320 = vmatpush.bf16.msra.mxu0 %v970
    %1321 = vmatpush.bf16.msra.mxu0 %v969
    %1322 = vmatpush.bf16.msra.mxu0 %v968
    %1323 = vmatpush.bf16.msra.mxu0 %v967
    %1324 = vmatmul.bf16.gmra.mxu0 %v500
    %v1325 = vpop.f32.mrf.mxu0
    %v1326 = vadd.f32 %v1277, %v1325
    %v1327 = vpop.f32.mrf.mxu0
    %v1328 = vadd.f32 %v1279, %v1327
    %1329 = vmatmul.bf16.gmra.mxu0 %v509
    %v1330 = vpop.f32.mrf.mxu0
    %v1331 = vadd.f32 %v1282, %v1330
    %v1332 = vpop.f32.mrf.mxu0
    %v1333 = vadd.f32 %v1284, %v1332
    %1334 = vmatmul.bf16.gmra.mxu0 %v518
    %v1335 = vpop.f32.mrf.mxu0
    %v1336 = vadd.f32 %v1287, %v1335
    %v1337 = vpop.f32.mrf.mxu0
    %v1338 = vadd.f32 %v1289, %v1337
    %1339 = vmatmul.bf16.gmra.mxu0 %v527
    %v1340 = vpop.f32.mrf.mxu0
    %v1341 = vadd.f32 %v1292, %v1340
    %v1342 = vpop.f32.mrf.mxu0
    %v1343 = vadd.f32 %v1294, %v1342
    %1344 = vmatmul.bf16.gmra.mxu0 %v536
    %v1345 = vpop.f32.mrf.mxu0
    %v1346 = vadd.f32 %v1297, %v1345
    %v1347 = vpop.f32.mrf.mxu0
    %v1348 = vadd.f32 %v1299, %v1347
    %1349 = vmatmul.bf16.gmra.mxu0 %v545
    %v1350 = vpop.f32.mrf.mxu0
    %v1351 = vadd.f32 %v1302, %v1350
    %v1352 = vpop.f32.mrf.mxu0
    %v1353 = vadd.f32 %v1304, %v1352
    %1354 = vmatmul.bf16.gmra.mxu0 %v554
    %v1355 = vpop.f32.mrf.mxu0
    %v1356 = vadd.f32 %v1307, %v1355
    %v1357 = vpop.f32.mrf.mxu0
    %v1358 = vadd.f32 %v1309, %v1357
    %1359 = vmatmul.bf16.gmra.mxu0 %v563
    %v1360 = vpop.f32.mrf.mxu0
    %v1361 = vadd.f32 %v1312, %v1360
    %v1362 = vpop.f32.mrf.mxu0
    %v1363 = vadd.f32 %v1314, %v1362
    %1364 = vdwg.mxu0
    %1365 = vmatpush.bf16.msra.mxu0 %v982
    %1366 = vmatpush.bf16.msra.mxu0 %v981
    %1367 = vmatpush.bf16.msra.mxu0 %v980
    %1368 = vmatpush.bf16.msra.mxu0 %v979
    %1369 = vmatpush.bf16.msra.mxu0 %v978
    %1370 = vmatpush.bf16.msra.mxu0 %v977
    %1371 = vmatpush.bf16.msra.mxu0 %v976
    %1372 = vmatpush.bf16.msra.mxu0 %v975
    %1373 = vmatmul.bf16.gmra.mxu0 %v501
    %v1374 = vpop.f32.mrf.mxu0
    %v1375 = vadd.f32 %v1326, %v1374
    %v1376 = vpop.f32.mrf.mxu0
    %v1377 = vadd.f32 %v1328, %v1376
    %1378 = vmatmul.bf16.gmra.mxu0 %v510
    %v1379 = vpop.f32.mrf.mxu0
    %v1380 = vadd.f32 %v1331, %v1379
    %v1381 = vpop.f32.mrf.mxu0
    %v1382 = vadd.f32 %v1333, %v1381
    %1383 = vmatmul.bf16.gmra.mxu0 %v519
    %v1384 = vpop.f32.mrf.mxu0
    %v1385 = vadd.f32 %v1336, %v1384
    %v1386 = vpop.f32.mrf.mxu0
    %v1387 = vadd.f32 %v1338, %v1386
    %1388 = vmatmul.bf16.gmra.mxu0 %v528
    %v1389 = vpop.f32.mrf.mxu0
    %v1390 = vadd.f32 %v1341, %v1389
    %v1391 = vpop.f32.mrf.mxu0
    %v1392 = vadd.f32 %v1343, %v1391
    %1393 = vmatmul.bf16.gmra.mxu0 %v537
    %v1394 = vpop.f32.mrf.mxu0
    %v1395 = vadd.f32 %v1346, %v1394
    %v1396 = vpop.f32.mrf.mxu0
    %v1397 = vadd.f32 %v1348, %v1396
    %1398 = vmatmul.bf16.gmra.mxu0 %v546
    %v1399 = vpop.f32.mrf.mxu0
    %v1400 = vadd.f32 %v1351, %v1399
    %v1401 = vpop.f32.mrf.mxu0
    %v1402 = vadd.f32 %v1353, %v1401
    %1403 = vmatmul.bf16.gmra.mxu0 %v555
    %v1404 = vpop.f32.mrf.mxu0
    %v1405 = vadd.f32 %v1356, %v1404
    %v1406 = vpop.f32.mrf.mxu0
    %v1407 = vadd.f32 %v1358, %v1406
    %1408 = vmatmul.bf16.gmra.mxu0 %v564
    %v1409 = vpop.f32.mrf.mxu0
    %v1410 = vadd.f32 %v1361, %v1409
    %v1411 = vpop.f32.mrf.mxu0
    %v1412 = vadd.f32 %v1363, %v1411
    %1413 = vdwg.mxu0
    %1414 = vmatpush.bf16.msra.mxu0 %v990
    %1415 = vmatpush.bf16.msra.mxu0 %v989
    %1416 = vmatpush.bf16.msra.mxu0 %v988
    %1417 = vmatpush.bf16.msra.mxu0 %v987
    %1418 = vmatpush.bf16.msra.mxu0 %v986
    %1419 = vmatpush.bf16.msra.mxu0 %v985
    %1420 = vmatpush.bf16.msra.mxu0 %v984
    %1421 = vmatpush.bf16.msra.mxu0 %v983
    %1422 = vmatmul.bf16.gmra.mxu0 %v502
    %v1423 = vpop.f32.mrf.mxu0
    %v1424 = vadd.f32 %v1375, %v1423
    %v1425 = vpop.f32.mrf.mxu0
    %v1426 = vadd.f32 %v1377, %v1425
    %1427 = vmatmul.bf16.gmra.mxu0 %v511
    %v1428 = vpop.f32.mrf.mxu0
    %v1429 = vadd.f32 %v1380, %v1428
    %v1430 = vpop.f32.mrf.mxu0
    %v1431 = vadd.f32 %v1382, %v1430
    %1432 = vmatmul.bf16.gmra.mxu0 %v520
    %v1433 = vpop.f32.mrf.mxu0
    %v1434 = vadd.f32 %v1385, %v1433
    %v1435 = vpop.f32.mrf.mxu0
    %v1436 = vadd.f32 %v1387, %v1435
    %1437 = vmatmul.bf16.gmra.mxu0 %v529
    %v1438 = vpop.f32.mrf.mxu0
    %v1439 = vadd.f32 %v1390, %v1438
    %v1440 = vpop.f32.mrf.mxu0
    %v1441 = vadd.f32 %v1392, %v1440
    %1442 = vmatmul.bf16.gmra.mxu0 %v538
    %v1443 = vpop.f32.mrf.mxu0
    %v1444 = vadd.f32 %v1395, %v1443
    %v1445 = vpop.f32.mrf.mxu0
    %v1446 = vadd.f32 %v1397, %v1445
    %1447 = vmatmul.bf16.gmra.mxu0 %v547
    %v1448 = vpop.f32.mrf.mxu0
    %v1449 = vadd.f32 %v1400, %v1448
    %v1450 = vpop.f32.mrf.mxu0
    %v1451 = vadd.f32 %v1402, %v1450
    %1452 = vmatmul.bf16.gmra.mxu0 %v556
    %v1453 = vpop.f32.mrf.mxu0
    %v1454 = vadd.f32 %v1405, %v1453
    %v1455 = vpop.f32.mrf.mxu0
    %v1456 = vadd.f32 %v1407, %v1455
    %1457 = vmatmul.bf16.gmra.mxu0 %v565
    %v1458 = vpop.f32.mrf.mxu0
    %v1459 = vadd.f32 %v1410, %v1458
    %v1460 = vpop.f32.mrf.mxu0
    %v1461 = vadd.f32 %v1412, %v1460
    %1462 = vdwg.mxu0
    %1463 = vmatpush.bf16.msra.mxu0 %v998
    %1464 = vmatpush.bf16.msra.mxu0 %v997
    %1465 = vmatpush.bf16.msra.mxu0 %v996
    %1466 = vmatpush.bf16.msra.mxu0 %v995
    %1467 = vmatpush.bf16.msra.mxu0 %v994
    %1468 = vmatpush.bf16.msra.mxu0 %v993
    %1469 = vmatpush.bf16.msra.mxu0 %v992
    %1470 = vmatpush.bf16.msra.mxu0 %v991
    %1471 = vmatmul.bf16.gmra.mxu0 %v503
    %v1472 = vpop.f32.mrf.mxu0
    %v1473 = vadd.f32 %v1424, %v1472
    %v1474 = vpop.f32.mrf.mxu0
    %v1475 = vadd.f32 %v1426, %v1474
    %1476 = vmatmul.bf16.gmra.mxu0 %v512
    %v1477 = vpop.f32.mrf.mxu0
    %v1478 = vadd.f32 %v1429, %v1477
    %v1479 = vpop.f32.mrf.mxu0
    %v1480 = vadd.f32 %v1431, %v1479
    %1481 = vmatmul.bf16.gmra.mxu0 %v521
    %v1482 = vpop.f32.mrf.mxu0
    %v1483 = vadd.f32 %v1434, %v1482
    %v1484 = vpop.f32.mrf.mxu0
    %v1485 = vadd.f32 %v1436, %v1484
    %1486 = vmatmul.bf16.gmra.mxu0 %v530
    %v1487 = vpop.f32.mrf.mxu0
    %v1488 = vadd.f32 %v1439, %v1487
    %v1489 = vpop.f32.mrf.mxu0
    %v1490 = vadd.f32 %v1441, %v1489
    %1491 = vmatmul.bf16.gmra.mxu0 %v539
    %v1492 = vpop.f32.mrf.mxu0
    %v1493 = vadd.f32 %v1444, %v1492
    %v1494 = vpop.f32.mrf.mxu0
    %v1495 = vadd.f32 %v1446, %v1494
    %1496 = vmatmul.bf16.gmra.mxu0 %v548
    %v1497 = vpop.f32.mrf.mxu0
    %v1498 = vadd.f32 %v1449, %v1497
    %v1499 = vpop.f32.mrf.mxu0
    %v1500 = vadd.f32 %v1451, %v1499
    %1501 = vmatmul.bf16.gmra.mxu0 %v557
    %v1502 = vpop.f32.mrf.mxu0
    %v1503 = vadd.f32 %v1454, %v1502
    %v1504 = vpop.f32.mrf.mxu0
    %v1505 = vadd.f32 %v1456, %v1504
    %1506 = vmatmul.bf16.gmra.mxu0 %v566
    %v1507 = vpop.f32.mrf.mxu0
    %v1508 = vadd.f32 %v1459, %v1507
    %v1509 = vpop.f32.mrf.mxu0
    %v1510 = vadd.f32 %v1461, %v1509
    %1511 = vdwg.mxu0
    %v1512 = vpack.c.bf16 %v1473, %v1473
    %v1513 = vpack.c.bf16 %v1475, %v1475
    %v1514 = vpack.c.bf16 %v1478, %v1478
    %v1515 = vpack.c.bf16 %v1480, %v1480
    %v1516 = vpack.c.bf16 %v1483, %v1483
    %v1517 = vpack.c.bf16 %v1485, %v1485
    %v1518 = vpack.c.bf16 %v1488, %v1488
    %v1519 = vpack.c.bf16 %v1490, %v1490
    %v1520 = vpack.c.bf16 %v1493, %v1493
    %v1521 = vpack.c.bf16 %v1495, %v1495
    %v1522 = vpack.c.bf16 %v1498, %v1498
    %v1523 = vpack.c.bf16 %v1500, %v1500
    %v1524 = vpack.c.bf16 %v1503, %v1503
    %v1525 = vpack.c.bf16 %v1505, %v1505
    %v1526 = vpack.c.bf16 %v1508, %v1508
    %v1527 = vpack.c.bf16 %v1510, %v1510
    %1528 = vst [vmem:[#allocation2] sm:$0xf] %v1512
    %1529 = vst [vmem:[#allocation2 + $0x4] sm:$0xf] %v1513
    %1530 = vst [vmem:[#allocation2 + $0x8] sm:$0xf] %v1514
    %1531 = vst [vmem:[#allocation2 + $0xc] sm:$0xf] %v1515
    %1532 = vst [vmem:[#allocation2 + $0x10] sm:$0xf] %v1516
    %1533 = vst [vmem:[#allocation2 + $0x14] sm:$0xf] %v1517
    %1534 = vst [vmem:[#allocation2 + $0x18] sm:$0xf] %v1518
    %1535 = vst [vmem:[#allocation2 + $0x1c] sm:$0xf] %v1519
    %1536 = vst [vmem:[#allocation2 + $0x20] sm:$0xf] %v1520
    %1537 = vst [vmem:[#allocation2 + $0x24] sm:$0xf] %v1521
    %1538 = vst [vmem:[#allocation2 + $0x28] sm:$0xf] %v1522
    %1539 = vst [vmem:[#allocation2 + $0x2c] sm:$0xf] %v1523
    %1540 = vst [vmem:[#allocation2 + $0x30] sm:$0xf] %v1524
    %1541 = vst [vmem:[#allocation2 + $0x34] sm:$0xf] %v1525
    %1542 = vst [vmem:[#allocation2 + $0x38] sm:$0xf] %v1526
    %1543 = vst [vmem:[#allocation2 + $0x3c] sm:$0xf] %v1527
    // Predicated region
    $region14: #{network_block_forward.9} parent=1 // pred_check
      _
    $region15: #{network_block_forward.9} parent=1 // pred_check_branch
      %1545 = sbr.rel (0) target = $region17
    $region16: #{network_block_forward.9} parent=1 // pred_region
      %1547 = vsyncadd [#allocation3], 0
      %s1548 = sshll.u32 [#allocation2], 4
      %s1549 = int_to_ptr.vmem [resolvable:$true] %s1548
      %s1550 = sshll.u32 %s3, 4
      %s1551 = int_to_ptr.hbm [resolvable:$true] %s1550
      %1556 = dma.vmem_to_hbm [thread:$0]  %s1549, 1024, %s1551, [#allocation3], 64, 64, 4
    $region17: #{network_block_forward.9} parent=1 // pred_fallthru
      _
    // Predicated region
    $region18: #{network_block_forward.9} parent=1 // pred_check
      _
    $region19: #{network_block_forward.9} parent=1 // pred_check_branch
      %1558 = sbr.rel (0) target = $region21
    $region20: #{network_block_forward.9} parent=1 // pred_region
      %1560 = dma.done [#allocation3], 1024
    $region21: #{network_block_forward.9} parent=1 // pred_fallthru
      _
    %1561 = vsyncpa [#allocation3], 1

</llo_original>
